<compile_context>
chip_gen: v7x
topology: tpu7x:2x2x1
jax: 0.10.0
libtpu: 0.0.40
codegen_flags: <defaults>
</compile_context>

<pallas_src>
import functools

import numpy as np

import jax
import jax.numpy as jnp
from jax.experimental import pallas as pl
from jax.experimental.pallas import tpu as pltpu


# ---------------------------------------------------------------------------
# Fused whole-module kernel
# ---------------------------------------------------------------------------
def unet_up_kernel(x_ref, w1_ref, g1_ref, b1_ref, w2_ref, g2_ref, b2_ref,
                   wt_ref, bt_ref, mi0_ref, mil_ref, mj0_ref, mjl_ref, o_ref,
                   *, img_w, n_valid):
    """Whole UnetUp forward, everything resident in VMEM.

    Layout: activations are [C, N*H*W] (channels on sublanes, flattened
    (n, h, w) on lanes -> lane-dense since N*H*W is a multiple of 128).

      conv1 -> BN -> ReLU -> rpad -> conv2 -> BN -> ReLU -> rpad -> convT(2,2)

    Each 3x3 valid conv is 9 accumulated MXU matmuls over cyclically shifted
    views (shift = flat offset of the tap).  Shifted values are only *used*
    at interior grid positions, where the cyclic wrap never occurs; border
    positions are masked out of the BN statistics and then rebuilt by the
    in-kernel replication pad.
    """
    nhw = x_ref.shape[1]
    inv_cnt = 1.0 / n_valid

    m_i0 = mi0_ref[...]            # [1, NHW] border masks (exactly 0.0 / 1.0)
    m_il = mil_ref[...]
    m_j0 = mj0_ref[...]
    m_jl = mjl_ref[...]
    m_int = (1.0 - m_i0) * (1.0 - m_il) * (1.0 - m_j0) * (1.0 - m_jl)

    def shift_cols(v, s):
        # u[:, r] = v[:, (r + s) mod nhw]   (cyclic lane rotation on the XLU)
        amt = (-s) % nhw
        if amt == 0:
            return v
        return pltpu.roll(v, shift=amt, axis=1)

    def conv_bn_relu_pad(a, w_ref, g_ref, b_ref):
        # a: [Cin, NHW] f32 on the full HxW grid; returns [Cout, NHW] f32.
        c_out = w_ref.shape[1]
        acc = jnp.zeros((c_out, nhw), jnp.float32)
        for t in range(9):                               # 3x3 taps, unrolled
            di, dj = divmod(t, 3)
            s = (di - 1) * img_w + (dj - 1)
            acc = acc + jnp.dot(
                w_ref[t],                                # [Cout, Cin] bf16
                shift_cols(a, s).astype(jnp.bfloat16),   # [Cin, NHW]  bf16
                preferred_element_type=jnp.float32)
        # BatchNorm2d (training: biased batch stats over the n_valid interior
        # positions), two-pass mean/var in f32.  Conv bias omitted: it is
        # exactly cancelled by the batch-mean subtraction below.
        mean = jnp.sum(acc * m_int, axis=1, keepdims=True) * inv_cnt   # [C,1]
        d = (acc - mean) * m_int
        var = jnp.sum(d * d, axis=1, keepdims=True) * inv_cnt          # [C,1]
        bn_scale = g_ref[...] * jax.lax.rsqrt(var + 1e-5)
        bn_shift = b_ref[...] - mean * bn_scale
        z = jnp.maximum(acc * bn_scale + bn_shift, 0.0)       # BN + ReLU
        # ReplicationPad2d(1): rebuild border columns, then border rows, from
        # the (already correct) interior via masked blends of shifted copies.
        zc = (z + m_j0 * (shift_cols(z, 1) - z)
                + m_jl * (shift_cols(z, -1) - z))
        zp = (zc + m_i0 * (shift_cols(zc, img_w) - zc)
                 + m_il * (shift_cols(zc, -img_w) - zc))
        return zp

    p1 = conv_bn_relu_pad(x_ref[...], w1_ref, g1_ref, b1_ref)
    p2 = conv_bn_relu_pad(p1, w2_ref, g2_ref, b2_ref)

    # ConvTranspose2d(kernel=2, stride=2): stride == kernel -> no overlap, so a
    # single matmul yields the 4 sub-pixel outputs per pixel (keeps its bias).
    o_ref[...] = (jnp.dot(wt_ref[...], p2.astype(jnp.bfloat16),
                          preferred_element_type=jnp.float32)
                  + bt_ref[...])


# ---------------------------------------------------------------------------
# Wrapper
# ---------------------------------------------------------------------------
def _border_masks(n, h, w):
    """Four [1, n*h*w] f32 masks marking i==0, i==h-1, j==0, j==w-1."""
    ii, jj = np.meshgrid(np.arange(h), np.arange(w), indexing="ij")

    def rep(m):
        return jnp.asarray(
            np.tile(m.astype(np.float32).reshape(-1), n).reshape(1, n * h * w))

    return rep(ii == 0), rep(ii == h - 1), rep(jj == 0), rep(jj == w - 1)


def unet_up_forward(x_nchw, params):
    n, c_in, h, w = x_nchw.shape
    c_mid = params["g1"].shape[0]
    c_out4 = params["tw"].shape[0]
    c_out = c_out4 // 4
    nhw = n * h * w

    # One XLA transpose: NCHW -> [Cin, N*H*W] (channels-on-sublanes layout).
    x2d = jnp.transpose(x_nchw, (1, 0, 2, 3)).reshape(c_in, nhw)
    m_i0, m_il, m_j0, m_jl = _border_masks(n, h, w)

    kernel = functools.partial(unet_up_kernel, img_w=w,
                               n_valid=float(n * (h - 2) * (w - 2)))
    full = lambda *shape: pl.BlockSpec(shape, lambda i: (0,) * len(shape))

    yt = pl.pallas_call(
        kernel,
        out_shape=jax.ShapeDtypeStruct((c_out4, nhw), jnp.float32),
        grid=(1,),
        in_specs=[
            full(c_in, nhw),            # x            [Cin, NHW]   f32
            full(9, c_mid, c_in),       # conv1 weight [9, Cmid, Cin] bf16
            full(c_mid, 1),             # gamma1
            full(c_mid, 1),             # beta1
            full(9, c_mid, c_mid),      # conv2 weight
            full(c_mid, 1),             # gamma2
            full(c_mid, 1),             # beta2
            full(c_out4, c_mid),        # convT weight [4*Cout, Cmid] bf16
            full(c_out4, 1),            # convT bias
            full(1, nhw),               # m_i0
            full(1, nhw),               # m_il
            full(1, nhw),               # m_j0
            full(1, nhw),               # m_jl
        ],
        out_specs=full(c_out4, nhw),    # lane-dense output (NHW % 128 == 0)
        compiler_params=pltpu.CompilerParams(
            dimension_semantics=("arbitrary",)),
    )(x2d, params["w1"], params["g1"], params["b1"],
      params["w2"], params["g2"], params["b2"],
      params["tw"], params["tb"], m_i0, m_il, m_j0, m_jl)

    # Sub-pixel (depth-to-space) reshuffle + restore NCHW, fused into a single
    # XLA transpose of the (small) output tensor.
    y = yt.reshape(2, 2, c_out, n, h, w)               # (a, b, co, n, i, j)
    y = jnp.transpose(y, (3, 2, 4, 0, 5, 1)).reshape(n, c_out, 2 * h, 2 * w)
    return y


# ---------------------------------------------------------------------------
# Parameters (raw PyTorch layouts + one-time kernel layout prep)
# ---------------------------------------------------------------------------
def make_unet_up_params(key, in_channels, mid_channels, out_channels):
    """Raw parameters in PyTorch layouts (also used by the pure-JAX reference).

    Conv biases are intentionally omitted: with training-mode BatchNorm they
    are exactly cancelled by the batch-mean subtraction.
    """
    ks = jax.random.split(key, 8)
    return {
        "w1": 0.1 * jax.random.normal(ks[0], (mid_channels, in_channels, 3, 3), jnp.float32),
        "g1": 1.0 + 0.1 * jax.random.normal(ks[1], (mid_channels,), jnp.float32),
        "b1": 0.1 * jax.random.normal(ks[2], (mid_channels,), jnp.float32),
        "w2": 0.1 * jax.random.normal(ks[3], (mid_channels, mid_channels, 3, 3), jnp.float32),
        "g2": 1.0 + 0.1 * jax.random.normal(ks[4], (mid_channels,), jnp.float32),
        "b2": 0.1 * jax.random.normal(ks[5], (mid_channels,), jnp.float32),
        # ConvTranspose2d weight layout [Cin, Cout, 2, 2], bias [Cout].
        "tw": 0.1 * jax.random.normal(ks[6], (mid_channels, out_channels, 2, 2), jnp.float32),
        "tb": 0.1 * jax.random.normal(ks[7], (out_channels,), jnp.float32),
    }


def prepare_kernel_params(raw):
    """One-time weight layout prep (hoisted out of the forward path)."""
    def conv_w9(wc):  # [Cout, Cin, 3, 3] -> [9, Cout, Cin] bf16, t = 3*di + dj
        return (jnp.transpose(wc, (2, 3, 0, 1))
                .reshape(9, wc.shape[0], wc.shape[1]).astype(jnp.bfloat16))

    c_mid = raw["w1"].shape[0]
    c_out = raw["tw"].shape[1]
    return {
        "w1": conv_w9(raw["w1"]),
        "g1": raw["g1"].reshape(c_mid, 1),
        "b1": raw["b1"].reshape(c_mid, 1),
        "w2": conv_w9(raw["w2"]),
        "g2": raw["g2"].reshape(c_mid, 1),
        "b2": raw["b2"].reshape(c_mid, 1),
        # [Cin, Cout, 2, 2] -> rows ordered ((a*2+b)*Cout + co), cols = Cin.
        "tw": (jnp.transpose(raw["tw"], (2, 3, 1, 0))
               .reshape(4 * c_out, c_mid).astype(jnp.bfloat16)),
        "tb": jnp.tile(raw["tb"], 4).reshape(4 * c_out, 1),
    }


# ---------------------------------------------------------------------------
# Pure-JAX f32 reference (PyTorch semantics, training-mode BN)
# ---------------------------------------------------------------------------
def unet_up_reference(x, raw):
    def cnr(hh, wc, g, b):
        y = jax.lax.conv_general_dilated(
            hh, wc, (1, 1), "VALID",
            dimension_numbers=("NCHW", "OIHW", "NCHW"))
        mean = jnp.mean(y, axis=(0, 2, 3), keepdims=True)
        var = jnp.mean((y - mean) ** 2, axis=(0, 2, 3), keepdims=True)
        y = ((y - mean) * jax.lax.rsqrt(var + 1e-5) * g.reshape(1, -1, 1, 1)
             + b.reshape(1, -1, 1, 1))
        return jnp.maximum(y, 0.0)

    def rpad(hh):
        return jnp.pad(hh, ((0, 0), (0, 0), (1, 1), (1, 1)), mode="edge")

    p1 = rpad(cnr(x, raw["w1"], raw["g1"], raw["b1"]))
    p2 = rpad(cnr(p1, raw["w2"], raw["g2"], raw["b2"]))
    n, _, h, w = p2.shape
    c_out = raw["tb"].shape[0]
    t = jnp.einsum("ncij,cdab->ndiajb", p2, raw["tw"]).reshape(n, c_out, 2 * h, 2 * w)
    return t + raw["tb"].reshape(1, -1, 1, 1)


# ---------------------------------------------------------------------------
# Main
# ---------------------------------------------------------------------------
if __name__ == "__main__":
    key = jax.random.PRNGKey(0)
    kp, kx = jax.random.split(key)

    # UnetUp(in_channels=16, mid_channels=32, out_channels=16) on a 16x16 map.
    N, Cin, Cmid, Cout, H, W = 2, 16, 32, 16, 16, 16
    raw = make_unet_up_params(kp, Cin, Cmid, Cout)
    params = prepare_kernel_params(raw)
    x = jax.random.normal(kx, (N, Cin, H, W), jnp.float32)   # NCHW (PyTorch)

    fwd = jax.jit(functools.partial(unet_up_forward, params=params))
    out = fwd(x)
    jax.block_until_ready(out)

    # conv(3x3,valid) -> pad -> conv -> pad -> transpose-conv(2,s=2) doubles H,W.
    assert out.shape == (N, Cout, 2 * H, 2 * W), out.shape
    assert bool(jnp.all(jnp.isfinite(out)))

    # Numerical check against a pure-JAX f32 reference (kernel matmuls in bf16).
    ref = unet_up_reference(x, raw)
    err = float(jnp.max(jnp.abs(out - ref)))
    assert err < 1e-1, f"max abs err vs reference: {err}"

    print("KERNEL_OK")
</pallas_src>

<mosaic_0001>
module attributes {stable_mosaic.version = 11 : i64} {
  func.func @unet_up_kernel(%arg0: i32, %arg1: memref<16x512xf32, #tpu.memory_space<vmem>>, %arg2: memref<9x32x16xbf16, #tpu.memory_space<vmem>>, %arg3: memref<32x1xf32, #tpu.memory_space<vmem>>, %arg4: memref<32x1xf32, #tpu.memory_space<vmem>>, %arg5: memref<9x32x32xbf16, #tpu.memory_space<vmem>>, %arg6: memref<32x1xf32, #tpu.memory_space<vmem>>, %arg7: memref<32x1xf32, #tpu.memory_space<vmem>>, %arg8: memref<64x32xbf16, #tpu.memory_space<vmem>>, %arg9: memref<64x1xf32, #tpu.memory_space<vmem>>, %arg10: memref<1x512xf32, #tpu.memory_space<vmem>>, %arg11: memref<1x512xf32, #tpu.memory_space<vmem>>, %arg12: memref<1x512xf32, #tpu.memory_space<vmem>>, %arg13: memref<1x512xf32, #tpu.memory_space<vmem>>, %arg14: memref<64x512xf32, #tpu.memory_space<vmem>>) attributes {dimension_semantics = [#tpu.dimension_semantics<arbitrary>], iteration_bounds = array<i64: 1>, scalar_prefetch = 0 : i64, scratch_operands = 0 : i64, tpu.core_type = #tpu.core_type<tc>, window_params = [{pipeline_mode = #tpu.pipeline_mode<synchronous>, transform_indices = @transform_0, window_bounds = array<i64: 16, 512>}, {pipeline_mode = #tpu.pipeline_mode<synchronous>, transform_indices = @transform_1, window_bounds = array<i64: 9, 32, 16>}, {pipeline_mode = #tpu.pipeline_mode<synchronous>, transform_indices = @transform_2, window_bounds = array<i64: 32, 1>}, {pipeline_mode = #tpu.pipeline_mode<synchronous>, transform_indices = @transform_3, window_bounds = array<i64: 32, 1>}, {pipeline_mode = #tpu.pipeline_mode<synchronous>, transform_indices = @transform_4, window_bounds = array<i64: 9, 32, 32>}, {pipeline_mode = #tpu.pipeline_mode<synchronous>, transform_indices = @transform_5, window_bounds = array<i64: 32, 1>}, {pipeline_mode = #tpu.pipeline_mode<synchronous>, transform_indices = @transform_6, window_bounds = array<i64: 32, 1>}, {pipeline_mode = #tpu.pipeline_mode<synchronous>, transform_indices = @transform_7, window_bounds = array<i64: 64, 32>}, {pipeline_mode = #tpu.pipeline_mode<synchronous>, transform_indices = @transform_8, window_bounds = array<i64: 64, 1>}, {pipeline_mode = #tpu.pipeline_mode<synchronous>, transform_indices = @transform_9, window_bounds = array<i64: 1, 512>}, {pipeline_mode = #tpu.pipeline_mode<synchronous>, transform_indices = @transform_10, window_bounds = array<i64: 1, 512>}, {pipeline_mode = #tpu.pipeline_mode<synchronous>, transform_indices = @transform_11, window_bounds = array<i64: 1, 512>}, {pipeline_mode = #tpu.pipeline_mode<synchronous>, transform_indices = @transform_12, window_bounds = array<i64: 1, 512>}, {pipeline_mode = #tpu.pipeline_mode<synchronous>, transform_indices = @transform_13, window_bounds = array<i64: 64, 512>}]} {
    %c0 = arith.constant 0 : index
    %c0_0 = arith.constant 0 : index
    %0 = vector.load %arg10[%c0, %c0_0] : memref<1x512xf32, #tpu.memory_space<vmem>>, vector<1x512xf32>
    %c0_1 = arith.constant 0 : index
    %c0_2 = arith.constant 0 : index
    %1 = vector.load %arg11[%c0_1, %c0_2] : memref<1x512xf32, #tpu.memory_space<vmem>>, vector<1x512xf32>
    %c0_3 = arith.constant 0 : index
    %c0_4 = arith.constant 0 : index
    %2 = vector.load %arg12[%c0_3, %c0_4] : memref<1x512xf32, #tpu.memory_space<vmem>>, vector<1x512xf32>
    %c0_5 = arith.constant 0 : index
    %c0_6 = arith.constant 0 : index
    %3 = vector.load %arg13[%c0_5, %c0_6] : memref<1x512xf32, #tpu.memory_space<vmem>>, vector<1x512xf32>
    %cst = arith.constant 1.000000e+00 : f32
    %4 = vector.broadcast %cst : f32 to vector<1x512xf32>
    %5 = arith.subf %4, %0 : vector<1x512xf32>
    %cst_7 = arith.constant 1.000000e+00 : f32
    %6 = vector.broadcast %cst_7 : f32 to vector<1x512xf32>
    %7 = arith.subf %6, %1 : vector<1x512xf32>
    %8 = arith.mulf %5, %7 : vector<1x512xf32>
    %cst_8 = arith.constant 1.000000e+00 : f32
    %9 = vector.broadcast %cst_8 : f32 to vector<1x512xf32>
    %10 = arith.subf %9, %2 : vector<1x512xf32>
    %11 = arith.mulf %8, %10 : vector<1x512xf32>
    %cst_9 = arith.constant 1.000000e+00 : f32
    %12 = vector.broadcast %cst_9 : f32 to vector<1x512xf32>
    %13 = arith.subf %12, %3 : vector<1x512xf32>
    %14 = arith.mulf %11, %13 : vector<1x512xf32>
    %c0_10 = arith.constant 0 : index
    %c0_11 = arith.constant 0 : index
    %15 = vector.load %arg1[%c0_10, %c0_11] : memref<16x512xf32, #tpu.memory_space<vmem>>, vector<16x512xf32>
    %cst_12 = arith.constant 0.000000e+00 : f32
    %16 = vector.broadcast %cst_12 : f32 to vector<32x512xf32>
    %c0_13 = arith.constant 0 : index
    %c0_14 = arith.constant 0 : index
    %c0_15 = arith.constant 0 : index
    %17 = vector.load %arg2[%c0_13, %c0_14, %c0_15] : memref<9x32x16xbf16, #tpu.memory_space<vmem>>, vector<1x32x16xbf16>
    %18 = vector.shape_cast %17 : vector<1x32x16xbf16> to vector<32x16xbf16>
    %c17_i32 = arith.constant 17 : i32
    %19 = tpu.dynamic_rotate %15 by %c17_i32 dim 1 : vector<16x512xf32>, i32 -> vector<16x512xf32>
    %20 = arith.truncf %19 : vector<16x512xf32> to vector<16x512xbf16>
    %cst_16 = arith.constant dense<0.000000e+00> : vector<32x512xf32>
    %21 = tpu.matmul %18, %20, %cst_16 {dimension_numbers = #tpu.dot_dimension_numbers<[1], [0], [0], [1], [0, 0, 1, 1], [], []>} : vector<32x16xbf16>, vector<16x512xbf16>, vector<32x512xf32> -> vector<32x512xf32>
    %22 = arith.addf %16, %21 : vector<32x512xf32>
    %c1 = arith.constant 1 : index
    %c0_17 = arith.constant 0 : index
    %c0_18 = arith.constant 0 : index
    %23 = vector.load %arg2[%c1, %c0_17, %c0_18] : memref<9x32x16xbf16, #tpu.memory_space<vmem>>, vector<1x32x16xbf16>
    %24 = vector.shape_cast %23 : vector<1x32x16xbf16> to vector<32x16xbf16>
    %c16_i32 = arith.constant 16 : i32
    %25 = tpu.dynamic_rotate %15 by %c16_i32 dim 1 : vector<16x512xf32>, i32 -> vector<16x512xf32>
    %26 = arith.truncf %25 : vector<16x512xf32> to vector<16x512xbf16>
    %cst_19 = arith.constant dense<0.000000e+00> : vector<32x512xf32>
    %27 = tpu.matmul %24, %26, %cst_19 {dimension_numbers = #tpu.dot_dimension_numbers<[1], [0], [0], [1], [0, 0, 1, 1], [], []>} : vector<32x16xbf16>, vector<16x512xbf16>, vector<32x512xf32> -> vector<32x512xf32>
    %28 = arith.addf %22, %27 : vector<32x512xf32>
    %c2 = arith.constant 2 : index
    %c0_20 = arith.constant 0 : index
    %c0_21 = arith.constant 0 : index
    %29 = vector.load %arg2[%c2, %c0_20, %c0_21] : memref<9x32x16xbf16, #tpu.memory_space<vmem>>, vector<1x32x16xbf16>
    %30 = vector.shape_cast %29 : vector<1x32x16xbf16> to vector<32x16xbf16>
    %c15_i32 = arith.constant 15 : i32
    %31 = tpu.dynamic_rotate %15 by %c15_i32 dim 1 : vector<16x512xf32>, i32 -> vector<16x512xf32>
    %32 = arith.truncf %31 : vector<16x512xf32> to vector<16x512xbf16>
    %cst_22 = arith.constant dense<0.000000e+00> : vector<32x512xf32>
    %33 = tpu.matmul %30, %32, %cst_22 {dimension_numbers = #tpu.dot_dimension_numbers<[1], [0], [0], [1], [0, 0, 1, 1], [], []>} : vector<32x16xbf16>, vector<16x512xbf16>, vector<32x512xf32> -> vector<32x512xf32>
    %34 = arith.addf %28, %33 : vector<32x512xf32>
    %c3 = arith.constant 3 : index
    %c0_23 = arith.constant 0 : index
    %c0_24 = arith.constant 0 : index
    %35 = vector.load %arg2[%c3, %c0_23, %c0_24] : memref<9x32x16xbf16, #tpu.memory_space<vmem>>, vector<1x32x16xbf16>
    %36 = vector.shape_cast %35 : vector<1x32x16xbf16> to vector<32x16xbf16>
    %c1_i32 = arith.constant 1 : i32
    %37 = tpu.dynamic_rotate %15 by %c1_i32 dim 1 : vector<16x512xf32>, i32 -> vector<16x512xf32>
    %38 = arith.truncf %37 : vector<16x512xf32> to vector<16x512xbf16>
    %cst_25 = arith.constant dense<0.000000e+00> : vector<32x512xf32>
    %39 = tpu.matmul %36, %38, %cst_25 {dimension_numbers = #tpu.dot_dimension_numbers<[1], [0], [0], [1], [0, 0, 1, 1], [], []>} : vector<32x16xbf16>, vector<16x512xbf16>, vector<32x512xf32> -> vector<32x512xf32>
    %40 = arith.addf %34, %39 : vector<32x512xf32>
    %c4 = arith.constant 4 : index
    %c0_26 = arith.constant 0 : index
    %c0_27 = arith.constant 0 : index
    %41 = vector.load %arg2[%c4, %c0_26, %c0_27] : memref<9x32x16xbf16, #tpu.memory_space<vmem>>, vector<1x32x16xbf16>
    %42 = vector.shape_cast %41 : vector<1x32x16xbf16> to vector<32x16xbf16>
    %43 = arith.truncf %15 : vector<16x512xf32> to vector<16x512xbf16>
    %cst_28 = arith.constant dense<0.000000e+00> : vector<32x512xf32>
    %44 = tpu.matmul %42, %43, %cst_28 {dimension_numbers = #tpu.dot_dimension_numbers<[1], [0], [0], [1], [0, 0, 1, 1], [], []>} : vector<32x16xbf16>, vector<16x512xbf16>, vector<32x512xf32> -> vector<32x512xf32>
    %45 = arith.addf %40, %44 : vector<32x512xf32>
    %c5 = arith.constant 5 : index
    %c0_29 = arith.constant 0 : index
    %c0_30 = arith.constant 0 : index
    %46 = vector.load %arg2[%c5, %c0_29, %c0_30] : memref<9x32x16xbf16, #tpu.memory_space<vmem>>, vector<1x32x16xbf16>
    %47 = vector.shape_cast %46 : vector<1x32x16xbf16> to vector<32x16xbf16>
    %c511_i32 = arith.constant 511 : i32
    %48 = tpu.dynamic_rotate %15 by %c511_i32 dim 1 : vector<16x512xf32>, i32 -> vector<16x512xf32>
    %49 = arith.truncf %48 : vector<16x512xf32> to vector<16x512xbf16>
    %cst_31 = arith.constant dense<0.000000e+00> : vector<32x512xf32>
    %50 = tpu.matmul %47, %49, %cst_31 {dimension_numbers = #tpu.dot_dimension_numbers<[1], [0], [0], [1], [0, 0, 1, 1], [], []>} : vector<32x16xbf16>, vector<16x512xbf16>, vector<32x512xf32> -> vector<32x512xf32>
    %51 = arith.addf %45, %50 : vector<32x512xf32>
    %c6 = arith.constant 6 : index
    %c0_32 = arith.constant 0 : index
    %c0_33 = arith.constant 0 : index
    %52 = vector.load %arg2[%c6, %c0_32, %c0_33] : memref<9x32x16xbf16, #tpu.memory_space<vmem>>, vector<1x32x16xbf16>
    %53 = vector.shape_cast %52 : vector<1x32x16xbf16> to vector<32x16xbf16>
    %c497_i32 = arith.constant 497 : i32
    %54 = tpu.dynamic_rotate %15 by %c497_i32 dim 1 : vector<16x512xf32>, i32 -> vector<16x512xf32>
    %55 = arith.truncf %54 : vector<16x512xf32> to vector<16x512xbf16>
    %cst_34 = arith.constant dense<0.000000e+00> : vector<32x512xf32>
    %56 = tpu.matmul %53, %55, %cst_34 {dimension_numbers = #tpu.dot_dimension_numbers<[1], [0], [0], [1], [0, 0, 1, 1], [], []>} : vector<32x16xbf16>, vector<16x512xbf16>, vector<32x512xf32> -> vector<32x512xf32>
    %57 = arith.addf %51, %56 : vector<32x512xf32>
    %c7 = arith.constant 7 : index
    %c0_35 = arith.constant 0 : index
    %c0_36 = arith.constant 0 : index
    %58 = vector.load %arg2[%c7, %c0_35, %c0_36] : memref<9x32x16xbf16, #tpu.memory_space<vmem>>, vector<1x32x16xbf16>
    %59 = vector.shape_cast %58 : vector<1x32x16xbf16> to vector<32x16xbf16>
    %c496_i32 = arith.constant 496 : i32
    %60 = tpu.dynamic_rotate %15 by %c496_i32 dim 1 : vector<16x512xf32>, i32 -> vector<16x512xf32>
    %61 = arith.truncf %60 : vector<16x512xf32> to vector<16x512xbf16>
    %cst_37 = arith.constant dense<0.000000e+00> : vector<32x512xf32>
    %62 = tpu.matmul %59, %61, %cst_37 {dimension_numbers = #tpu.dot_dimension_numbers<[1], [0], [0], [1], [0, 0, 1, 1], [], []>} : vector<32x16xbf16>, vector<16x512xbf16>, vector<32x512xf32> -> vector<32x512xf32>
    %63 = arith.addf %57, %62 : vector<32x512xf32>
    %c8 = arith.constant 8 : index
    %c0_38 = arith.constant 0 : index
    %c0_39 = arith.constant 0 : index
    %64 = vector.load %arg2[%c8, %c0_38, %c0_39] : memref<9x32x16xbf16, #tpu.memory_space<vmem>>, vector<1x32x16xbf16>
    %65 = vector.shape_cast %64 : vector<1x32x16xbf16> to vector<32x16xbf16>
    %c495_i32 = arith.constant 495 : i32
    %66 = tpu.dynamic_rotate %15 by %c495_i32 dim 1 : vector<16x512xf32>, i32 -> vector<16x512xf32>
    %67 = arith.truncf %66 : vector<16x512xf32> to vector<16x512xbf16>
    %cst_40 = arith.constant dense<0.000000e+00> : vector<32x512xf32>
    %68 = tpu.matmul %65, %67, %cst_40 {dimension_numbers = #tpu.dot_dimension_numbers<[1], [0], [0], [1], [0, 0, 1, 1], [], []>} : vector<32x16xbf16>, vector<16x512xbf16>, vector<32x512xf32> -> vector<32x512xf32>
    %69 = arith.addf %63, %68 : vector<32x512xf32>
    %70 = vector.broadcast %14 : vector<1x512xf32> to vector<32x512xf32>
    %71 = arith.mulf %69, %70 : vector<32x512xf32>
    %cst_41 = arith.constant dense<0.000000e+00> : vector<32xf32>
    %72 = vector.multi_reduction <add>, %71, %cst_41 [1] : vector<32x512xf32> to vector<32xf32>
    %73 = vector.shape_cast %72 : vector<32xf32> to vector<32x1xf32>
    %cst_42 = arith.constant 0.00255102036 : f32
    %74 = vector.broadcast %cst_42 : f32 to vector<32x1xf32>
    %75 = arith.mulf %73, %74 : vector<32x1xf32>
    %76 = vector.broadcast %75 : vector<32x1xf32> to vector<32x512xf32>
    %77 = arith.subf %69, %76 : vector<32x512xf32>
    %78 = vector.broadcast %14 : vector<1x512xf32> to vector<32x512xf32>
    %79 = arith.mulf %77, %78 : vector<32x512xf32>
    %80 = arith.mulf %79, %79 : vector<32x512xf32>
    %cst_43 = arith.constant dense<0.000000e+00> : vector<32xf32>
    %81 = vector.multi_reduction <add>, %80, %cst_43 [1] : vector<32x512xf32> to vector<32xf32>
    %82 = vector.shape_cast %81 : vector<32xf32> to vector<32x1xf32>
    %cst_44 = arith.constant 0.00255102036 : f32
    %83 = vector.broadcast %cst_44 : f32 to vector<32x1xf32>
    %84 = arith.mulf %82, %83 : vector<32x1xf32>
    %c0_45 = arith.constant 0 : index
    %c0_46 = arith.constant 0 : index
    %85 = vector.load %arg3[%c0_45, %c0_46] : memref<32x1xf32, #tpu.memory_space<vmem>>, vector<32x1xf32>
    %cst_47 = arith.constant 9.99999974E-6 : f32
    %86 = vector.broadcast %cst_47 : f32 to vector<32x1xf32>
    %87 = arith.addf %84, %86 : vector<32x1xf32>
    %88 = math.rsqrt %87 : vector<32x1xf32>
    %89 = arith.mulf %85, %88 : vector<32x1xf32>
    %c0_48 = arith.constant 0 : index
    %c0_49 = arith.constant 0 : index
    %90 = vector.load %arg4[%c0_48, %c0_49] : memref<32x1xf32, #tpu.memory_space<vmem>>, vector<32x1xf32>
    %91 = arith.mulf %75, %89 : vector<32x1xf32>
    %92 = arith.subf %90, %91 : vector<32x1xf32>
    %93 = vector.broadcast %89 : vector<32x1xf32> to vector<32x512xf32>
    %94 = arith.mulf %69, %93 : vector<32x512xf32>
    %95 = vector.broadcast %92 : vector<32x1xf32> to vector<32x512xf32>
    %96 = arith.addf %94, %95 : vector<32x512xf32>
    %cst_50 = arith.constant 0.000000e+00 : f32
    %97 = vector.broadcast %cst_50 : f32 to vector<32x512xf32>
    %98 = arith.maximumf %96, %97 : vector<32x512xf32>
    %c511_i32_51 = arith.constant 511 : i32
    %99 = tpu.dynamic_rotate %98 by %c511_i32_51 dim 1 : vector<32x512xf32>, i32 -> vector<32x512xf32>
    %100 = arith.subf %99, %98 : vector<32x512xf32>
    %101 = vector.broadcast %2 : vector<1x512xf32> to vector<32x512xf32>
    %102 = arith.mulf %101, %100 : vector<32x512xf32>
    %103 = arith.addf %98, %102 : vector<32x512xf32>
    %c1_i32_52 = arith.constant 1 : i32
    %104 = tpu.dynamic_rotate %98 by %c1_i32_52 dim 1 : vector<32x512xf32>, i32 -> vector<32x512xf32>
    %105 = arith.subf %104, %98 : vector<32x512xf32>
    %106 = vector.broadcast %3 : vector<1x512xf32> to vector<32x512xf32>
    %107 = arith.mulf %106, %105 : vector<32x512xf32>
    %108 = arith.addf %103, %107 : vector<32x512xf32>
    %c496_i32_53 = arith.constant 496 : i32
    %109 = tpu.dynamic_rotate %108 by %c496_i32_53 dim 1 : vector<32x512xf32>, i32 -> vector<32x512xf32>
    %110 = arith.subf %109, %108 : vector<32x512xf32>
    %111 = vector.broadcast %0 : vector<1x512xf32> to vector<32x512xf32>
    %112 = arith.mulf %111, %110 : vector<32x512xf32>
    %113 = arith.addf %108, %112 : vector<32x512xf32>
    %c16_i32_54 = arith.constant 16 : i32
    %114 = tpu.dynamic_rotate %108 by %c16_i32_54 dim 1 : vector<32x512xf32>, i32 -> vector<32x512xf32>
    %115 = arith.subf %114, %108 : vector<32x512xf32>
    %116 = vector.broadcast %1 : vector<1x512xf32> to vector<32x512xf32>
    %117 = arith.mulf %116, %115 : vector<32x512xf32>
    %118 = arith.addf %113, %117 : vector<32x512xf32>
    %cst_55 = arith.constant 0.000000e+00 : f32
    %119 = vector.broadcast %cst_55 : f32 to vector<32x512xf32>
    %c0_56 = arith.constant 0 : index
    %c0_57 = arith.constant 0 : index
    %c0_58 = arith.constant 0 : index
    %120 = vector.load %arg5[%c0_56, %c0_57, %c0_58] : memref<9x32x32xbf16, #tpu.memory_space<vmem>>, vector<1x32x32xbf16>
    %121 = vector.shape_cast %120 : vector<1x32x32xbf16> to vector<32x32xbf16>
    %c17_i32_59 = arith.constant 17 : i32
    %122 = tpu.dynamic_rotate %118 by %c17_i32_59 dim 1 : vector<32x512xf32>, i32 -> vector<32x512xf32>
    %123 = arith.truncf %122 : vector<32x512xf32> to vector<32x512xbf16>
    %cst_60 = arith.constant dense<0.000000e+00> : vector<32x512xf32>
    %124 = tpu.matmul %121, %123, %cst_60 {dimension_numbers = #tpu.dot_dimension_numbers<[1], [0], [0], [1], [0, 0, 1, 1], [], []>} : vector<32x32xbf16>, vector<32x512xbf16>, vector<32x512xf32> -> vector<32x512xf32>
    %125 = arith.addf %119, %124 : vector<32x512xf32>
    %c1_61 = arith.constant 1 : index
    %c0_62 = arith.constant 0 : index
    %c0_63 = arith.constant 0 : index
    %126 = vector.load %arg5[%c1_61, %c0_62, %c0_63] : memref<9x32x32xbf16, #tpu.memory_space<vmem>>, vector<1x32x32xbf16>
    %127 = vector.shape_cast %126 : vector<1x32x32xbf16> to vector<32x32xbf16>
    %c16_i32_64 = arith.constant 16 : i32
    %128 = tpu.dynamic_rotate %118 by %c16_i32_64 dim 1 : vector<32x512xf32>, i32 -> vector<32x512xf32>
    %129 = arith.truncf %128 : vector<32x512xf32> to vector<32x512xbf16>
    %cst_65 = arith.constant dense<0.000000e+00> : vector<32x512xf32>
    %130 = tpu.matmul %127, %129, %cst_65 {dimension_numbers = #tpu.dot_dimension_numbers<[1], [0], [0], [1], [0, 0, 1, 1], [], []>} : vector<32x32xbf16>, vector<32x512xbf16>, vector<32x512xf32> -> vector<32x512xf32>
    %131 = arith.addf %125, %130 : vector<32x512xf32>
    %c2_66 = arith.constant 2 : index
    %c0_67 = arith.constant 0 : index
    %c0_68 = arith.constant 0 : index
    %132 = vector.load %arg5[%c2_66, %c0_67, %c0_68] : memref<9x32x32xbf16, #tpu.memory_space<vmem>>, vector<1x32x32xbf16>
    %133 = vector.shape_cast %132 : vector<1x32x32xbf16> to vector<32x32xbf16>
    %c15_i32_69 = arith.constant 15 : i32
    %134 = tpu.dynamic_rotate %118 by %c15_i32_69 dim 1 : vector<32x512xf32>, i32 -> vector<32x512xf32>
    %135 = arith.truncf %134 : vector<32x512xf32> to vector<32x512xbf16>
    %cst_70 = arith.constant dense<0.000000e+00> : vector<32x512xf32>
    %136 = tpu.matmul %133, %135, %cst_70 {dimension_numbers = #tpu.dot_dimension_numbers<[1], [0], [0], [1], [0, 0, 1, 1], [], []>} : vector<32x32xbf16>, vector<32x512xbf16>, vector<32x512xf32> -> vector<32x512xf32>
    %137 = arith.addf %131, %136 : vector<32x512xf32>
    %c3_71 = arith.constant 3 : index
    %c0_72 = arith.constant 0 : index
    %c0_73 = arith.constant 0 : index
    %138 = vector.load %arg5[%c3_71, %c0_72, %c0_73] : memref<9x32x32xbf16, #tpu.memory_space<vmem>>, vector<1x32x32xbf16>
    %139 = vector.shape_cast %138 : vector<1x32x32xbf16> to vector<32x32xbf16>
    %c1_i32_74 = arith.constant 1 : i32
    %140 = tpu.dynamic_rotate %118 by %c1_i32_74 dim 1 : vector<32x512xf32>, i32 -> vector<32x512xf32>
    %141 = arith.truncf %140 : vector<32x512xf32> to vector<32x512xbf16>
    %cst_75 = arith.constant dense<0.000000e+00> : vector<32x512xf32>
    %142 = tpu.matmul %139, %141, %cst_75 {dimension_numbers = #tpu.dot_dimension_numbers<[1], [0], [0], [1], [0, 0, 1, 1], [], []>} : vector<32x32xbf16>, vector<32x512xbf16>, vector<32x512xf32> -> vector<32x512xf32>
    %143 = arith.addf %137, %142 : vector<32x512xf32>
    %c4_76 = arith.constant 4 : index
    %c0_77 = arith.constant 0 : index
    %c0_78 = arith.constant 0 : index
    %144 = vector.load %arg5[%c4_76, %c0_77, %c0_78] : memref<9x32x32xbf16, #tpu.memory_space<vmem>>, vector<1x32x32xbf16>
    %145 = vector.shape_cast %144 : vector<1x32x32xbf16> to vector<32x32xbf16>
    %146 = arith.truncf %118 : vector<32x512xf32> to vector<32x512xbf16>
    %cst_79 = arith.constant dense<0.000000e+00> : vector<32x512xf32>
    %147 = tpu.matmul %145, %146, %cst_79 {dimension_numbers = #tpu.dot_dimension_numbers<[1], [0], [0], [1], [0, 0, 1, 1], [], []>} : vector<32x32xbf16>, vector<32x512xbf16>, vector<32x512xf32> -> vector<32x512xf32>
    %148 = arith.addf %143, %147 : vector<32x512xf32>
    %c5_80 = arith.constant 5 : index
    %c0_81 = arith.constant 0 : index
    %c0_82 = arith.constant 0 : index
    %149 = vector.load %arg5[%c5_80, %c0_81, %c0_82] : memref<9x32x32xbf16, #tpu.memory_space<vmem>>, vector<1x32x32xbf16>
    %150 = vector.shape_cast %149 : vector<1x32x32xbf16> to vector<32x32xbf16>
    %c511_i32_83 = arith.constant 511 : i32
    %151 = tpu.dynamic_rotate %118 by %c511_i32_83 dim 1 : vector<32x512xf32>, i32 -> vector<32x512xf32>
    %152 = arith.truncf %151 : vector<32x512xf32> to vector<32x512xbf16>
    %cst_84 = arith.constant dense<0.000000e+00> : vector<32x512xf32>
    %153 = tpu.matmul %150, %152, %cst_84 {dimension_numbers = #tpu.dot_dimension_numbers<[1], [0], [0], [1], [0, 0, 1, 1], [], []>} : vector<32x32xbf16>, vector<32x512xbf16>, vector<32x512xf32> -> vector<32x512xf32>
    %154 = arith.addf %148, %153 : vector<32x512xf32>
    %c6_85 = arith.constant 6 : index
    %c0_86 = arith.constant 0 : index
    %c0_87 = arith.constant 0 : index
    %155 = vector.load %arg5[%c6_85, %c0_86, %c0_87] : memref<9x32x32xbf16, #tpu.memory_space<vmem>>, vector<1x32x32xbf16>
    %156 = vector.shape_cast %155 : vector<1x32x32xbf16> to vector<32x32xbf16>
    %c497_i32_88 = arith.constant 497 : i32
    %157 = tpu.dynamic_rotate %118 by %c497_i32_88 dim 1 : vector<32x512xf32>, i32 -> vector<32x512xf32>
    %158 = arith.truncf %157 : vector<32x512xf32> to vector<32x512xbf16>
    %cst_89 = arith.constant dense<0.000000e+00> : vector<32x512xf32>
    %159 = tpu.matmul %156, %158, %cst_89 {dimension_numbers = #tpu.dot_dimension_numbers<[1], [0], [0], [1], [0, 0, 1, 1], [], []>} : vector<32x32xbf16>, vector<32x512xbf16>, vector<32x512xf32> -> vector<32x512xf32>
    %160 = arith.addf %154, %159 : vector<32x512xf32>
    %c7_90 = arith.constant 7 : index
    %c0_91 = arith.constant 0 : index
    %c0_92 = arith.constant 0 : index
    %161 = vector.load %arg5[%c7_90, %c0_91, %c0_92] : memref<9x32x32xbf16, #tpu.memory_space<vmem>>, vector<1x32x32xbf16>
    %162 = vector.shape_cast %161 : vector<1x32x32xbf16> to vector<32x32xbf16>
    %c496_i32_93 = arith.constant 496 : i32
    %163 = tpu.dynamic_rotate %118 by %c496_i32_93 dim 1 : vector<32x512xf32>, i32 -> vector<32x512xf32>
    %164 = arith.truncf %163 : vector<32x512xf32> to vector<32x512xbf16>
    %cst_94 = arith.constant dense<0.000000e+00> : vector<32x512xf32>
    %165 = tpu.matmul %162, %164, %cst_94 {dimension_numbers = #tpu.dot_dimension_numbers<[1], [0], [0], [1], [0, 0, 1, 1], [], []>} : vector<32x32xbf16>, vector<32x512xbf16>, vector<32x512xf32> -> vector<32x512xf32>
    %166 = arith.addf %160, %165 : vector<32x512xf32>
    %c8_95 = arith.constant 8 : index
    %c0_96 = arith.constant 0 : index
    %c0_97 = arith.constant 0 : index
    %167 = vector.load %arg5[%c8_95, %c0_96, %c0_97] : memref<9x32x32xbf16, #tpu.memory_space<vmem>>, vector<1x32x32xbf16>
    %168 = vector.shape_cast %167 : vector<1x32x32xbf16> to vector<32x32xbf16>
    %c495_i32_98 = arith.constant 495 : i32
    %169 = tpu.dynamic_rotate %118 by %c495_i32_98 dim 1 : vector<32x512xf32>, i32 -> vector<32x512xf32>
    %170 = arith.truncf %169 : vector<32x512xf32> to vector<32x512xbf16>
    %cst_99 = arith.constant dense<0.000000e+00> : vector<32x512xf32>
    %171 = tpu.matmul %168, %170, %cst_99 {dimension_numbers = #tpu.dot_dimension_numbers<[1], [0], [0], [1], [0, 0, 1, 1], [], []>} : vector<32x32xbf16>, vector<32x512xbf16>, vector<32x512xf32> -> vector<32x512xf32>
    %172 = arith.addf %166, %171 : vector<32x512xf32>
    %173 = vector.broadcast %14 : vector<1x512xf32> to vector<32x512xf32>
    %174 = arith.mulf %172, %173 : vector<32x512xf32>
    %cst_100 = arith.constant dense<0.000000e+00> : vector<32xf32>
    %175 = vector.multi_reduction <add>, %174, %cst_100 [1] : vector<32x512xf32> to vector<32xf32>
    %176 = vector.shape_cast %175 : vector<32xf32> to vector<32x1xf32>
    %cst_101 = arith.constant 0.00255102036 : f32
    %177 = vector.broadcast %cst_101 : f32 to vector<32x1xf32>
    %178 = arith.mulf %176, %177 : vector<32x1xf32>
    %179 = vector.broadcast %178 : vector<32x1xf32> to vector<32x512xf32>
    %180 = arith.subf %172, %179 : vector<32x512xf32>
    %181 = vector.broadcast %14 : vector<1x512xf32> to vector<32x512xf32>
    %182 = arith.mulf %180, %181 : vector<32x512xf32>
    %183 = arith.mulf %182, %182 : vector<32x512xf32>
    %cst_102 = arith.constant dense<0.000000e+00> : vector<32xf32>
    %184 = vector.multi_reduction <add>, %183, %cst_102 [1] : vector<32x512xf32> to vector<32xf32>
    %185 = vector.shape_cast %184 : vector<32xf32> to vector<32x1xf32>
    %cst_103 = arith.constant 0.00255102036 : f32
    %186 = vector.broadcast %cst_103 : f32 to vector<32x1xf32>
    %187 = arith.mulf %185, %186 : vector<32x1xf32>
    %c0_104 = arith.constant 0 : index
    %c0_105 = arith.constant 0 : index
    %188 = vector.load %arg6[%c0_104, %c0_105] : memref<32x1xf32, #tpu.memory_space<vmem>>, vector<32x1xf32>
    %cst_106 = arith.constant 9.99999974E-6 : f32
    %189 = vector.broadcast %cst_106 : f32 to vector<32x1xf32>
    %190 = arith.addf %187, %189 : vector<32x1xf32>
    %191 = math.rsqrt %190 : vector<32x1xf32>
    %192 = arith.mulf %188, %191 : vector<32x1xf32>
    %c0_107 = arith.constant 0 : index
    %c0_108 = arith.constant 0 : index
    %193 = vector.load %arg7[%c0_107, %c0_108] : memref<32x1xf32, #tpu.memory_space<vmem>>, vector<32x1xf32>
    %194 = arith.mulf %178, %192 : vector<32x1xf32>
    %195 = arith.subf %193, %194 : vector<32x1xf32>
    %196 = vector.broadcast %192 : vector<32x1xf32> to vector<32x512xf32>
    %197 = arith.mulf %172, %196 : vector<32x512xf32>
    %198 = vector.broadcast %195 : vector<32x1xf32> to vector<32x512xf32>
    %199 = arith.addf %197, %198 : vector<32x512xf32>
    %cst_109 = arith.constant 0.000000e+00 : f32
    %200 = vector.broadcast %cst_109 : f32 to vector<32x512xf32>
    %201 = arith.maximumf %199, %200 : vector<32x512xf32>
    %c511_i32_110 = arith.constant 511 : i32
    %202 = tpu.dynamic_rotate %201 by %c511_i32_110 dim 1 : vector<32x512xf32>, i32 -> vector<32x512xf32>
    %203 = arith.subf %202, %201 : vector<32x512xf32>
    %204 = vector.broadcast %2 : vector<1x512xf32> to vector<32x512xf32>
    %205 = arith.mulf %204, %203 : vector<32x512xf32>
    %206 = arith.addf %201, %205 : vector<32x512xf32>
    %c1_i32_111 = arith.constant 1 : i32
    %207 = tpu.dynamic_rotate %201 by %c1_i32_111 dim 1 : vector<32x512xf32>, i32 -> vector<32x512xf32>
    %208 = arith.subf %207, %201 : vector<32x512xf32>
    %209 = vector.broadcast %3 : vector<1x512xf32> to vector<32x512xf32>
    %210 = arith.mulf %209, %208 : vector<32x512xf32>
    %211 = arith.addf %206, %210 : vector<32x512xf32>
    %c496_i32_112 = arith.constant 496 : i32
    %212 = tpu.dynamic_rotate %211 by %c496_i32_112 dim 1 : vector<32x512xf32>, i32 -> vector<32x512xf32>
    %213 = arith.subf %212, %211 : vector<32x512xf32>
    %214 = vector.broadcast %0 : vector<1x512xf32> to vector<32x512xf32>
    %215 = arith.mulf %214, %213 : vector<32x512xf32>
    %216 = arith.addf %211, %215 : vector<32x512xf32>
    %c16_i32_113 = arith.constant 16 : i32
    %217 = tpu.dynamic_rotate %211 by %c16_i32_113 dim 1 : vector<32x512xf32>, i32 -> vector<32x512xf32>
    %218 = arith.subf %217, %211 : vector<32x512xf32>
    %219 = vector.broadcast %1 : vector<1x512xf32> to vector<32x512xf32>
    %220 = arith.mulf %219, %218 : vector<32x512xf32>
    %221 = arith.addf %216, %220 : vector<32x512xf32>
    %c0_114 = arith.constant 0 : index
    %c0_115 = arith.constant 0 : index
    %222 = vector.load %arg8[%c0_114, %c0_115] : memref<64x32xbf16, #tpu.memory_space<vmem>>, vector<64x32xbf16>
    %223 = arith.truncf %221 : vector<32x512xf32> to vector<32x512xbf16>
    %cst_116 = arith.constant dense<0.000000e+00> : vector<64x512xf32>
    %224 = tpu.matmul %222, %223, %cst_116 {dimension_numbers = #tpu.dot_dimension_numbers<[1], [0], [0], [1], [0, 0, 1, 1], [], []>} : vector<64x32xbf16>, vector<32x512xbf16>, vector<64x512xf32> -> vector<64x512xf32>
    %c0_117 = arith.constant 0 : index
    %c0_118 = arith.constant 0 : index
    %225 = vector.load %arg9[%c0_117, %c0_118] : memref<64x1xf32, #tpu.memory_space<vmem>>, vector<64x1xf32>
    %226 = vector.broadcast %225 : vector<64x1xf32> to vector<64x512xf32>
    %227 = arith.addf %224, %226 : vector<64x512xf32>
    %c0_119 = arith.constant 0 : index
    %c0_120 = arith.constant 0 : index
    %228 = vector.load %arg14[%c0_119, %c0_120] : memref<64x512xf32, #tpu.memory_space<vmem>>, vector<64x512xf32>
    tpu.vector_store %arg14[%c0_119, %c0_120], %227 {strides = array<i32>} : memref<64x512xf32, #tpu.memory_space<vmem>>, vector<64x512xf32>,
    return
  }
  func.func @transform_0(%arg0: i32) -> (i32, i32) {
    %c0_i32 = arith.constant 0 : i32
    %c0_i32_0 = arith.constant 0 : i32
    %c0_i32_1 = arith.constant 0 : i32
    return %c0_i32, %c0_i32_0 : i32, i32
  }
  func.func @transform_1(%arg0: i32) -> (i32, i32, i32) {
    %c0_i32 = arith.constant 0 : i32
    %c0_i32_0 = arith.constant 0 : i32
    %c0_i32_1 = arith.constant 0 : i32
    %c0_i32_2 = arith.constant 0 : i32
    return %c0_i32, %c0_i32_0, %c0_i32_1 : i32, i32, i32
  }
  func.func @transform_2(%arg0: i32) -> (i32, i32) {
    %c0_i32 = arith.constant 0 : i32
    %c0_i32_0 = arith.constant 0 : i32
    %c0_i32_1 = arith.constant 0 : i32
    return %c0_i32, %c0_i32_0 : i32, i32
  }
  func.func @transform_3(%arg0: i32) -> (i32, i32) {
    %c0_i32 = arith.constant 0 : i32
    %c0_i32_0 = arith.constant 0 : i32
    %c0_i32_1 = arith.constant 0 : i32
    return %c0_i32, %c0_i32_0 : i32, i32
  }
  func.func @transform_4(%arg0: i32) -> (i32, i32, i32) {
    %c0_i32 = arith.constant 0 : i32
    %c0_i32_0 = arith.constant 0 : i32
    %c0_i32_1 = arith.constant 0 : i32
    %c0_i32_2 = arith.constant 0 : i32
    return %c0_i32, %c0_i32_0, %c0_i32_1 : i32, i32, i32
  }
  func.func @transform_5(%arg0: i32) -> (i32, i32) {
    %c0_i32 = arith.constant 0 : i32
    %c0_i32_0 = arith.constant 0 : i32
    %c0_i32_1 = arith.constant 0 : i32
    return %c0_i32, %c0_i32_0 : i32, i32
  }
  func.func @transform_6(%arg0: i32) -> (i32, i32) {
    %c0_i32 = arith.constant 0 : i32
    %c0_i32_0 = arith.constant 0 : i32
    %c0_i32_1 = arith.constant 0 : i32
    return %c0_i32, %c0_i32_0 : i32, i32
  }
  func.func @transform_7(%arg0: i32) -> (i32, i32) {
    %c0_i32 = arith.constant 0 : i32
    %c0_i32_0 = arith.constant 0 : i32
    %c0_i32_1 = arith.constant 0 : i32
    return %c0_i32, %c0_i32_0 : i32, i32
  }
  func.func @transform_8(%arg0: i32) -> (i32, i32) {
    %c0_i32 = arith.constant 0 : i32
    %c0_i32_0 = arith.constant 0 : i32
    %c0_i32_1 = arith.constant 0 : i32
    return %c0_i32, %c0_i32_0 : i32, i32
  }
  func.func @transform_9(%arg0: i32) -> (i32, i32) {
    %c0_i32 = arith.constant 0 : i32
    %c0_i32_0 = arith.constant 0 : i32
    %c0_i32_1 = arith.constant 0 : i32
    return %c0_i32, %c0_i32_0 : i32, i32
  }
  func.func @transform_10(%arg0: i32) -> (i32, i32) {
    %c0_i32 = arith.constant 0 : i32
    %c0_i32_0 = arith.constant 0 : i32
    %c0_i32_1 = arith.constant 0 : i32
    return %c0_i32, %c0_i32_0 : i32, i32
  }
  func.func @transform_11(%arg0: i32) -> (i32, i32) {
    %c0_i32 = arith.constant 0 : i32
    %c0_i32_0 = arith.constant 0 : i32
    %c0_i32_1 = arith.constant 0 : i32
    return %c0_i32, %c0_i32_0 : i32, i32
  }
  func.func @transform_12(%arg0: i32) -> (i32, i32) {
    %c0_i32 = arith.constant 0 : i32
    %c0_i32_0 = arith.constant 0 : i32
    %c0_i32_1 = arith.constant 0 : i32
    return %c0_i32, %c0_i32_0 : i32, i32
  }
  func.func @transform_13(%arg0: i32) -> (i32, i32) {
    %c0_i32 = arith.constant 0 : i32
    %c0_i32_0 = arith.constant 0 : i32
    %c0_i32_1 = arith.constant 0 : i32
    return %c0_i32, %c0_i32_0 : i32, i32
  }
}

</mosaic_0001>

<llo_original>
// kernel: unet_up_forward.1
$region0: #{unet_up_forward.1}
  #allocation0 [shape = 'u32[]', space=smem, size = 0x4, offset = 0x4, fixed_abs, tag = 'smem constant byte address 0x4 - core index']
  #allocation1 [shape = 'u32[144,128]{1,0:T(1,128)}', space=vmem, size = 0x12000, scoped, tag = 'internal scratch']
  %s0 = inlined_call_operand.vmem [shape: f32[16,512], index: 0, kind: input, shape index: {}]
  %s1 = inlined_call_operand.vmem [shape: bf16[9,32,16], index: 1, kind: input, shape index: {}]
  %s2 = inlined_call_operand.vmem [shape: f32[32,1], index: 2, kind: input, shape index: {}]
  %s3 = inlined_call_operand.vmem [shape: f32[32,1], index: 3, kind: input, shape index: {}]
  %s4 = inlined_call_operand.vmem [shape: bf16[9,32,32], index: 4, kind: input, shape index: {}]
  %s5 = inlined_call_operand.vmem [shape: f32[32,1], index: 5, kind: input, shape index: {}]
  %s6 = inlined_call_operand.vmem [shape: f32[32,1], index: 6, kind: input, shape index: {}]
  %s7 = inlined_call_operand.vmem [shape: bf16[64,32], index: 7, kind: input, shape index: {}]
  %s8 = inlined_call_operand.vmem [shape: f32[64,1], index: 8, kind: input, shape index: {}]
  %s9 = inlined_call_operand.vmem [shape: f32[1,512], index: 9, kind: input, shape index: {}]
  %s10 = inlined_call_operand.vmem [shape: f32[1,512], index: 10, kind: input, shape index: {}]
  %s11 = inlined_call_operand.vmem [shape: f32[1,512], index: 11, kind: input, shape index: {}]
  %s12 = inlined_call_operand.vmem [shape: f32[1,512], index: 12, kind: input, shape index: {}]
  %s13 = inlined_call_operand.vmem [shape: f32[64,512], index: 13, kind: output, shape index: {}]
  %s14 = sld [smem:[#allocation0]]
  $region62: #{unet_up_forward.1} parent=0
    _
  %s16 = ssub.s32 1, %s14
  %s17 = scalar_select 0, %s16, %s14
  // Predicated region
  $region2: #{unet_up_forward.1} parent=0 // pred_check
    _
  $region3: #{unet_up_forward.1} parent=0 // pred_check_branch
    %19 = sbr.rel (0) target = $region5
  $region4: #{unet_up_forward.1} parent=0 // pred_region
    _
  $region5: #{unet_up_forward.1} parent=0 // pred_fallthru
    _
  // Predicated region
  $region6: #{unet_up_forward.1} parent=0 // pred_check
    _
  $region7: #{unet_up_forward.1} parent=0 // pred_check_branch
    %21 = sbr.rel (0) target = $region9
  $region8: #{unet_up_forward.1} parent=0 // pred_region
    _
  $region9: #{unet_up_forward.1} parent=0 // pred_fallthru
    _
  // Predicated region
  $region10: #{unet_up_forward.1} parent=0 // pred_check
    _
  $region11: #{unet_up_forward.1} parent=0 // pred_check_branch
    %23 = sbr.rel (0) target = $region13
  $region12: #{unet_up_forward.1} parent=0 // pred_region
    _
  $region13: #{unet_up_forward.1} parent=0 // pred_fallthru
    _
  // Predicated region
  $region14: #{unet_up_forward.1} parent=0 // pred_check
    _
  $region15: #{unet_up_forward.1} parent=0 // pred_check_branch
    %25 = sbr.rel (0) target = $region17
  $region16: #{unet_up_forward.1} parent=0 // pred_region
    _
  $region17: #{unet_up_forward.1} parent=0 // pred_fallthru
    _
  // Predicated region
  $region18: #{unet_up_forward.1} parent=0 // pred_check
    _
  $region19: #{unet_up_forward.1} parent=0 // pred_check_branch
    %27 = sbr.rel (0) target = $region21
  $region20: #{unet_up_forward.1} parent=0 // pred_region
    _
  $region21: #{unet_up_forward.1} parent=0 // pred_fallthru
    _
  // Predicated region
  $region22: #{unet_up_forward.1} parent=0 // pred_check
    _
  $region23: #{unet_up_forward.1} parent=0 // pred_check_branch
    %29 = sbr.rel (0) target = $region25
  $region24: #{unet_up_forward.1} parent=0 // pred_region
    _
  $region25: #{unet_up_forward.1} parent=0 // pred_fallthru
    _
  // Predicated region
  $region26: #{unet_up_forward.1} parent=0 // pred_check
    _
  $region27: #{unet_up_forward.1} parent=0 // pred_check_branch
    %31 = sbr.rel (0) target = $region29
  $region28: #{unet_up_forward.1} parent=0 // pred_region
    _
  $region29: #{unet_up_forward.1} parent=0 // pred_fallthru
    _
  // Predicated region
  $region30: #{unet_up_forward.1} parent=0 // pred_check
    _
  $region31: #{unet_up_forward.1} parent=0 // pred_check_branch
    %33 = sbr.rel (0) target = $region33
  $region32: #{unet_up_forward.1} parent=0 // pred_region
    _
  $region33: #{unet_up_forward.1} parent=0 // pred_fallthru
    _
  // Predicated region
  $region34: #{unet_up_forward.1} parent=0 // pred_check
    _
  $region35: #{unet_up_forward.1} parent=0 // pred_check_branch
    %35 = sbr.rel (0) target = $region37
  $region36: #{unet_up_forward.1} parent=0 // pred_region
    _
  $region37: #{unet_up_forward.1} parent=0 // pred_fallthru
    _
  // Predicated region
  $region38: #{unet_up_forward.1} parent=0 // pred_check
    _
  $region39: #{unet_up_forward.1} parent=0 // pred_check_branch
    %37 = sbr.rel (0) target = $region41
  $region40: #{unet_up_forward.1} parent=0 // pred_region
    _
  $region41: #{unet_up_forward.1} parent=0 // pred_fallthru
    _
  // Predicated region
  $region42: #{unet_up_forward.1} parent=0 // pred_check
    _
  $region43: #{unet_up_forward.1} parent=0 // pred_check_branch
    %39 = sbr.rel (0) target = $region45
  $region44: #{unet_up_forward.1} parent=0 // pred_region
    _
  $region45: #{unet_up_forward.1} parent=0 // pred_fallthru
    _
  // Predicated region
  $region46: #{unet_up_forward.1} parent=0 // pred_check
    _
  $region47: #{unet_up_forward.1} parent=0 // pred_check_branch
    %41 = sbr.rel (0) target = $region49
  $region48: #{unet_up_forward.1} parent=0 // pred_region
    _
  $region49: #{unet_up_forward.1} parent=0 // pred_fallthru
    _
  // Predicated region
  $region50: #{unet_up_forward.1} parent=0 // pred_check
    _
  $region51: #{unet_up_forward.1} parent=0 // pred_check_branch
    %43 = sbr.rel (0) target = $region53
  $region52: #{unet_up_forward.1} parent=0 // pred_region
    _
  $region53: #{unet_up_forward.1} parent=0 // pred_fallthru
    _
  %v45 = vld [vmem:[%s9] sm:$0xf]
  %v46 = vld [vmem:[%s10] sm:$0xf]
  %v47 = vld [vmem:[%s11] sm:$0xf]
  %v48 = vld [vmem:[%s12] sm:$0xf]
  %v49 = vsub.f32 1.0, %v45
  %v50 = vsub.f32 1.0, %v46
  %v51 = vmul.f32 %v49, %v50
  %v52 = vsub.f32 1.0, %v47
  %v53 = vmul.f32 %v51, %v52
  %v54 = vsub.f32 1.0, %v48
  %v55 = vmul.f32 %v53, %v54
  %v56 = vld [vmem:[%s0] sm:$0xff]
  %v57 = vld [vmem:[%s0 + $0x8] sm:$0xff]
  %v58 = vld [vmem:[%s0 + $0x10] sm:$0xff]
  %v59 = vld [vmem:[%s0 + $0x18] sm:$0xff]
  %v60 = vld [vmem:[%s0 + $0x20] sm:$0xff]
  %v61 = vld [vmem:[%s0 + $0x28] sm:$0xff]
  %v62 = vld [vmem:[%s0 + $0x30] sm:$0xff]
  %v63 = vld [vmem:[%s0 + $0x38] sm:$0xff]
  %v64 = vld [vmem:[%s1] sm:$0xf]
  %v65 = vld [vmem:[%s1 + $0x4] sm:$0xf]
  %v66 = vld [vmem:[%s1 + $0x8] sm:$0xf]
  %v67 = vld [vmem:[%s1 + $0xc] sm:$0xf]
  %68 = vrot.lane.b32.xlu0 %v56, 17
  %v69 = vpop.permute.xlu0 %68
  %70 = vrot.lane.b32.xlu0 %v60, 17
  %v71 = vpop.permute.xlu0 %70
  %72 = vrot.lane.b32.xlu0 %v57, 17
  %v73 = vpop.permute.xlu0 %72
  %74 = vrot.lane.b32.xlu0 %v61, 17
  %v75 = vpop.permute.xlu0 %74
  %76 = vrot.lane.b32.xlu0 %v58, 17
  %v77 = vpop.permute.xlu0 %76
  %78 = vrot.lane.b32.xlu0 %v62, 17
  %v79 = vpop.permute.xlu0 %78
  %80 = vrot.lane.b32.xlu0 %v59, 17
  %v81 = vpop.permute.xlu0 %80
  %82 = vrot.lane.b32.xlu0 %v63, 17
  %v83 = vpop.permute.xlu0 %82
  %v84 = vlaneseq
  %v85 = vand.u32 %v84, 127
  %vm86 = vcmp.lt.s32.totalorder %v85, 17
  %v87 = vsel %vm86, %v77, %v81
  %v88 = vsel %vm86, %v79, %v83
  %v89 = vsel %vm86, %v73, %v77
  %v90 = vsel %vm86, %v75, %v79
  %v91 = vsel %vm86, %v69, %v73
  %v92 = vsel %vm86, %v71, %v75
  %v93 = vsel %vm86, %v81, %v69
  %v94 = vsel %vm86, %v83, %v71
  %v95 = vpack.c.bf16 %v94, %v93
  %v96 = vpack.c.bf16 %v92, %v91
  %v97 = vpack.c.bf16 %v90, %v89
  %v98 = vpack.c.bf16 %v88, %v87
  %s99 = scalar_lea.vmem %s1, 16
  %v100 = vld [vmem:[%s99] sm:$0xf]
  %v101 = vld [vmem:[%s99 + $0x4] sm:$0xf]
  %v102 = vld [vmem:[%s99 + $0x8] sm:$0xf]
  %v103 = vld [vmem:[%s99 + $0xc] sm:$0xf]
  %104 = vrot.lane.b32.xlu0 %v56, 16
  %v105 = vpop.permute.xlu0 %104
  %106 = vrot.lane.b32.xlu0 %v60, 16
  %v107 = vpop.permute.xlu0 %106
  %108 = vrot.lane.b32.xlu0 %v57, 16
  %v109 = vpop.permute.xlu0 %108
  %110 = vrot.lane.b32.xlu0 %v61, 16
  %v111 = vpop.permute.xlu0 %110
  %112 = vrot.lane.b32.xlu0 %v58, 16
  %v113 = vpop.permute.xlu0 %112
  %114 = vrot.lane.b32.xlu0 %v62, 16
  %v115 = vpop.permute.xlu0 %114
  %116 = vrot.lane.b32.xlu0 %v59, 16
  %v117 = vpop.permute.xlu0 %116
  %118 = vrot.lane.b32.xlu0 %v63, 16
  %v119 = vpop.permute.xlu0 %118
  %vm120 = vcmp.lt.s32.totalorder %v85, 16
  %v121 = vsel %vm120, %v113, %v117
  %v122 = vsel %vm120, %v115, %v119
  %v123 = vsel %vm120, %v109, %v113
  %v124 = vsel %vm120, %v111, %v115
  %v125 = vsel %vm120, %v105, %v109
  %v126 = vsel %vm120, %v107, %v111
  %v127 = vsel %vm120, %v117, %v105
  %v128 = vsel %vm120, %v119, %v107
  %v129 = vpack.c.bf16 %v128, %v127
  %v130 = vpack.c.bf16 %v126, %v125
  %v131 = vpack.c.bf16 %v124, %v123
  %v132 = vpack.c.bf16 %v122, %v121
  %v137 = vunpack.c.l.b16 %v100
  %v138 = vunpack.c.l.b16 %v101
  %v139 = vunpack.c.l.b16 %v102
  %v140 = vunpack.c.l.b16 %v103
  %v141 = vpack.c.b16 %v138, %v137
  %v142 = vpack.c.b16 %v140, %v139
  %vm143 = vcmask 130048
  %v145 = vsel %vm143, %v141, 0
  %v148 = vsel %vm143, %v142, 0
  %150 = vmatprep.subr.bf16.mxu0 %v130
  %151 = vmatpush1.bf16.msra.mxu0 %v129
  %152 = vmatprep.subr.bf16.mxu0 0
  %153 = vmatpush1.bf16.msra.mxu0 0
  %154 = vmatprep.subr.bf16.mxu0 0
  %155 = vmatpush1.bf16.msra.mxu0 0
  %156 = vmatprep.subr.bf16.mxu0 0
  %157 = vmatpush1.bf16.msra.mxu0 0
  %158 = vmatprep.subr.bf16.mxu0 0
  %159 = vmatpush1.bf16.msra.mxu0 0
  %160 = vmatprep.subr.bf16.mxu0 0
  %161 = vmatpush1.bf16.msra.mxu0 0
  %162 = vmatprep.subr.bf16.mxu0 0
  %163 = vmatpush1.bf16.msra.mxu0 0
  %164 = vmatprep.subr.bf16.mxu0 0
  %165 = vmatpush1.bf16.msra.mxu0 0
  %166 = vmatprep.subr.bf16.mxu0 0
  %167 = vmatpush1.bf16.msra.mxu0 0
  %168 = vmatprep.subr.bf16.mxu0 0
  %169 = vmatpush1.bf16.msra.mxu0 0
  %170 = vmatprep.subr.bf16.mxu0 0
  %171 = vmatpush1.bf16.msra.mxu0 0
  %172 = vmatprep.subr.bf16.mxu0 0
  %173 = vmatpush1.bf16.msra.mxu0 0
  %174 = vmatprep.subr.bf16.mxu0 0
  %175 = vmatpush1.bf16.msra.mxu0 0
  %176 = vmatprep.subr.bf16.mxu0 0
  %177 = vmatpush1.bf16.msra.mxu0 0
  %178 = vmatprep.subr.bf16.mxu0 0
  %179 = vmatpush1.bf16.msra.mxu0 0
  %180 = vmatprep.subr.bf16.mxu0 0
  %181 = vmatpush1.bf16.msra.mxu0 0
  %182 = vmatprep.mubr.bf16.mxu0 0
  %183 = vmatmul.mubr.bf16.gmra.mrb[0].mxu0 %v145
  %v184 = vpop.f32.mrb[0].mxu0
  %v185 = vadd.f32 0.0, %v184
  %v186 = vpop.f32.mrb[0].mxu0
  %v187 = vadd.f32 0.0, %v186
  %v188 = vpop.f32.mrb[0].mxu0
  %v189 = vadd.f32 0.0, %v188
  %v190 = vpop.f32.mrb[0].mxu0
  %v191 = vadd.f32 0.0, %v190
  %192 = vmatprep.mubr.bf16.mxu0 0
  %193 = vmatmul.mubr.bf16.gmra.mrb[0].mxu0 %v148
  %v194 = vpop.f32.mrb[0].mxu0
  %v195 = vadd.f32 0.0, %v194
  %v196 = vpop.f32.mrb[0].mxu0
  %v197 = vadd.f32 0.0, %v196
  %v198 = vpop.f32.mrb[0].mxu0
  %v199 = vadd.f32 0.0, %v198
  %v200 = vpop.f32.mrb[0].mxu0
  %v201 = vadd.f32 0.0, %v200
  %202 = vdwg.mxu0
  %203 = vmatprep.subr.bf16.mxu0 %v132
  %204 = vmatpush1.bf16.msra.mxu0 %v131
  %205 = vmatprep.subr.bf16.mxu0 0
  %206 = vmatpush1.bf16.msra.mxu0 0
  %207 = vmatprep.subr.bf16.mxu0 0
  %208 = vmatpush1.bf16.msra.mxu0 0
  %209 = vmatprep.subr.bf16.mxu0 0
  %210 = vmatpush1.bf16.msra.mxu0 0
  %211 = vmatprep.subr.bf16.mxu0 0
  %212 = vmatpush1.bf16.msra.mxu0 0
  %213 = vmatprep.subr.bf16.mxu0 0
  %214 = vmatpush1.bf16.msra.mxu0 0
  %215 = vmatprep.subr.bf16.mxu0 0
  %216 = vmatpush1.bf16.msra.mxu0 0
  %217 = vmatprep.subr.bf16.mxu0 0
  %218 = vmatpush1.bf16.msra.mxu0 0
  %219 = vmatprep.subr.bf16.mxu0 0
  %220 = vmatpush1.bf16.msra.mxu0 0
  %221 = vmatprep.subr.bf16.mxu0 0
  %222 = vmatpush1.bf16.msra.mxu0 0
  %223 = vmatprep.subr.bf16.mxu0 0
  %224 = vmatpush1.bf16.msra.mxu0 0
  %225 = vmatprep.subr.bf16.mxu0 0
  %226 = vmatpush1.bf16.msra.mxu0 0
  %227 = vmatprep.subr.bf16.mxu0 0
  %228 = vmatpush1.bf16.msra.mxu0 0
  %229 = vmatprep.subr.bf16.mxu0 0
  %230 = vmatpush1.bf16.msra.mxu0 0
  %231 = vmatprep.subr.bf16.mxu0 0
  %232 = vmatpush1.bf16.msra.mxu0 0
  %233 = vmatprep.subr.bf16.mxu0 0
  %234 = vmatpush1.bf16.msra.mxu0 0
  %235 = vmatprep.mubr.bf16.mxu0 0
  %236 = vmatmul.mubr.bf16.gmra.mrb[0].mxu0 %v145
  %v237 = vpop.f32.mrb[0].mxu0
  %v238 = vadd.f32 0.0, %v237
  %v239 = vpop.f32.mrb[0].mxu0
  %v240 = vadd.f32 0.0, %v239
  %v241 = vpop.f32.mrb[0].mxu0
  %v242 = vadd.f32 0.0, %v241
  %v243 = vpop.f32.mrb[0].mxu0
  %v244 = vadd.f32 0.0, %v243
  %245 = vmatprep.mubr.bf16.mxu0 0
  %246 = vmatmul.mubr.bf16.gmra.mrb[0].mxu0 %v148
  %v247 = vpop.f32.mrb[0].mxu0
  %v248 = vadd.f32 0.0, %v247
  %v249 = vpop.f32.mrb[0].mxu0
  %v250 = vadd.f32 0.0, %v249
  %v251 = vpop.f32.mrb[0].mxu0
  %v252 = vadd.f32 0.0, %v251
  %v253 = vpop.f32.mrb[0].mxu0
  %v254 = vadd.f32 0.0, %v253
  %255 = vdwg.mxu0
  %v260 = vunpack.c.l.b16 %v64
  %v261 = vunpack.c.l.b16 %v65
  %v262 = vunpack.c.l.b16 %v66
  %v263 = vunpack.c.l.b16 %v67
  %v264 = vpack.c.b16 %v261, %v260
  %v265 = vpack.c.b16 %v263, %v262
  %v267 = vsel %vm143, %v264, 0
  %v270 = vsel %vm143, %v265, 0
  %272 = vmatprep.subr.bf16.mxu0 %v96
  %273 = vmatpush1.bf16.msra.mxu0 %v95
  %274 = vmatprep.subr.bf16.mxu0 0
  %275 = vmatpush1.bf16.msra.mxu0 0
  %276 = vmatprep.subr.bf16.mxu0 0
  %277 = vmatpush1.bf16.msra.mxu0 0
  %278 = vmatprep.subr.bf16.mxu0 0
  %279 = vmatpush1.bf16.msra.mxu0 0
  %280 = vmatprep.subr.bf16.mxu0 0
  %281 = vmatpush1.bf16.msra.mxu0 0
  %282 = vmatprep.subr.bf16.mxu0 0
  %283 = vmatpush1.bf16.msra.mxu0 0
  %284 = vmatprep.subr.bf16.mxu0 0
  %285 = vmatpush1.bf16.msra.mxu0 0
  %286 = vmatprep.subr.bf16.mxu0 0
  %287 = vmatpush1.bf16.msra.mxu0 0
  %288 = vmatprep.subr.bf16.mxu0 0
  %289 = vmatpush1.bf16.msra.mxu0 0
  %290 = vmatprep.subr.bf16.mxu0 0
  %291 = vmatpush1.bf16.msra.mxu0 0
  %292 = vmatprep.subr.bf16.mxu0 0
  %293 = vmatpush1.bf16.msra.mxu0 0
  %294 = vmatprep.subr.bf16.mxu0 0
  %295 = vmatpush1.bf16.msra.mxu0 0
  %296 = vmatprep.subr.bf16.mxu0 0
  %297 = vmatpush1.bf16.msra.mxu0 0
  %298 = vmatprep.subr.bf16.mxu0 0
  %299 = vmatpush1.bf16.msra.mxu0 0
  %300 = vmatprep.subr.bf16.mxu0 0
  %301 = vmatpush1.bf16.msra.mxu0 0
  %302 = vmatprep.subr.bf16.mxu0 0
  %303 = vmatpush1.bf16.msra.mxu0 0
  %304 = vmatprep.mubr.bf16.mxu0 0
  %305 = vmatmul.mubr.bf16.gmra.mrb[0].mxu0 %v267
  %v306 = vpop.f32.mrb[0].mxu0
  %v307 = vadd.f32 %v185, %v306
  %v308 = vpop.f32.mrb[0].mxu0
  %v309 = vadd.f32 %v187, %v308
  %v310 = vpop.f32.mrb[0].mxu0
  %v311 = vadd.f32 %v189, %v310
  %v312 = vpop.f32.mrb[0].mxu0
  %v313 = vadd.f32 %v191, %v312
  %314 = vmatprep.mubr.bf16.mxu0 0
  %315 = vmatmul.mubr.bf16.gmra.mrb[0].mxu0 %v270
  %v316 = vpop.f32.mrb[0].mxu0
  %v317 = vadd.f32 %v195, %v316
  %v318 = vpop.f32.mrb[0].mxu0
  %v319 = vadd.f32 %v197, %v318
  %v320 = vpop.f32.mrb[0].mxu0
  %v321 = vadd.f32 %v199, %v320
  %v322 = vpop.f32.mrb[0].mxu0
  %v323 = vadd.f32 %v201, %v322
  %324 = vdwg.mxu0
  %325 = vmatprep.subr.bf16.mxu0 %v98
  %326 = vmatpush1.bf16.msra.mxu0 %v97
  %327 = vmatprep.subr.bf16.mxu0 0
  %328 = vmatpush1.bf16.msra.mxu0 0
  %329 = vmatprep.subr.bf16.mxu0 0
  %330 = vmatpush1.bf16.msra.mxu0 0
  %331 = vmatprep.subr.bf16.mxu0 0
  %332 = vmatpush1.bf16.msra.mxu0 0
  %333 = vmatprep.subr.bf16.mxu0 0
  %334 = vmatpush1.bf16.msra.mxu0 0
  %335 = vmatprep.subr.bf16.mxu0 0
  %336 = vmatpush1.bf16.msra.mxu0 0
  %337 = vmatprep.subr.bf16.mxu0 0
  %338 = vmatpush1.bf16.msra.mxu0 0
  %339 = vmatprep.subr.bf16.mxu0 0
  %340 = vmatpush1.bf16.msra.mxu0 0
  %341 = vmatprep.subr.bf16.mxu0 0
  %342 = vmatpush1.bf16.msra.mxu0 0
  %343 = vmatprep.subr.bf16.mxu0 0
  %344 = vmatpush1.bf16.msra.mxu0 0
  %345 = vmatprep.subr.bf16.mxu0 0
  %346 = vmatpush1.bf16.msra.mxu0 0
  %347 = vmatprep.subr.bf16.mxu0 0
  %348 = vmatpush1.bf16.msra.mxu0 0
  %349 = vmatprep.subr.bf16.mxu0 0
  %350 = vmatpush1.bf16.msra.mxu0 0
  %351 = vmatprep.subr.bf16.mxu0 0
  %352 = vmatpush1.bf16.msra.mxu0 0
  %353 = vmatprep.subr.bf16.mxu0 0
  %354 = vmatpush1.bf16.msra.mxu0 0
  %355 = vmatprep.subr.bf16.mxu0 0
  %356 = vmatpush1.bf16.msra.mxu0 0
  %357 = vmatprep.mubr.bf16.mxu0 0
  %358 = vmatmul.mubr.bf16.gmra.mrb[0].mxu0 %v267
  %v359 = vpop.f32.mrb[0].mxu0
  %v360 = vadd.f32 %v238, %v359
  %v361 = vpop.f32.mrb[0].mxu0
  %v362 = vadd.f32 %v240, %v361
  %v363 = vpop.f32.mrb[0].mxu0
  %v364 = vadd.f32 %v242, %v363
  %v365 = vpop.f32.mrb[0].mxu0
  %v366 = vadd.f32 %v244, %v365
  %367 = vmatprep.mubr.bf16.mxu0 0
  %368 = vmatmul.mubr.bf16.gmra.mrb[0].mxu0 %v270
  %v369 = vpop.f32.mrb[0].mxu0
  %v370 = vadd.f32 %v248, %v369
  %v371 = vpop.f32.mrb[0].mxu0
  %v372 = vadd.f32 %v250, %v371
  %v373 = vpop.f32.mrb[0].mxu0
  %v374 = vadd.f32 %v252, %v373
  %v375 = vpop.f32.mrb[0].mxu0
  %v376 = vadd.f32 %v254, %v375
  %377 = vdwg.mxu0
  %s378 = scalar_lea.vmem %s1, 32
  %v379 = vld [vmem:[%s378] sm:$0xf]
  %v380 = vld [vmem:[%s378 + $0x4] sm:$0xf]
  %v381 = vld [vmem:[%s378 + $0x8] sm:$0xf]
  %v382 = vld [vmem:[%s378 + $0xc] sm:$0xf]
  %383 = vrot.lane.b32.xlu0 %v56, 15
  %v384 = vpop.permute.xlu0 %383
  %385 = vrot.lane.b32.xlu0 %v60, 15
  %v386 = vpop.permute.xlu0 %385
  %387 = vrot.lane.b32.xlu0 %v57, 15
  %v388 = vpop.permute.xlu0 %387
  %389 = vrot.lane.b32.xlu0 %v61, 15
  %v390 = vpop.permute.xlu0 %389
  %391 = vrot.lane.b32.xlu0 %v58, 15
  %v392 = vpop.permute.xlu0 %391
  %393 = vrot.lane.b32.xlu0 %v62, 15
  %v394 = vpop.permute.xlu0 %393
  %395 = vrot.lane.b32.xlu0 %v59, 15
  %v396 = vpop.permute.xlu0 %395
  %397 = vrot.lane.b32.xlu0 %v63, 15
  %v398 = vpop.permute.xlu0 %397
  %vm399 = vcmp.lt.s32.totalorder %v85, 15
  %v400 = vsel %vm399, %v392, %v396
  %v401 = vsel %vm399, %v394, %v398
  %v402 = vsel %vm399, %v388, %v392
  %v403 = vsel %vm399, %v390, %v394
  %v404 = vsel %vm399, %v384, %v388
  %v405 = vsel %vm399, %v386, %v390
  %v406 = vsel %vm399, %v396, %v384
  %v407 = vsel %vm399, %v398, %v386
  %v408 = vpack.c.bf16 %v407, %v406
  %v409 = vpack.c.bf16 %v405, %v404
  %v410 = vpack.c.bf16 %v403, %v402
  %v411 = vpack.c.bf16 %v401, %v400
  %v416 = vunpack.c.l.b16 %v379
  %v417 = vunpack.c.l.b16 %v380
  %v418 = vunpack.c.l.b16 %v381
  %v419 = vunpack.c.l.b16 %v382
  %v420 = vpack.c.b16 %v417, %v416
  %v421 = vpack.c.b16 %v419, %v418
  %v423 = vsel %vm143, %v420, 0
  %v426 = vsel %vm143, %v421, 0
  %428 = vmatprep.subr.bf16.mxu0 %v409
  %429 = vmatpush1.bf16.msra.mxu0 %v408
  %430 = vmatprep.subr.bf16.mxu0 0
  %431 = vmatpush1.bf16.msra.mxu0 0
  %432 = vmatprep.subr.bf16.mxu0 0
  %433 = vmatpush1.bf16.msra.mxu0 0
  %434 = vmatprep.subr.bf16.mxu0 0
  %435 = vmatpush1.bf16.msra.mxu0 0
  %436 = vmatprep.subr.bf16.mxu0 0
  %437 = vmatpush1.bf16.msra.mxu0 0
  %438 = vmatprep.subr.bf16.mxu0 0
  %439 = vmatpush1.bf16.msra.mxu0 0
  %440 = vmatprep.subr.bf16.mxu0 0
  %441 = vmatpush1.bf16.msra.mxu0 0
  %442 = vmatprep.subr.bf16.mxu0 0
  %443 = vmatpush1.bf16.msra.mxu0 0
  %444 = vmatprep.subr.bf16.mxu0 0
  %445 = vmatpush1.bf16.msra.mxu0 0
  %446 = vmatprep.subr.bf16.mxu0 0
  %447 = vmatpush1.bf16.msra.mxu0 0
  %448 = vmatprep.subr.bf16.mxu0 0
  %449 = vmatpush1.bf16.msra.mxu0 0
  %450 = vmatprep.subr.bf16.mxu0 0
  %451 = vmatpush1.bf16.msra.mxu0 0
  %452 = vmatprep.subr.bf16.mxu0 0
  %453 = vmatpush1.bf16.msra.mxu0 0
  %454 = vmatprep.subr.bf16.mxu0 0
  %455 = vmatpush1.bf16.msra.mxu0 0
  %456 = vmatprep.subr.bf16.mxu0 0
  %457 = vmatpush1.bf16.msra.mxu0 0
  %458 = vmatprep.subr.bf16.mxu0 0
  %459 = vmatpush1.bf16.msra.mxu0 0
  %460 = vmatprep.mubr.bf16.mxu0 0
  %461 = vmatmul.mubr.bf16.gmra.mrb[0].mxu0 %v423
  %v462 = vpop.f32.mrb[0].mxu0
  %v463 = vadd.f32 0.0, %v462
  %v464 = vpop.f32.mrb[0].mxu0
  %v465 = vadd.f32 0.0, %v464
  %v466 = vpop.f32.mrb[0].mxu0
  %v467 = vadd.f32 0.0, %v466
  %v468 = vpop.f32.mrb[0].mxu0
  %v469 = vadd.f32 0.0, %v468
  %470 = vmatprep.mubr.bf16.mxu0 0
  %471 = vmatmul.mubr.bf16.gmra.mrb[0].mxu0 %v426
  %v472 = vpop.f32.mrb[0].mxu0
  %v473 = vadd.f32 0.0, %v472
  %v474 = vpop.f32.mrb[0].mxu0
  %v475 = vadd.f32 0.0, %v474
  %v476 = vpop.f32.mrb[0].mxu0
  %v477 = vadd.f32 0.0, %v476
  %v478 = vpop.f32.mrb[0].mxu0
  %v479 = vadd.f32 0.0, %v478
  %480 = vdwg.mxu0
  %481 = vmatprep.subr.bf16.mxu0 %v411
  %482 = vmatpush1.bf16.msra.mxu0 %v410
  %483 = vmatprep.subr.bf16.mxu0 0
  %484 = vmatpush1.bf16.msra.mxu0 0
  %485 = vmatprep.subr.bf16.mxu0 0
  %486 = vmatpush1.bf16.msra.mxu0 0
  %487 = vmatprep.subr.bf16.mxu0 0
  %488 = vmatpush1.bf16.msra.mxu0 0
  %489 = vmatprep.subr.bf16.mxu0 0
  %490 = vmatpush1.bf16.msra.mxu0 0
  %491 = vmatprep.subr.bf16.mxu0 0
  %492 = vmatpush1.bf16.msra.mxu0 0
  %493 = vmatprep.subr.bf16.mxu0 0
  %494 = vmatpush1.bf16.msra.mxu0 0
  %495 = vmatprep.subr.bf16.mxu0 0
  %496 = vmatpush1.bf16.msra.mxu0 0
  %497 = vmatprep.subr.bf16.mxu0 0
  %498 = vmatpush1.bf16.msra.mxu0 0
  %499 = vmatprep.subr.bf16.mxu0 0
  %500 = vmatpush1.bf16.msra.mxu0 0
  %501 = vmatprep.subr.bf16.mxu0 0
  %502 = vmatpush1.bf16.msra.mxu0 0
  %503 = vmatprep.subr.bf16.mxu0 0
  %504 = vmatpush1.bf16.msra.mxu0 0
  %505 = vmatprep.subr.bf16.mxu0 0
  %506 = vmatpush1.bf16.msra.mxu0 0
  %507 = vmatprep.subr.bf16.mxu0 0
  %508 = vmatpush1.bf16.msra.mxu0 0
  %509 = vmatprep.subr.bf16.mxu0 0
  %510 = vmatpush1.bf16.msra.mxu0 0
  %511 = vmatprep.subr.bf16.mxu0 0
  %512 = vmatpush1.bf16.msra.mxu0 0
  %513 = vmatprep.mubr.bf16.mxu0 0
  %514 = vmatmul.mubr.bf16.gmra.mrb[0].mxu0 %v423
  %v515 = vpop.f32.mrb[0].mxu0
  %v516 = vadd.f32 0.0, %v515
  %v517 = vpop.f32.mrb[0].mxu0
  %v518 = vadd.f32 0.0, %v517
  %v519 = vpop.f32.mrb[0].mxu0
  %v520 = vadd.f32 0.0, %v519
  %v521 = vpop.f32.mrb[0].mxu0
  %v522 = vadd.f32 0.0, %v521
  %523 = vmatprep.mubr.bf16.mxu0 0
  %524 = vmatmul.mubr.bf16.gmra.mrb[0].mxu0 %v426
  %v525 = vpop.f32.mrb[0].mxu0
  %v526 = vadd.f32 0.0, %v525
  %v527 = vpop.f32.mrb[0].mxu0
  %v528 = vadd.f32 0.0, %v527
  %v529 = vpop.f32.mrb[0].mxu0
  %v530 = vadd.f32 0.0, %v529
  %v531 = vpop.f32.mrb[0].mxu0
  %v532 = vadd.f32 0.0, %v531
  %533 = vdwg.mxu0
  %v534 = vadd.f32 %v307, %v463
  %v535 = vadd.f32 %v309, %v465
  %v536 = vadd.f32 %v360, %v516
  %v537 = vadd.f32 %v362, %v518
  %v538 = vadd.f32 %v311, %v467
  %v539 = vadd.f32 %v313, %v469
  %v540 = vadd.f32 %v364, %v520
  %v541 = vadd.f32 %v366, %v522
  %v542 = vadd.f32 %v317, %v473
  %v543 = vadd.f32 %v319, %v475
  %v544 = vadd.f32 %v370, %v526
  %v545 = vadd.f32 %v372, %v528
  %v546 = vadd.f32 %v321, %v477
  %v547 = vadd.f32 %v323, %v479
  %v548 = vadd.f32 %v374, %v530
  %v549 = vadd.f32 %v376, %v532
  %s550 = scalar_lea.vmem %s1, 48
  %v551 = vld [vmem:[%s550] sm:$0xf]
  %v552 = vld [vmem:[%s550 + $0x4] sm:$0xf]
  %v553 = vld [vmem:[%s550 + $0x8] sm:$0xf]
  %v554 = vld [vmem:[%s550 + $0xc] sm:$0xf]
  %555 = vrot.lane.b32.xlu0 %v56, 1
  %v556 = vpop.permute.xlu0 %555
  %557 = vrot.lane.b32.xlu0 %v60, 1
  %v558 = vpop.permute.xlu0 %557
  %559 = vrot.lane.b32.xlu0 %v57, 1
  %v560 = vpop.permute.xlu0 %559
  %561 = vrot.lane.b32.xlu0 %v61, 1
  %v562 = vpop.permute.xlu0 %561
  %563 = vrot.lane.b32.xlu0 %v58, 1
  %v564 = vpop.permute.xlu0 %563
  %565 = vrot.lane.b32.xlu0 %v62, 1
  %v566 = vpop.permute.xlu0 %565
  %567 = vrot.lane.b32.xlu0 %v59, 1
  %v568 = vpop.permute.xlu0 %567
  %569 = vrot.lane.b32.xlu0 %v63, 1
  %v570 = vpop.permute.xlu0 %569
  %vm571 = vcmp.lt.s32.totalorder %v85, 1
  %v572 = vsel %vm571, %v564, %v568
  %v573 = vsel %vm571, %v566, %v570
  %v574 = vsel %vm571, %v560, %v564
  %v575 = vsel %vm571, %v562, %v566
  %v576 = vsel %vm571, %v556, %v560
  %v577 = vsel %vm571, %v558, %v562
  %v578 = vsel %vm571, %v568, %v556
  %v579 = vsel %vm571, %v570, %v558
  %v580 = vpack.c.bf16 %v579, %v578
  %v581 = vpack.c.bf16 %v577, %v576
  %v582 = vpack.c.bf16 %v575, %v574
  %v583 = vpack.c.bf16 %v573, %v572
  %v588 = vunpack.c.l.b16 %v551
  %v589 = vunpack.c.l.b16 %v552
  %v590 = vunpack.c.l.b16 %v553
  %v591 = vunpack.c.l.b16 %v554
  %v592 = vpack.c.b16 %v589, %v588
  %v593 = vpack.c.b16 %v591, %v590
  %v595 = vsel %vm143, %v592, 0
  %v598 = vsel %vm143, %v593, 0
  %600 = vmatprep.subr.bf16.mxu0 %v581
  %601 = vmatpush1.bf16.msra.mxu0 %v580
  %602 = vmatprep.subr.bf16.mxu0 0
  %603 = vmatpush1.bf16.msra.mxu0 0
  %604 = vmatprep.subr.bf16.mxu0 0
  %605 = vmatpush1.bf16.msra.mxu0 0
  %606 = vmatprep.subr.bf16.mxu0 0
  %607 = vmatpush1.bf16.msra.mxu0 0
  %608 = vmatprep.subr.bf16.mxu0 0
  %609 = vmatpush1.bf16.msra.mxu0 0
  %610 = vmatprep.subr.bf16.mxu0 0
  %611 = vmatpush1.bf16.msra.mxu0 0
  %612 = vmatprep.subr.bf16.mxu0 0
  %613 = vmatpush1.bf16.msra.mxu0 0
  %614 = vmatprep.subr.bf16.mxu0 0
  %615 = vmatpush1.bf16.msra.mxu0 0
  %616 = vmatprep.subr.bf16.mxu0 0
  %617 = vmatpush1.bf16.msra.mxu0 0
  %618 = vmatprep.subr.bf16.mxu0 0
  %619 = vmatpush1.bf16.msra.mxu0 0
  %620 = vmatprep.subr.bf16.mxu0 0
  %621 = vmatpush1.bf16.msra.mxu0 0
  %622 = vmatprep.subr.bf16.mxu0 0
  %623 = vmatpush1.bf16.msra.mxu0 0
  %624 = vmatprep.subr.bf16.mxu0 0
  %625 = vmatpush1.bf16.msra.mxu0 0
  %626 = vmatprep.subr.bf16.mxu0 0
  %627 = vmatpush1.bf16.msra.mxu0 0
  %628 = vmatprep.subr.bf16.mxu0 0
  %629 = vmatpush1.bf16.msra.mxu0 0
  %630 = vmatprep.subr.bf16.mxu0 0
  %631 = vmatpush1.bf16.msra.mxu0 0
  %632 = vmatprep.mubr.bf16.mxu0 0
  %633 = vmatmul.mubr.bf16.gmra.mrb[0].mxu0 %v595
  %v634 = vpop.f32.mrb[0].mxu0
  %v635 = vadd.f32 0.0, %v634
  %v636 = vpop.f32.mrb[0].mxu0
  %v637 = vadd.f32 0.0, %v636
  %v638 = vpop.f32.mrb[0].mxu0
  %v639 = vadd.f32 0.0, %v638
  %v640 = vpop.f32.mrb[0].mxu0
  %v641 = vadd.f32 0.0, %v640
  %642 = vmatprep.mubr.bf16.mxu0 0
  %643 = vmatmul.mubr.bf16.gmra.mrb[0].mxu0 %v598
  %v644 = vpop.f32.mrb[0].mxu0
  %v645 = vadd.f32 0.0, %v644
  %v646 = vpop.f32.mrb[0].mxu0
  %v647 = vadd.f32 0.0, %v646
  %v648 = vpop.f32.mrb[0].mxu0
  %v649 = vadd.f32 0.0, %v648
  %v650 = vpop.f32.mrb[0].mxu0
  %v651 = vadd.f32 0.0, %v650
  %652 = vdwg.mxu0
  %653 = vmatprep.subr.bf16.mxu0 %v583
  %654 = vmatpush1.bf16.msra.mxu0 %v582
  %655 = vmatprep.subr.bf16.mxu0 0
  %656 = vmatpush1.bf16.msra.mxu0 0
  %657 = vmatprep.subr.bf16.mxu0 0
  %658 = vmatpush1.bf16.msra.mxu0 0
  %659 = vmatprep.subr.bf16.mxu0 0
  %660 = vmatpush1.bf16.msra.mxu0 0
  %661 = vmatprep.subr.bf16.mxu0 0
  %662 = vmatpush1.bf16.msra.mxu0 0
  %663 = vmatprep.subr.bf16.mxu0 0
  %664 = vmatpush1.bf16.msra.mxu0 0
  %665 = vmatprep.subr.bf16.mxu0 0
  %666 = vmatpush1.bf16.msra.mxu0 0
  %667 = vmatprep.subr.bf16.mxu0 0
  %668 = vmatpush1.bf16.msra.mxu0 0
  %669 = vmatprep.subr.bf16.mxu0 0
  %670 = vmatpush1.bf16.msra.mxu0 0
  %671 = vmatprep.subr.bf16.mxu0 0
  %672 = vmatpush1.bf16.msra.mxu0 0
  %673 = vmatprep.subr.bf16.mxu0 0
  %674 = vmatpush1.bf16.msra.mxu0 0
  %675 = vmatprep.subr.bf16.mxu0 0
  %676 = vmatpush1.bf16.msra.mxu0 0
  %677 = vmatprep.subr.bf16.mxu0 0
  %678 = vmatpush1.bf16.msra.mxu0 0
  %679 = vmatprep.subr.bf16.mxu0 0
  %680 = vmatpush1.bf16.msra.mxu0 0
  %681 = vmatprep.subr.bf16.mxu0 0
  %682 = vmatpush1.bf16.msra.mxu0 0
  %683 = vmatprep.subr.bf16.mxu0 0
  %684 = vmatpush1.bf16.msra.mxu0 0
  %685 = vmatprep.mubr.bf16.mxu0 0
  %686 = vmatmul.mubr.bf16.gmra.mrb[0].mxu0 %v595
  %v687 = vpop.f32.mrb[0].mxu0
  %v688 = vadd.f32 0.0, %v687
  %v689 = vpop.f32.mrb[0].mxu0
  %v690 = vadd.f32 0.0, %v689
  %v691 = vpop.f32.mrb[0].mxu0
  %v692 = vadd.f32 0.0, %v691
  %v693 = vpop.f32.mrb[0].mxu0
  %v694 = vadd.f32 0.0, %v693
  %695 = vmatprep.mubr.bf16.mxu0 0
  %696 = vmatmul.mubr.bf16.gmra.mrb[0].mxu0 %v598
  %v697 = vpop.f32.mrb[0].mxu0
  %v698 = vadd.f32 0.0, %v697
  %v699 = vpop.f32.mrb[0].mxu0
  %v700 = vadd.f32 0.0, %v699
  %v701 = vpop.f32.mrb[0].mxu0
  %v702 = vadd.f32 0.0, %v701
  %v703 = vpop.f32.mrb[0].mxu0
  %v704 = vadd.f32 0.0, %v703
  %705 = vdwg.mxu0
  %v706 = vadd.f32 %v534, %v635
  %v707 = vadd.f32 %v535, %v637
  %v708 = vadd.f32 %v536, %v688
  %v709 = vadd.f32 %v537, %v690
  %v710 = vadd.f32 %v538, %v639
  %v711 = vadd.f32 %v539, %v641
  %v712 = vadd.f32 %v540, %v692
  %v713 = vadd.f32 %v541, %v694
  %v714 = vadd.f32 %v542, %v645
  %v715 = vadd.f32 %v543, %v647
  %v716 = vadd.f32 %v544, %v698
  %v717 = vadd.f32 %v545, %v700
  %v718 = vadd.f32 %v546, %v649
  %v719 = vadd.f32 %v547, %v651
  %v720 = vadd.f32 %v548, %v702
  %v721 = vadd.f32 %v549, %v704
  %s722 = scalar_lea.vmem %s1, 64
  %v723 = vld [vmem:[%s722] sm:$0xf]
  %v724 = vld [vmem:[%s722 + $0x4] sm:$0xf]
  %v725 = vld [vmem:[%s722 + $0x8] sm:$0xf]
  %v726 = vld [vmem:[%s722 + $0xc] sm:$0xf]
  %v727 = vpack.c.bf16 %v60, %v56
  %v728 = vpack.c.bf16 %v61, %v57
  %v729 = vpack.c.bf16 %v62, %v58
  %v730 = vpack.c.bf16 %v63, %v59
  %v735 = vunpack.c.l.b16 %v723
  %v736 = vunpack.c.l.b16 %v724
  %v737 = vunpack.c.l.b16 %v725
  %v738 = vunpack.c.l.b16 %v726
  %v739 = vpack.c.b16 %v736, %v735
  %v740 = vpack.c.b16 %v738, %v737
  %v742 = vsel %vm143, %v739, 0
  %v745 = vsel %vm143, %v740, 0
  %747 = vmatprep.subr.bf16.mxu0 %v728
  %748 = vmatpush1.bf16.msra.mxu0 %v727
  %749 = vmatprep.subr.bf16.mxu0 0
  %750 = vmatpush1.bf16.msra.mxu0 0
  %751 = vmatprep.subr.bf16.mxu0 0
  %752 = vmatpush1.bf16.msra.mxu0 0
  %753 = vmatprep.subr.bf16.mxu0 0
  %754 = vmatpush1.bf16.msra.mxu0 0
  %755 = vmatprep.subr.bf16.mxu0 0
  %756 = vmatpush1.bf16.msra.mxu0 0
  %757 = vmatprep.subr.bf16.mxu0 0
  %758 = vmatpush1.bf16.msra.mxu0 0
  %759 = vmatprep.subr.bf16.mxu0 0
  %760 = vmatpush1.bf16.msra.mxu0 0
  %761 = vmatprep.subr.bf16.mxu0 0
  %762 = vmatpush1.bf16.msra.mxu0 0
  %763 = vmatprep.subr.bf16.mxu0 0
  %764 = vmatpush1.bf16.msra.mxu0 0
  %765 = vmatprep.subr.bf16.mxu0 0
  %766 = vmatpush1.bf16.msra.mxu0 0
  %767 = vmatprep.subr.bf16.mxu0 0
  %768 = vmatpush1.bf16.msra.mxu0 0
  %769 = vmatprep.subr.bf16.mxu0 0
  %770 = vmatpush1.bf16.msra.mxu0 0
  %771 = vmatprep.subr.bf16.mxu0 0
  %772 = vmatpush1.bf16.msra.mxu0 0
  %773 = vmatprep.subr.bf16.mxu0 0
  %774 = vmatpush1.bf16.msra.mxu0 0
  %775 = vmatprep.subr.bf16.mxu0 0
  %776 = vmatpush1.bf16.msra.mxu0 0
  %777 = vmatprep.subr.bf16.mxu0 0
  %778 = vmatpush1.bf16.msra.mxu0 0
  %779 = vmatprep.mubr.bf16.mxu0 0
  %780 = vmatmul.mubr.bf16.gmra.mrb[0].mxu0 %v742
  %v781 = vpop.f32.mrb[0].mxu0
  %v782 = vadd.f32 0.0, %v781
  %v783 = vpop.f32.mrb[0].mxu0
  %v784 = vadd.f32 0.0, %v783
  %v785 = vpop.f32.mrb[0].mxu0
  %v786 = vadd.f32 0.0, %v785
  %v787 = vpop.f32.mrb[0].mxu0
  %v788 = vadd.f32 0.0, %v787
  %789 = vmatprep.mubr.bf16.mxu0 0
  %790 = vmatmul.mubr.bf16.gmra.mrb[0].mxu0 %v745
  %v791 = vpop.f32.mrb[0].mxu0
  %v792 = vadd.f32 0.0, %v791
  %v793 = vpop.f32.mrb[0].mxu0
  %v794 = vadd.f32 0.0, %v793
  %v795 = vpop.f32.mrb[0].mxu0
  %v796 = vadd.f32 0.0, %v795
  %v797 = vpop.f32.mrb[0].mxu0
  %v798 = vadd.f32 0.0, %v797
  %799 = vdwg.mxu0
  %800 = vmatprep.subr.bf16.mxu0 %v730
  %801 = vmatpush1.bf16.msra.mxu0 %v729
  %802 = vmatprep.subr.bf16.mxu0 0
  %803 = vmatpush1.bf16.msra.mxu0 0
  %804 = vmatprep.subr.bf16.mxu0 0
  %805 = vmatpush1.bf16.msra.mxu0 0
  %806 = vmatprep.subr.bf16.mxu0 0
  %807 = vmatpush1.bf16.msra.mxu0 0
  %808 = vmatprep.subr.bf16.mxu0 0
  %809 = vmatpush1.bf16.msra.mxu0 0
  %810 = vmatprep.subr.bf16.mxu0 0
  %811 = vmatpush1.bf16.msra.mxu0 0
  %812 = vmatprep.subr.bf16.mxu0 0
  %813 = vmatpush1.bf16.msra.mxu0 0
  %814 = vmatprep.subr.bf16.mxu0 0
  %815 = vmatpush1.bf16.msra.mxu0 0
  %816 = vmatprep.subr.bf16.mxu0 0
  %817 = vmatpush1.bf16.msra.mxu0 0
  %818 = vmatprep.subr.bf16.mxu0 0
  %819 = vmatpush1.bf16.msra.mxu0 0
  %820 = vmatprep.subr.bf16.mxu0 0
  %821 = vmatpush1.bf16.msra.mxu0 0
  %822 = vmatprep.subr.bf16.mxu0 0
  %823 = vmatpush1.bf16.msra.mxu0 0
  %824 = vmatprep.subr.bf16.mxu0 0
  %825 = vmatpush1.bf16.msra.mxu0 0
  %826 = vmatprep.subr.bf16.mxu0 0
  %827 = vmatpush1.bf16.msra.mxu0 0
  %828 = vmatprep.subr.bf16.mxu0 0
  %829 = vmatpush1.bf16.msra.mxu0 0
  %830 = vmatprep.subr.bf16.mxu0 0
  %831 = vmatpush1.bf16.msra.mxu0 0
  %832 = vmatprep.mubr.bf16.mxu0 0
  %833 = vmatmul.mubr.bf16.gmra.mrb[0].mxu0 %v742
  %v834 = vpop.f32.mrb[0].mxu0
  %v835 = vadd.f32 0.0, %v834
  %v836 = vpop.f32.mrb[0].mxu0
  %v837 = vadd.f32 0.0, %v836
  %v838 = vpop.f32.mrb[0].mxu0
  %v839 = vadd.f32 0.0, %v838
  %v840 = vpop.f32.mrb[0].mxu0
  %v841 = vadd.f32 0.0, %v840
  %842 = vmatprep.mubr.bf16.mxu0 0
  %843 = vmatmul.mubr.bf16.gmra.mrb[0].mxu0 %v745
  %v844 = vpop.f32.mrb[0].mxu0
  %v845 = vadd.f32 0.0, %v844
  %v846 = vpop.f32.mrb[0].mxu0
  %v847 = vadd.f32 0.0, %v846
  %v848 = vpop.f32.mrb[0].mxu0
  %v849 = vadd.f32 0.0, %v848
  %v850 = vpop.f32.mrb[0].mxu0
  %v851 = vadd.f32 0.0, %v850
  %852 = vdwg.mxu0
  %v853 = vadd.f32 %v706, %v782
  %v854 = vadd.f32 %v707, %v784
  %v855 = vadd.f32 %v708, %v835
  %v856 = vadd.f32 %v709, %v837
  %v857 = vadd.f32 %v710, %v786
  %v858 = vadd.f32 %v711, %v788
  %v859 = vadd.f32 %v712, %v839
  %v860 = vadd.f32 %v713, %v841
  %v861 = vadd.f32 %v714, %v792
  %v862 = vadd.f32 %v715, %v794
  %v863 = vadd.f32 %v716, %v845
  %v864 = vadd.f32 %v717, %v847
  %v865 = vadd.f32 %v718, %v796
  %v866 = vadd.f32 %v719, %v798
  %v867 = vadd.f32 %v720, %v849
  %v868 = vadd.f32 %v721, %v851
  %s869 = scalar_lea.vmem %s1, 80
  %v870 = vld [vmem:[%s869] sm:$0xf]
  %v871 = vld [vmem:[%s869 + $0x4] sm:$0xf]
  %v872 = vld [vmem:[%s869 + $0x8] sm:$0xf]
  %v873 = vld [vmem:[%s869 + $0xc] sm:$0xf]
  %874 = vrot.lane.b32.xlu0 %v56, 127
  %v875 = vpop.permute.xlu0 %874
  %876 = vrot.lane.b32.xlu0 %v60, 127
  %v877 = vpop.permute.xlu0 %876
  %878 = vrot.lane.b32.xlu0 %v57, 127
  %v879 = vpop.permute.xlu0 %878
  %880 = vrot.lane.b32.xlu0 %v61, 127
  %v881 = vpop.permute.xlu0 %880
  %882 = vrot.lane.b32.xlu0 %v58, 127
  %v883 = vpop.permute.xlu0 %882
  %884 = vrot.lane.b32.xlu0 %v62, 127
  %v885 = vpop.permute.xlu0 %884
  %886 = vrot.lane.b32.xlu0 %v59, 127
  %v887 = vpop.permute.xlu0 %886
  %888 = vrot.lane.b32.xlu0 %v63, 127
  %v889 = vpop.permute.xlu0 %888
  %vm890 = vcmp.lt.s32.totalorder %v85, 127
  %v891 = vsel %vm890, %v883, %v887
  %v892 = vsel %vm890, %v885, %v889
  %v893 = vsel %vm890, %v879, %v883
  %v894 = vsel %vm890, %v881, %v885
  %v895 = vsel %vm890, %v875, %v879
  %v896 = vsel %vm890, %v877, %v881
  %v897 = vsel %vm890, %v887, %v875
  %v898 = vsel %vm890, %v889, %v877
  %v899 = vpack.c.bf16 %v896, %v895
  %v900 = vpack.c.bf16 %v894, %v893
  %v901 = vpack.c.bf16 %v892, %v891
  %v902 = vpack.c.bf16 %v898, %v897
  %v907 = vunpack.c.l.b16 %v870
  %v908 = vunpack.c.l.b16 %v871
  %v909 = vunpack.c.l.b16 %v872
  %v910 = vunpack.c.l.b16 %v873
  %v911 = vpack.c.b16 %v908, %v907
  %v912 = vpack.c.b16 %v910, %v909
  %v914 = vsel %vm143, %v911, 0
  %v917 = vsel %vm143, %v912, 0
  %919 = vmatprep.subr.bf16.mxu0 %v900
  %920 = vmatpush1.bf16.msra.mxu0 %v899
  %921 = vmatprep.subr.bf16.mxu0 0
  %922 = vmatpush1.bf16.msra.mxu0 0
  %923 = vmatprep.subr.bf16.mxu0 0
  %924 = vmatpush1.bf16.msra.mxu0 0
  %925 = vmatprep.subr.bf16.mxu0 0
  %926 = vmatpush1.bf16.msra.mxu0 0
  %927 = vmatprep.subr.bf16.mxu0 0
  %928 = vmatpush1.bf16.msra.mxu0 0
  %929 = vmatprep.subr.bf16.mxu0 0
  %930 = vmatpush1.bf16.msra.mxu0 0
  %931 = vmatprep.subr.bf16.mxu0 0
  %932 = vmatpush1.bf16.msra.mxu0 0
  %933 = vmatprep.subr.bf16.mxu0 0
  %934 = vmatpush1.bf16.msra.mxu0 0
  %935 = vmatprep.subr.bf16.mxu0 0
  %936 = vmatpush1.bf16.msra.mxu0 0
  %937 = vmatprep.subr.bf16.mxu0 0
  %938 = vmatpush1.bf16.msra.mxu0 0
  %939 = vmatprep.subr.bf16.mxu0 0
  %940 = vmatpush1.bf16.msra.mxu0 0
  %941 = vmatprep.subr.bf16.mxu0 0
  %942 = vmatpush1.bf16.msra.mxu0 0
  %943 = vmatprep.subr.bf16.mxu0 0
  %944 = vmatpush1.bf16.msra.mxu0 0
  %945 = vmatprep.subr.bf16.mxu0 0
  %946 = vmatpush1.bf16.msra.mxu0 0
  %947 = vmatprep.subr.bf16.mxu0 0
  %948 = vmatpush1.bf16.msra.mxu0 0
  %949 = vmatprep.subr.bf16.mxu0 0
  %950 = vmatpush1.bf16.msra.mxu0 0
  %951 = vmatprep.mubr.bf16.mxu0 0
  %952 = vmatmul.mubr.bf16.gmra.mrb[0].mxu0 %v914
  %v953 = vpop.f32.mrb[0].mxu0
  %v954 = vadd.f32 0.0, %v953
  %v955 = vpop.f32.mrb[0].mxu0
  %v956 = vadd.f32 0.0, %v955
  %v957 = vpop.f32.mrb[0].mxu0
  %v958 = vadd.f32 0.0, %v957
  %v959 = vpop.f32.mrb[0].mxu0
  %v960 = vadd.f32 0.0, %v959
  %961 = vmatprep.mubr.bf16.mxu0 0
  %962 = vmatmul.mubr.bf16.gmra.mrb[0].mxu0 %v917
  %v963 = vpop.f32.mrb[0].mxu0
  %v964 = vadd.f32 0.0, %v963
  %v965 = vpop.f32.mrb[0].mxu0
  %v966 = vadd.f32 0.0, %v965
  %v967 = vpop.f32.mrb[0].mxu0
  %v968 = vadd.f32 0.0, %v967
  %v969 = vpop.f32.mrb[0].mxu0
  %v970 = vadd.f32 0.0, %v969
  %971 = vdwg.mxu0
  %972 = vmatprep.subr.bf16.mxu0 %v902
  %973 = vmatpush1.bf16.msra.mxu0 %v901
  %974 = vmatprep.subr.bf16.mxu0 0
  %975 = vmatpush1.bf16.msra.mxu0 0
  %976 = vmatprep.subr.bf16.mxu0 0
  %977 = vmatpush1.bf16.msra.mxu0 0
  %978 = vmatprep.subr.bf16.mxu0 0
  %979 = vmatpush1.bf16.msra.mxu0 0
  %980 = vmatprep.subr.bf16.mxu0 0
  %981 = vmatpush1.bf16.msra.mxu0 0
  %982 = vmatprep.subr.bf16.mxu0 0
  %983 = vmatpush1.bf16.msra.mxu0 0
  %984 = vmatprep.subr.bf16.mxu0 0
  %985 = vmatpush1.bf16.msra.mxu0 0
  %986 = vmatprep.subr.bf16.mxu0 0
  %987 = vmatpush1.bf16.msra.mxu0 0
  %988 = vmatprep.subr.bf16.mxu0 0
  %989 = vmatpush1.bf16.msra.mxu0 0
  %990 = vmatprep.subr.bf16.mxu0 0
  %991 = vmatpush1.bf16.msra.mxu0 0
  %992 = vmatprep.subr.bf16.mxu0 0
  %993 = vmatpush1.bf16.msra.mxu0 0
  %994 = vmatprep.subr.bf16.mxu0 0
  %995 = vmatpush1.bf16.msra.mxu0 0
  %996 = vmatprep.subr.bf16.mxu0 0
  %997 = vmatpush1.bf16.msra.mxu0 0
  %998 = vmatprep.subr.bf16.mxu0 0
  %999 = vmatpush1.bf16.msra.mxu0 0
  %1000 = vmatprep.subr.bf16.mxu0 0
  %1001 = vmatpush1.bf16.msra.mxu0 0
  %1002 = vmatprep.subr.bf16.mxu0 0
  %1003 = vmatpush1.bf16.msra.mxu0 0
  %1004 = vmatprep.mubr.bf16.mxu0 0
  %1005 = vmatmul.mubr.bf16.gmra.mrb[0].mxu0 %v914
  %v1006 = vpop.f32.mrb[0].mxu0
  %v1007 = vadd.f32 0.0, %v1006
  %v1008 = vpop.f32.mrb[0].mxu0
  %v1009 = vadd.f32 0.0, %v1008
  %v1010 = vpop.f32.mrb[0].mxu0
  %v1011 = vadd.f32 0.0, %v1010
  %v1012 = vpop.f32.mrb[0].mxu0
  %v1013 = vadd.f32 0.0, %v1012
  %1014 = vmatprep.mubr.bf16.mxu0 0
  %1015 = vmatmul.mubr.bf16.gmra.mrb[0].mxu0 %v917
  %v1016 = vpop.f32.mrb[0].mxu0
  %v1017 = vadd.f32 0.0, %v1016
  %v1018 = vpop.f32.mrb[0].mxu0
  %v1019 = vadd.f32 0.0, %v1018
  %v1020 = vpop.f32.mrb[0].mxu0
  %v1021 = vadd.f32 0.0, %v1020
  %v1022 = vpop.f32.mrb[0].mxu0
  %v1023 = vadd.f32 0.0, %v1022
  %1024 = vdwg.mxu0
  %v1025 = vadd.f32 %v853, %v954
  %v1026 = vadd.f32 %v854, %v956
  %v1027 = vadd.f32 %v855, %v1007
  %v1028 = vadd.f32 %v856, %v1009
  %v1029 = vadd.f32 %v857, %v958
  %v1030 = vadd.f32 %v858, %v960
  %v1031 = vadd.f32 %v859, %v1011
  %v1032 = vadd.f32 %v860, %v1013
  %v1033 = vadd.f32 %v861, %v964
  %v1034 = vadd.f32 %v862, %v966
  %v1035 = vadd.f32 %v863, %v1017
  %v1036 = vadd.f32 %v864, %v1019
  %v1037 = vadd.f32 %v865, %v968
  %v1038 = vadd.f32 %v866, %v970
  %v1039 = vadd.f32 %v867, %v1021
  %v1040 = vadd.f32 %v868, %v1023
  %s1041 = scalar_lea.vmem %s1, 96
  %v1042 = vld [vmem:[%s1041] sm:$0xf]
  %v1043 = vld [vmem:[%s1041 + $0x4] sm:$0xf]
  %v1044 = vld [vmem:[%s1041 + $0x8] sm:$0xf]
  %v1045 = vld [vmem:[%s1041 + $0xc] sm:$0xf]
  %1046 = vrot.lane.b32.xlu0 %v56, 113
  %v1047 = vpop.permute.xlu0 %1046
  %1048 = vrot.lane.b32.xlu0 %v60, 113
  %v1049 = vpop.permute.xlu0 %1048
  %1050 = vrot.lane.b32.xlu0 %v57, 113
  %v1051 = vpop.permute.xlu0 %1050
  %1052 = vrot.lane.b32.xlu0 %v61, 113
  %v1053 = vpop.permute.xlu0 %1052
  %1054 = vrot.lane.b32.xlu0 %v58, 113
  %v1055 = vpop.permute.xlu0 %1054
  %1056 = vrot.lane.b32.xlu0 %v62, 113
  %v1057 = vpop.permute.xlu0 %1056
  %1058 = vrot.lane.b32.xlu0 %v59, 113
  %v1059 = vpop.permute.xlu0 %1058
  %1060 = vrot.lane.b32.xlu0 %v63, 113
  %v1061 = vpop.permute.xlu0 %1060
  %vm1062 = vcmp.lt.s32.totalorder %v85, 113
  %v1063 = vsel %vm1062, %v1055, %v1059
  %v1064 = vsel %vm1062, %v1057, %v1061
  %v1065 = vsel %vm1062, %v1051, %v1055
  %v1066 = vsel %vm1062, %v1053, %v1057
  %v1067 = vsel %vm1062, %v1047, %v1051
  %v1068 = vsel %vm1062, %v1049, %v1053
  %v1069 = vsel %vm1062, %v1059, %v1047
  %v1070 = vsel %vm1062, %v1061, %v1049
  %v1071 = vpack.c.bf16 %v1068, %v1067
  %v1072 = vpack.c.bf16 %v1066, %v1065
  %v1073 = vpack.c.bf16 %v1064, %v1063
  %v1074 = vpack.c.bf16 %v1070, %v1069
  %v1079 = vunpack.c.l.b16 %v1042
  %v1080 = vunpack.c.l.b16 %v1043
  %v1081 = vunpack.c.l.b16 %v1044
  %v1082 = vunpack.c.l.b16 %v1045
  %v1083 = vpack.c.b16 %v1080, %v1079
  %v1084 = vpack.c.b16 %v1082, %v1081
  %v1086 = vsel %vm143, %v1083, 0
  %v1089 = vsel %vm143, %v1084, 0
  %1091 = vmatprep.subr.bf16.mxu0 %v1072
  %1092 = vmatpush1.bf16.msra.mxu0 %v1071
  %1093 = vmatprep.subr.bf16.mxu0 0
  %1094 = vmatpush1.bf16.msra.mxu0 0
  %1095 = vmatprep.subr.bf16.mxu0 0
  %1096 = vmatpush1.bf16.msra.mxu0 0
  %1097 = vmatprep.subr.bf16.mxu0 0
  %1098 = vmatpush1.bf16.msra.mxu0 0
  %1099 = vmatprep.subr.bf16.mxu0 0
  %1100 = vmatpush1.bf16.msra.mxu0 0
  %1101 = vmatprep.subr.bf16.mxu0 0
  %1102 = vmatpush1.bf16.msra.mxu0 0
  %1103 = vmatprep.subr.bf16.mxu0 0
  %1104 = vmatpush1.bf16.msra.mxu0 0
  %1105 = vmatprep.subr.bf16.mxu0 0
  %1106 = vmatpush1.bf16.msra.mxu0 0
  %1107 = vmatprep.subr.bf16.mxu0 0
  %1108 = vmatpush1.bf16.msra.mxu0 0
  %1109 = vmatprep.subr.bf16.mxu0 0
  %1110 = vmatpush1.bf16.msra.mxu0 0
  %1111 = vmatprep.subr.bf16.mxu0 0
  %1112 = vmatpush1.bf16.msra.mxu0 0
  %1113 = vmatprep.subr.bf16.mxu0 0
  %1114 = vmatpush1.bf16.msra.mxu0 0
  %1115 = vmatprep.subr.bf16.mxu0 0
  %1116 = vmatpush1.bf16.msra.mxu0 0
  %1117 = vmatprep.subr.bf16.mxu0 0
  %1118 = vmatpush1.bf16.msra.mxu0 0
  %1119 = vmatprep.subr.bf16.mxu0 0
  %1120 = vmatpush1.bf16.msra.mxu0 0
  %1121 = vmatprep.subr.bf16.mxu0 0
  %1122 = vmatpush1.bf16.msra.mxu0 0
  %1123 = vmatprep.mubr.bf16.mxu0 0
  %1124 = vmatmul.mubr.bf16.gmra.mrb[0].mxu0 %v1086
  %v1125 = vpop.f32.mrb[0].mxu0
  %v1126 = vadd.f32 0.0, %v1125
  %v1127 = vpop.f32.mrb[0].mxu0
  %v1128 = vadd.f32 0.0, %v1127
  %v1129 = vpop.f32.mrb[0].mxu0
  %v1130 = vadd.f32 0.0, %v1129
  %v1131 = vpop.f32.mrb[0].mxu0
  %v1132 = vadd.f32 0.0, %v1131
  %1133 = vmatprep.mubr.bf16.mxu0 0
  %1134 = vmatmul.mubr.bf16.gmra.mrb[0].mxu0 %v1089
  %v1135 = vpop.f32.mrb[0].mxu0
  %v1136 = vadd.f32 0.0, %v1135
  %v1137 = vpop.f32.mrb[0].mxu0
  %v1138 = vadd.f32 0.0, %v1137
  %v1139 = vpop.f32.mrb[0].mxu0
  %v1140 = vadd.f32 0.0, %v1139
  %v1141 = vpop.f32.mrb[0].mxu0
  %v1142 = vadd.f32 0.0, %v1141
  %1143 = vdwg.mxu0
  %1144 = vmatprep.subr.bf16.mxu0 %v1074
  %1145 = vmatpush1.bf16.msra.mxu0 %v1073
  %1146 = vmatprep.subr.bf16.mxu0 0
  %1147 = vmatpush1.bf16.msra.mxu0 0
  %1148 = vmatprep.subr.bf16.mxu0 0
  %1149 = vmatpush1.bf16.msra.mxu0 0
  %1150 = vmatprep.subr.bf16.mxu0 0
  %1151 = vmatpush1.bf16.msra.mxu0 0
  %1152 = vmatprep.subr.bf16.mxu0 0
  %1153 = vmatpush1.bf16.msra.mxu0 0
  %1154 = vmatprep.subr.bf16.mxu0 0
  %1155 = vmatpush1.bf16.msra.mxu0 0
  %1156 = vmatprep.subr.bf16.mxu0 0
  %1157 = vmatpush1.bf16.msra.mxu0 0
  %1158 = vmatprep.subr.bf16.mxu0 0
  %1159 = vmatpush1.bf16.msra.mxu0 0
  %1160 = vmatprep.subr.bf16.mxu0 0
  %1161 = vmatpush1.bf16.msra.mxu0 0
  %1162 = vmatprep.subr.bf16.mxu0 0
  %1163 = vmatpush1.bf16.msra.mxu0 0
  %1164 = vmatprep.subr.bf16.mxu0 0
  %1165 = vmatpush1.bf16.msra.mxu0 0
  %1166 = vmatprep.subr.bf16.mxu0 0
  %1167 = vmatpush1.bf16.msra.mxu0 0
  %1168 = vmatprep.subr.bf16.mxu0 0
  %1169 = vmatpush1.bf16.msra.mxu0 0
  %1170 = vmatprep.subr.bf16.mxu0 0
  %1171 = vmatpush1.bf16.msra.mxu0 0
  %1172 = vmatprep.subr.bf16.mxu0 0
  %1173 = vmatpush1.bf16.msra.mxu0 0
  %1174 = vmatprep.subr.bf16.mxu0 0
  %1175 = vmatpush1.bf16.msra.mxu0 0
  %1176 = vmatprep.mubr.bf16.mxu0 0
  %1177 = vmatmul.mubr.bf16.gmra.mrb[0].mxu0 %v1086
  %v1178 = vpop.f32.mrb[0].mxu0
  %v1179 = vadd.f32 0.0, %v1178
  %v1180 = vpop.f32.mrb[0].mxu0
  %v1181 = vadd.f32 0.0, %v1180
  %v1182 = vpop.f32.mrb[0].mxu0
  %v1183 = vadd.f32 0.0, %v1182
  %v1184 = vpop.f32.mrb[0].mxu0
  %v1185 = vadd.f32 0.0, %v1184
  %1186 = vmatprep.mubr.bf16.mxu0 0
  %1187 = vmatmul.mubr.bf16.gmra.mrb[0].mxu0 %v1089
  %v1188 = vpop.f32.mrb[0].mxu0
  %v1189 = vadd.f32 0.0, %v1188
  %v1190 = vpop.f32.mrb[0].mxu0
  %v1191 = vadd.f32 0.0, %v1190
  %v1192 = vpop.f32.mrb[0].mxu0
  %v1193 = vadd.f32 0.0, %v1192
  %v1194 = vpop.f32.mrb[0].mxu0
  %v1195 = vadd.f32 0.0, %v1194
  %1196 = vdwg.mxu0
  %v1197 = vadd.f32 %v1025, %v1126
  %v1198 = vadd.f32 %v1026, %v1128
  %v1199 = vadd.f32 %v1027, %v1179
  %v1200 = vadd.f32 %v1028, %v1181
  %v1201 = vadd.f32 %v1029, %v1130
  %v1202 = vadd.f32 %v1030, %v1132
  %v1203 = vadd.f32 %v1031, %v1183
  %v1204 = vadd.f32 %v1032, %v1185
  %v1205 = vadd.f32 %v1033, %v1136
  %v1206 = vadd.f32 %v1034, %v1138
  %v1207 = vadd.f32 %v1035, %v1189
  %v1208 = vadd.f32 %v1036, %v1191
  %v1209 = vadd.f32 %v1037, %v1140
  %v1210 = vadd.f32 %v1038, %v1142
  %v1211 = vadd.f32 %v1039, %v1193
  %v1212 = vadd.f32 %v1040, %v1195
  %s1213 = scalar_lea.vmem %s1, 112
  %v1214 = vld [vmem:[%s1213] sm:$0xf]
  %v1215 = vld [vmem:[%s1213 + $0x4] sm:$0xf]
  %v1216 = vld [vmem:[%s1213 + $0x8] sm:$0xf]
  %v1217 = vld [vmem:[%s1213 + $0xc] sm:$0xf]
  %1218 = vrot.lane.b32.xlu0 %v56, 112
  %v1219 = vpop.permute.xlu0 %1218
  %1220 = vrot.lane.b32.xlu0 %v60, 112
  %v1221 = vpop.permute.xlu0 %1220
  %1222 = vrot.lane.b32.xlu0 %v57, 112
  %v1223 = vpop.permute.xlu0 %1222
  %1224 = vrot.lane.b32.xlu0 %v61, 112
  %v1225 = vpop.permute.xlu0 %1224
  %1226 = vrot.lane.b32.xlu0 %v58, 112
  %v1227 = vpop.permute.xlu0 %1226
  %1228 = vrot.lane.b32.xlu0 %v62, 112
  %v1229 = vpop.permute.xlu0 %1228
  %1230 = vrot.lane.b32.xlu0 %v59, 112
  %v1231 = vpop.permute.xlu0 %1230
  %1232 = vrot.lane.b32.xlu0 %v63, 112
  %v1233 = vpop.permute.xlu0 %1232
  %vm1234 = vcmp.lt.s32.totalorder %v85, 112
  %v1235 = vsel %vm1234, %v1227, %v1231
  %v1236 = vsel %vm1234, %v1229, %v1233
  %v1237 = vsel %vm1234, %v1223, %v1227
  %v1238 = vsel %vm1234, %v1225, %v1229
  %v1239 = vsel %vm1234, %v1219, %v1223
  %v1240 = vsel %vm1234, %v1221, %v1225
  %v1241 = vsel %vm1234, %v1231, %v1219
  %v1242 = vsel %vm1234, %v1233, %v1221
  %v1243 = vpack.c.bf16 %v1240, %v1239
  %v1244 = vpack.c.bf16 %v1238, %v1237
  %v1245 = vpack.c.bf16 %v1236, %v1235
  %v1246 = vpack.c.bf16 %v1242, %v1241
  %v1251 = vunpack.c.l.b16 %v1214
  %v1252 = vunpack.c.l.b16 %v1215
  %v1253 = vunpack.c.l.b16 %v1216
  %v1254 = vunpack.c.l.b16 %v1217
  %v1255 = vpack.c.b16 %v1252, %v1251
  %v1256 = vpack.c.b16 %v1254, %v1253
  %v1258 = vsel %vm143, %v1255, 0
  %v1261 = vsel %vm143, %v1256, 0
  %1263 = vmatprep.subr.bf16.mxu0 %v1244
  %1264 = vmatpush1.bf16.msra.mxu0 %v1243
  %1265 = vmatprep.subr.bf16.mxu0 0
  %1266 = vmatpush1.bf16.msra.mxu0 0
  %1267 = vmatprep.subr.bf16.mxu0 0
  %1268 = vmatpush1.bf16.msra.mxu0 0
  %1269 = vmatprep.subr.bf16.mxu0 0
  %1270 = vmatpush1.bf16.msra.mxu0 0
  %1271 = vmatprep.subr.bf16.mxu0 0
  %1272 = vmatpush1.bf16.msra.mxu0 0
  %1273 = vmatprep.subr.bf16.mxu0 0
  %1274 = vmatpush1.bf16.msra.mxu0 0
  %1275 = vmatprep.subr.bf16.mxu0 0
  %1276 = vmatpush1.bf16.msra.mxu0 0
  %1277 = vmatprep.subr.bf16.mxu0 0
  %1278 = vmatpush1.bf16.msra.mxu0 0
  %1279 = vmatprep.subr.bf16.mxu0 0
  %1280 = vmatpush1.bf16.msra.mxu0 0
  %1281 = vmatprep.subr.bf16.mxu0 0
  %1282 = vmatpush1.bf16.msra.mxu0 0
  %1283 = vmatprep.subr.bf16.mxu0 0
  %1284 = vmatpush1.bf16.msra.mxu0 0
  %1285 = vmatprep.subr.bf16.mxu0 0
  %1286 = vmatpush1.bf16.msra.mxu0 0
  %1287 = vmatprep.subr.bf16.mxu0 0
  %1288 = vmatpush1.bf16.msra.mxu0 0
  %1289 = vmatprep.subr.bf16.mxu0 0
  %1290 = vmatpush1.bf16.msra.mxu0 0
  %1291 = vmatprep.subr.bf16.mxu0 0
  %1292 = vmatpush1.bf16.msra.mxu0 0
  %1293 = vmatprep.subr.bf16.mxu0 0
  %1294 = vmatpush1.bf16.msra.mxu0 0
  %1295 = vmatprep.mubr.bf16.mxu0 0
  %1296 = vmatmul.mubr.bf16.gmra.mrb[0].mxu0 %v1258
  %v1297 = vpop.f32.mrb[0].mxu0
  %v1298 = vadd.f32 0.0, %v1297
  %v1299 = vpop.f32.mrb[0].mxu0
  %v1300 = vadd.f32 0.0, %v1299
  %v1301 = vpop.f32.mrb[0].mxu0
  %v1302 = vadd.f32 0.0, %v1301
  %v1303 = vpop.f32.mrb[0].mxu0
  %v1304 = vadd.f32 0.0, %v1303
  %1305 = vmatprep.mubr.bf16.mxu0 0
  %1306 = vmatmul.mubr.bf16.gmra.mrb[0].mxu0 %v1261
  %v1307 = vpop.f32.mrb[0].mxu0
  %v1308 = vadd.f32 0.0, %v1307
  %v1309 = vpop.f32.mrb[0].mxu0
  %v1310 = vadd.f32 0.0, %v1309
  %v1311 = vpop.f32.mrb[0].mxu0
  %v1312 = vadd.f32 0.0, %v1311
  %v1313 = vpop.f32.mrb[0].mxu0
  %v1314 = vadd.f32 0.0, %v1313
  %1315 = vdwg.mxu0
  %1316 = vmatprep.subr.bf16.mxu0 %v1246
  %1317 = vmatpush1.bf16.msra.mxu0 %v1245
  %1318 = vmatprep.subr.bf16.mxu0 0
  %1319 = vmatpush1.bf16.msra.mxu0 0
  %1320 = vmatprep.subr.bf16.mxu0 0
  %1321 = vmatpush1.bf16.msra.mxu0 0
  %1322 = vmatprep.subr.bf16.mxu0 0
  %1323 = vmatpush1.bf16.msra.mxu0 0
  %1324 = vmatprep.subr.bf16.mxu0 0
  %1325 = vmatpush1.bf16.msra.mxu0 0
  %1326 = vmatprep.subr.bf16.mxu0 0
  %1327 = vmatpush1.bf16.msra.mxu0 0
  %1328 = vmatprep.subr.bf16.mxu0 0
  %1329 = vmatpush1.bf16.msra.mxu0 0
  %1330 = vmatprep.subr.bf16.mxu0 0
  %1331 = vmatpush1.bf16.msra.mxu0 0
  %1332 = vmatprep.subr.bf16.mxu0 0
  %1333 = vmatpush1.bf16.msra.mxu0 0
  %1334 = vmatprep.subr.bf16.mxu0 0
  %1335 = vmatpush1.bf16.msra.mxu0 0
  %1336 = vmatprep.subr.bf16.mxu0 0
  %1337 = vmatpush1.bf16.msra.mxu0 0
  %1338 = vmatprep.subr.bf16.mxu0 0
  %1339 = vmatpush1.bf16.msra.mxu0 0
  %1340 = vmatprep.subr.bf16.mxu0 0
  %1341 = vmatpush1.bf16.msra.mxu0 0
  %1342 = vmatprep.subr.bf16.mxu0 0
  %1343 = vmatpush1.bf16.msra.mxu0 0
  %1344 = vmatprep.subr.bf16.mxu0 0
  %1345 = vmatpush1.bf16.msra.mxu0 0
  %1346 = vmatprep.subr.bf16.mxu0 0
  %1347 = vmatpush1.bf16.msra.mxu0 0
  %1348 = vmatprep.mubr.bf16.mxu0 0
  %1349 = vmatmul.mubr.bf16.gmra.mrb[0].mxu0 %v1258
  %v1350 = vpop.f32.mrb[0].mxu0
  %v1351 = vadd.f32 0.0, %v1350
  %v1352 = vpop.f32.mrb[0].mxu0
  %v1353 = vadd.f32 0.0, %v1352
  %v1354 = vpop.f32.mrb[0].mxu0
  %v1355 = vadd.f32 0.0, %v1354
  %v1356 = vpop.f32.mrb[0].mxu0
  %v1357 = vadd.f32 0.0, %v1356
  %1358 = vmatprep.mubr.bf16.mxu0 0
  %1359 = vmatmul.mubr.bf16.gmra.mrb[0].mxu0 %v1261
  %v1360 = vpop.f32.mrb[0].mxu0
  %v1361 = vadd.f32 0.0, %v1360
  %v1362 = vpop.f32.mrb[0].mxu0
  %v1363 = vadd.f32 0.0, %v1362
  %v1364 = vpop.f32.mrb[0].mxu0
  %v1365 = vadd.f32 0.0, %v1364
  %v1366 = vpop.f32.mrb[0].mxu0
  %v1367 = vadd.f32 0.0, %v1366
  %1368 = vdwg.mxu0
  %v1369 = vadd.f32 %v1197, %v1298
  %v1370 = vadd.f32 %v1198, %v1300
  %v1371 = vadd.f32 %v1199, %v1351
  %v1372 = vadd.f32 %v1200, %v1353
  %v1373 = vadd.f32 %v1201, %v1302
  %v1374 = vadd.f32 %v1202, %v1304
  %v1375 = vadd.f32 %v1203, %v1355
  %v1376 = vadd.f32 %v1204, %v1357
  %v1377 = vadd.f32 %v1205, %v1308
  %v1378 = vadd.f32 %v1206, %v1310
  %v1379 = vadd.f32 %v1207, %v1361
  %v1380 = vadd.f32 %v1208, %v1363
  %v1381 = vadd.f32 %v1209, %v1312
  %v1382 = vadd.f32 %v1210, %v1314
  %v1383 = vadd.f32 %v1211, %v1365
  %v1384 = vadd.f32 %v1212, %v1367
  %s1385 = scalar_lea.vmem %s1, 128
  %v1386 = vld [vmem:[%s1385] sm:$0xf]
  %v1387 = vld [vmem:[%s1385 + $0x4] sm:$0xf]
  %v1388 = vld [vmem:[%s1385 + $0x8] sm:$0xf]
  %v1389 = vld [vmem:[%s1385 + $0xc] sm:$0xf]
  %1390 = vrot.lane.b32.xlu0 %v56, 111
  %v1391 = vpop.permute.xlu0 %1390
  %1392 = vrot.lane.b32.xlu0 %v60, 111
  %v1393 = vpop.permute.xlu0 %1392
  %1394 = vrot.lane.b32.xlu0 %v57, 111
  %v1395 = vpop.permute.xlu0 %1394
  %1396 = vrot.lane.b32.xlu0 %v61, 111
  %v1397 = vpop.permute.xlu0 %1396
  %1398 = vrot.lane.b32.xlu0 %v58, 111
  %v1399 = vpop.permute.xlu0 %1398
  %1400 = vrot.lane.b32.xlu0 %v62, 111
  %v1401 = vpop.permute.xlu0 %1400
  %1402 = vrot.lane.b32.xlu0 %v59, 111
  %v1403 = vpop.permute.xlu0 %1402
  %1404 = vrot.lane.b32.xlu0 %v63, 111
  %v1405 = vpop.permute.xlu0 %1404
  %vm1406 = vcmp.lt.s32.totalorder %v85, 111
  %v1407 = vsel %vm1406, %v1399, %v1403
  %v1408 = vsel %vm1406, %v1401, %v1405
  %v1409 = vsel %vm1406, %v1395, %v1399
  %v1410 = vsel %vm1406, %v1397, %v1401
  %v1411 = vsel %vm1406, %v1391, %v1395
  %v1412 = vsel %vm1406, %v1393, %v1397
  %v1413 = vsel %vm1406, %v1403, %v1391
  %v1414 = vsel %vm1406, %v1405, %v1393
  %v1415 = vpack.c.bf16 %v1412, %v1411
  %v1416 = vpack.c.bf16 %v1410, %v1409
  %v1417 = vpack.c.bf16 %v1408, %v1407
  %v1418 = vpack.c.bf16 %v1414, %v1413
  %v1423 = vunpack.c.l.b16 %v1386
  %v1424 = vunpack.c.l.b16 %v1387
  %v1425 = vunpack.c.l.b16 %v1388
  %v1426 = vunpack.c.l.b16 %v1389
  %v1427 = vpack.c.b16 %v1424, %v1423
  %v1428 = vpack.c.b16 %v1426, %v1425
  %v1430 = vsel %vm143, %v1427, 0
  %v1433 = vsel %vm143, %v1428, 0
  %1435 = vmatprep.subr.bf16.mxu0 %v1416
  %1436 = vmatpush1.bf16.msra.mxu0 %v1415
  %1437 = vmatprep.subr.bf16.mxu0 0
  %1438 = vmatpush1.bf16.msra.mxu0 0
  %1439 = vmatprep.subr.bf16.mxu0 0
  %1440 = vmatpush1.bf16.msra.mxu0 0
  %1441 = vmatprep.subr.bf16.mxu0 0
  %1442 = vmatpush1.bf16.msra.mxu0 0
  %1443 = vmatprep.subr.bf16.mxu0 0
  %1444 = vmatpush1.bf16.msra.mxu0 0
  %1445 = vmatprep.subr.bf16.mxu0 0
  %1446 = vmatpush1.bf16.msra.mxu0 0
  %1447 = vmatprep.subr.bf16.mxu0 0
  %1448 = vmatpush1.bf16.msra.mxu0 0
  %1449 = vmatprep.subr.bf16.mxu0 0
  %1450 = vmatpush1.bf16.msra.mxu0 0
  %1451 = vmatprep.subr.bf16.mxu0 0
  %1452 = vmatpush1.bf16.msra.mxu0 0
  %1453 = vmatprep.subr.bf16.mxu0 0
  %1454 = vmatpush1.bf16.msra.mxu0 0
  %1455 = vmatprep.subr.bf16.mxu0 0
  %1456 = vmatpush1.bf16.msra.mxu0 0
  %1457 = vmatprep.subr.bf16.mxu0 0
  %1458 = vmatpush1.bf16.msra.mxu0 0
  %1459 = vmatprep.subr.bf16.mxu0 0
  %1460 = vmatpush1.bf16.msra.mxu0 0
  %1461 = vmatprep.subr.bf16.mxu0 0
  %1462 = vmatpush1.bf16.msra.mxu0 0
  %1463 = vmatprep.subr.bf16.mxu0 0
  %1464 = vmatpush1.bf16.msra.mxu0 0
  %1465 = vmatprep.subr.bf16.mxu0 0
  %1466 = vmatpush1.bf16.msra.mxu0 0
  %1467 = vmatprep.mubr.bf16.mxu0 0
  %1468 = vmatmul.mubr.bf16.gmra.mrb[0].mxu0 %v1430
  %v1469 = vpop.f32.mrb[0].mxu0
  %v1470 = vadd.f32 0.0, %v1469
  %v1471 = vpop.f32.mrb[0].mxu0
  %v1472 = vadd.f32 0.0, %v1471
  %v1473 = vpop.f32.mrb[0].mxu0
  %v1474 = vadd.f32 0.0, %v1473
  %v1475 = vpop.f32.mrb[0].mxu0
  %v1476 = vadd.f32 0.0, %v1475
  %1477 = vmatprep.mubr.bf16.mxu0 0
  %1478 = vmatmul.mubr.bf16.gmra.mrb[0].mxu0 %v1433
  %v1479 = vpop.f32.mrb[0].mxu0
  %v1480 = vadd.f32 0.0, %v1479
  %v1481 = vpop.f32.mrb[0].mxu0
  %v1482 = vadd.f32 0.0, %v1481
  %v1483 = vpop.f32.mrb[0].mxu0
  %v1484 = vadd.f32 0.0, %v1483
  %v1485 = vpop.f32.mrb[0].mxu0
  %v1486 = vadd.f32 0.0, %v1485
  %1487 = vdwg.mxu0
  %1488 = vmatprep.subr.bf16.mxu0 %v1418
  %1489 = vmatpush1.bf16.msra.mxu0 %v1417
  %1490 = vmatprep.subr.bf16.mxu0 0
  %1491 = vmatpush1.bf16.msra.mxu0 0
  %1492 = vmatprep.subr.bf16.mxu0 0
  %1493 = vmatpush1.bf16.msra.mxu0 0
  %1494 = vmatprep.subr.bf16.mxu0 0
  %1495 = vmatpush1.bf16.msra.mxu0 0
  %1496 = vmatprep.subr.bf16.mxu0 0
  %1497 = vmatpush1.bf16.msra.mxu0 0
  %1498 = vmatprep.subr.bf16.mxu0 0
  %1499 = vmatpush1.bf16.msra.mxu0 0
  %1500 = vmatprep.subr.bf16.mxu0 0
  %1501 = vmatpush1.bf16.msra.mxu0 0
  %1502 = vmatprep.subr.bf16.mxu0 0
  %1503 = vmatpush1.bf16.msra.mxu0 0
  %1504 = vmatprep.subr.bf16.mxu0 0
  %1505 = vmatpush1.bf16.msra.mxu0 0
  %1506 = vmatprep.subr.bf16.mxu0 0
  %1507 = vmatpush1.bf16.msra.mxu0 0
  %1508 = vmatprep.subr.bf16.mxu0 0
  %1509 = vmatpush1.bf16.msra.mxu0 0
  %1510 = vmatprep.subr.bf16.mxu0 0
  %1511 = vmatpush1.bf16.msra.mxu0 0
  %1512 = vmatprep.subr.bf16.mxu0 0
  %1513 = vmatpush1.bf16.msra.mxu0 0
  %1514 = vmatprep.subr.bf16.mxu0 0
  %1515 = vmatpush1.bf16.msra.mxu0 0
  %1516 = vmatprep.subr.bf16.mxu0 0
  %1517 = vmatpush1.bf16.msra.mxu0 0
  %1518 = vmatprep.subr.bf16.mxu0 0
  %1519 = vmatpush1.bf16.msra.mxu0 0
  %1520 = vmatprep.mubr.bf16.mxu0 0
  %1521 = vmatmul.mubr.bf16.gmra.mrb[0].mxu0 %v1430
  %v1522 = vpop.f32.mrb[0].mxu0
  %v1523 = vadd.f32 0.0, %v1522
  %v1524 = vpop.f32.mrb[0].mxu0
  %v1525 = vadd.f32 0.0, %v1524
  %v1526 = vpop.f32.mrb[0].mxu0
  %v1527 = vadd.f32 0.0, %v1526
  %v1528 = vpop.f32.mrb[0].mxu0
  %v1529 = vadd.f32 0.0, %v1528
  %1530 = vmatprep.mubr.bf16.mxu0 0
  %1531 = vmatmul.mubr.bf16.gmra.mrb[0].mxu0 %v1433
  %v1532 = vpop.f32.mrb[0].mxu0
  %v1533 = vadd.f32 0.0, %v1532
  %v1534 = vpop.f32.mrb[0].mxu0
  %v1535 = vadd.f32 0.0, %v1534
  %v1536 = vpop.f32.mrb[0].mxu0
  %v1537 = vadd.f32 0.0, %v1536
  %v1538 = vpop.f32.mrb[0].mxu0
  %v1539 = vadd.f32 0.0, %v1538
  %1540 = vdwg.mxu0
  %v1541 = vadd.f32 %v1369, %v1470
  %v1542 = vadd.f32 %v1370, %v1472
  %v1543 = vadd.f32 %v1371, %v1523
  %v1544 = vadd.f32 %v1372, %v1525
  %v1545 = vadd.f32 %v1373, %v1474
  %v1546 = vadd.f32 %v1374, %v1476
  %v1547 = vadd.f32 %v1375, %v1527
  %v1548 = vadd.f32 %v1376, %v1529
  %v1549 = vadd.f32 %v1377, %v1480
  %v1550 = vadd.f32 %v1378, %v1482
  %v1551 = vadd.f32 %v1379, %v1533
  %v1552 = vadd.f32 %v1380, %v1535
  %v1553 = vadd.f32 %v1381, %v1484
  %v1554 = vadd.f32 %v1382, %v1486
  %v1555 = vadd.f32 %v1383, %v1537
  %v1556 = vadd.f32 %v1384, %v1539
  %v1558 = vlaneseq
  %v1559 = vshrl.u32 %v1558, 7
  %v1560 = vsub.s32 0, %v1559
  %v1561 = vrot.slane %v55, %v1560
  %v1562 = vlaneseq
  %v1563 = vshrl.u32 %v1562, 7
  %v1564 = vsub.s32 1, %v1563
  %v1565 = vrot.slane %v55, %v1564
  %v1566 = vlaneseq
  %v1567 = vshrl.u32 %v1566, 7
  %v1568 = vsub.s32 2, %v1567
  %v1569 = vrot.slane %v55, %v1568
  %v1570 = vlaneseq
  %v1571 = vshrl.u32 %v1570, 7
  %v1572 = vsub.s32 3, %v1571
  %v1573 = vrot.slane %v55, %v1572
  %v1578 = vmul.f32 %v1541, %v1561
  %v1579 = vmul.f32 %v1542, %v1565
  %v1580 = vmul.f32 %v1543, %v1569
  %v1581 = vmul.f32 %v1544, %v1573
  %v1582 = vmul.f32 %v1545, %v1561
  %v1583 = vmul.f32 %v1546, %v1565
  %v1584 = vmul.f32 %v1547, %v1569
  %v1585 = vmul.f32 %v1548, %v1573
  %v1586 = vmul.f32 %v1549, %v1561
  %v1587 = vmul.f32 %v1550, %v1565
  %v1588 = vmul.f32 %v1551, %v1569
  %v1589 = vmul.f32 %v1552, %v1573
  %v1590 = vmul.f32 %v1553, %v1561
  %v1591 = vmul.f32 %v1554, %v1565
  %v1592 = vmul.f32 %v1555, %v1569
  %v1593 = vmul.f32 %v1556, %v1573
  %v1594 = vadd.f32 %v1578, %v1579
  %v1595 = vadd.f32 %v1594, %v1580
  %v1596 = vadd.f32 %v1595, %v1581
  %1597 = vadd.xlane.f32.xlu0 %v1596
  %v1598 = vpop.xlane.xlu0 %1597
  %v1599 = vadd.f32 %v1582, %v1583
  %v1600 = vadd.f32 %v1599, %v1584
  %v1601 = vadd.f32 %v1600, %v1585
  %1602 = vadd.xlane.f32.xlu0 %v1601
  %v1603 = vpop.xlane.xlu0 %1602
  %v1604 = vadd.f32 %v1586, %v1587
  %v1605 = vadd.f32 %v1604, %v1588
  %v1606 = vadd.f32 %v1605, %v1589
  %1607 = vadd.xlane.f32.xlu0 %v1606
  %v1608 = vpop.xlane.xlu0 %1607
  %v1609 = vadd.f32 %v1590, %v1591
  %v1610 = vadd.f32 %v1609, %v1592
  %v1611 = vadd.f32 %v1610, %v1593
  %1612 = vadd.xlane.f32.xlu0 %v1611
  %v1613 = vpop.xlane.xlu0 %1612
  %v1614 = vmul.f32 %v1598, 0.0025510204
  %v1615 = vmul.f32 %v1603, 0.0025510204
  %v1616 = vmul.f32 %v1608, 0.0025510204
  %v1617 = vmul.f32 %v1613, 0.0025510204
  %v1618 = vsub.f32 %v1541, %v1614
  %v1619 = vsub.f32 %v1542, %v1614
  %v1620 = vsub.f32 %v1543, %v1614
  %v1621 = vsub.f32 %v1544, %v1614
  %v1622 = vsub.f32 %v1545, %v1615
  %v1623 = vsub.f32 %v1546, %v1615
  %v1624 = vsub.f32 %v1547, %v1615
  %v1625 = vsub.f32 %v1548, %v1615
  %v1626 = vsub.f32 %v1549, %v1616
  %v1627 = vsub.f32 %v1550, %v1616
  %v1628 = vsub.f32 %v1551, %v1616
  %v1629 = vsub.f32 %v1552, %v1616
  %v1630 = vsub.f32 %v1553, %v1617
  %v1631 = vsub.f32 %v1554, %v1617
  %v1632 = vsub.f32 %v1555, %v1617
  %v1633 = vsub.f32 %v1556, %v1617
  %v1634 = vmul.f32 %v1618, %v1561
  %v1635 = vmul.f32 %v1619, %v1565
  %v1636 = vmul.f32 %v1620, %v1569
  %v1637 = vmul.f32 %v1621, %v1573
  %v1638 = vmul.f32 %v1622, %v1561
  %v1639 = vmul.f32 %v1623, %v1565
  %v1640 = vmul.f32 %v1624, %v1569
  %v1641 = vmul.f32 %v1625, %v1573
  %v1642 = vmul.f32 %v1626, %v1561
  %v1643 = vmul.f32 %v1627, %v1565
  %v1644 = vmul.f32 %v1628, %v1569
  %v1645 = vmul.f32 %v1629, %v1573
  %v1646 = vmul.f32 %v1630, %v1561
  %v1647 = vmul.f32 %v1631, %v1565
  %v1648 = vmul.f32 %v1632, %v1569
  %v1649 = vmul.f32 %v1633, %v1573
  %v1650 = vmul.f32 %v1634, %v1634
  %v1651 = vmul.f32 %v1635, %v1635
  %v1652 = vmul.f32 %v1636, %v1636
  %v1653 = vmul.f32 %v1637, %v1637
  %v1654 = vmul.f32 %v1638, %v1638
  %v1655 = vmul.f32 %v1639, %v1639
  %v1656 = vmul.f32 %v1640, %v1640
  %v1657 = vmul.f32 %v1641, %v1641
  %v1658 = vmul.f32 %v1642, %v1642
  %v1659 = vmul.f32 %v1643, %v1643
  %v1660 = vmul.f32 %v1644, %v1644
  %v1661 = vmul.f32 %v1645, %v1645
  %v1662 = vmul.f32 %v1646, %v1646
  %v1663 = vmul.f32 %v1647, %v1647
  %v1664 = vmul.f32 %v1648, %v1648
  %v1665 = vmul.f32 %v1649, %v1649
  %v1666 = vadd.f32 %v1650, %v1651
  %v1667 = vadd.f32 %v1666, %v1652
  %v1668 = vadd.f32 %v1667, %v1653
  %1669 = vadd.xlane.f32.xlu0 %v1668
  %v1670 = vpop.xlane.xlu0 %1669
  %v1671 = vadd.f32 %v1654, %v1655
  %v1672 = vadd.f32 %v1671, %v1656
  %v1673 = vadd.f32 %v1672, %v1657
  %1674 = vadd.xlane.f32.xlu0 %v1673
  %v1675 = vpop.xlane.xlu0 %1674
  %v1676 = vadd.f32 %v1658, %v1659
  %v1677 = vadd.f32 %v1676, %v1660
  %v1678 = vadd.f32 %v1677, %v1661
  %1679 = vadd.xlane.f32.xlu0 %v1678
  %v1680 = vpop.xlane.xlu0 %1679
  %v1681 = vadd.f32 %v1662, %v1663
  %v1682 = vadd.f32 %v1681, %v1664
  %v1683 = vadd.f32 %v1682, %v1665
  %1684 = vadd.xlane.f32.xlu0 %v1683
  %v1685 = vpop.xlane.xlu0 %1684
  %v1686 = vmul.f32 %v1670, 0.0025510204
  %v1687 = vmul.f32 %v1675, 0.0025510204
  %v1688 = vmul.f32 %v1680, 0.0025510204
  %v1689 = vmul.f32 %v1685, 0.0025510204
  %v1690 = vld [vmem:[%s2] sm:$0xff]
  %v1691 = vld [vmem:[%s2 + $0x8] sm:$0xff]
  %v1692 = vld [vmem:[%s2 + $0x10] sm:$0xff]
  %v1693 = vld [vmem:[%s2 + $0x18] sm:$0xff]
  %v1694 = vadd.f32 %v1686, 1e-05
  %v1695 = vadd.f32 %v1687, 1e-05
  %v1696 = vadd.f32 %v1688, 1e-05
  %v1697 = vadd.f32 %v1689, 1e-05
  %v1698 = vrsqrt.pop %v1694
  %v1699 = vrsqrt.pop %v1695
  %v1700 = vrsqrt.pop %v1696
  %v1701 = vrsqrt.pop %v1697
  %v1702 = vmul.f32 %v1690, %v1698
  %v1703 = vmul.f32 %v1691, %v1699
  %v1704 = vmul.f32 %v1692, %v1700
  %v1705 = vmul.f32 %v1693, %v1701
  %v1706 = vld [vmem:[%s3] sm:$0xff]
  %v1707 = vld [vmem:[%s3 + $0x8] sm:$0xff]
  %v1708 = vld [vmem:[%s3 + $0x10] sm:$0xff]
  %v1709 = vld [vmem:[%s3 + $0x18] sm:$0xff]
  %v1710 = vmul.f32 %v1614, %v1702
  %v1711 = vmul.f32 %v1615, %v1703
  %v1712 = vmul.f32 %v1616, %v1704
  %v1713 = vmul.f32 %v1617, %v1705
  %v1714 = vsub.f32 %v1706, %v1710
  %v1715 = vsub.f32 %v1707, %v1711
  %v1716 = vsub.f32 %v1708, %v1712
  %v1717 = vsub.f32 %v1709, %v1713
  %1719 = vset.pattern.permute.xlu0 0
  %1720 = vperm.xlu0 %1719, %v1702
  %v1721 = vpop.permute.xlu0 %1720
  %1724 = vset.pattern.permute.xlu0 0
  %1725 = vperm.xlu0 %1724, %v1703
  %v1726 = vpop.permute.xlu0 %1725
  %1729 = vset.pattern.permute.xlu0 0
  %1730 = vperm.xlu0 %1729, %v1704
  %v1731 = vpop.permute.xlu0 %1730
  %1734 = vset.pattern.permute.xlu0 0
  %1735 = vperm.xlu0 %1734, %v1705
  %v1736 = vpop.permute.xlu0 %1735
  %v1738 = vmul.f32 %v1541, %v1721
  %v1739 = vmul.f32 %v1542, %v1721
  %v1740 = vmul.f32 %v1543, %v1721
  %v1741 = vmul.f32 %v1544, %v1721
  %v1742 = vmul.f32 %v1545, %v1726
  %v1743 = vmul.f32 %v1546, %v1726
  %v1744 = vmul.f32 %v1547, %v1726
  %v1745 = vmul.f32 %v1548, %v1726
  %v1746 = vmul.f32 %v1549, %v1731
  %v1747 = vmul.f32 %v1550, %v1731
  %v1748 = vmul.f32 %v1551, %v1731
  %v1749 = vmul.f32 %v1552, %v1731
  %v1750 = vmul.f32 %v1553, %v1736
  %v1751 = vmul.f32 %v1554, %v1736
  %v1752 = vmul.f32 %v1555, %v1736
  %v1753 = vmul.f32 %v1556, %v1736
  %1755 = vset.pattern.permute.xlu0 0
  %1756 = vperm.xlu0 %1755, %v1714
  %v1757 = vpop.permute.xlu0 %1756
  %1760 = vset.pattern.permute.xlu0 0
  %1761 = vperm.xlu0 %1760, %v1715
  %v1762 = vpop.permute.xlu0 %1761
  %1765 = vset.pattern.permute.xlu0 0
  %1766 = vperm.xlu0 %1765, %v1716
  %v1767 = vpop.permute.xlu0 %1766
  %1770 = vset.pattern.permute.xlu0 0
  %1771 = vperm.xlu0 %1770, %v1717
  %v1772 = vpop.permute.xlu0 %1771
  %v1774 = vadd.f32 %v1738, %v1757
  %v1775 = vadd.f32 %v1739, %v1757
  %v1776 = vadd.f32 %v1740, %v1757
  %v1777 = vadd.f32 %v1741, %v1757
  %v1778 = vadd.f32 %v1742, %v1762
  %v1779 = vadd.f32 %v1743, %v1762
  %v1780 = vadd.f32 %v1744, %v1762
  %v1781 = vadd.f32 %v1745, %v1762
  %v1782 = vadd.f32 %v1746, %v1767
  %v1783 = vadd.f32 %v1747, %v1767
  %v1784 = vadd.f32 %v1748, %v1767
  %v1785 = vadd.f32 %v1749, %v1767
  %v1786 = vadd.f32 %v1750, %v1772
  %v1787 = vadd.f32 %v1751, %v1772
  %v1788 = vadd.f32 %v1752, %v1772
  %v1789 = vadd.f32 %v1753, %v1772
  %v1790 = vmax.f32 %v1774, 0.0
  %v1791 = vmax.f32 %v1775, 0.0
  %v1792 = vmax.f32 %v1776, 0.0
  %v1793 = vmax.f32 %v1777, 0.0
  %v1794 = vmax.f32 %v1778, 0.0
  %v1795 = vmax.f32 %v1779, 0.0
  %v1796 = vmax.f32 %v1780, 0.0
  %v1797 = vmax.f32 %v1781, 0.0
  %v1798 = vmax.f32 %v1782, 0.0
  %v1799 = vmax.f32 %v1783, 0.0
  %v1800 = vmax.f32 %v1784, 0.0
  %v1801 = vmax.f32 %v1785, 0.0
  %v1802 = vmax.f32 %v1786, 0.0
  %v1803 = vmax.f32 %v1787, 0.0
  %v1804 = vmax.f32 %v1788, 0.0
  %v1805 = vmax.f32 %v1789, 0.0
  %1806 = vrot.lane.b32.xlu0 %v1790, 127
  %v1807 = vpop.permute.xlu0 %1806
  %1808 = vrot.lane.b32.xlu0 %v1794, 127
  %v1809 = vpop.permute.xlu0 %1808
  %1810 = vrot.lane.b32.xlu0 %v1798, 127
  %v1811 = vpop.permute.xlu0 %1810
  %1812 = vrot.lane.b32.xlu0 %v1802, 127
  %v1813 = vpop.permute.xlu0 %1812
  %1814 = vrot.lane.b32.xlu0 %v1791, 127
  %v1815 = vpop.permute.xlu0 %1814
  %1816 = vrot.lane.b32.xlu0 %v1795, 127
  %v1817 = vpop.permute.xlu0 %1816
  %1818 = vrot.lane.b32.xlu0 %v1799, 127
  %v1819 = vpop.permute.xlu0 %1818
  %1820 = vrot.lane.b32.xlu0 %v1803, 127
  %v1821 = vpop.permute.xlu0 %1820
  %1822 = vrot.lane.b32.xlu0 %v1792, 127
  %v1823 = vpop.permute.xlu0 %1822
  %1824 = vrot.lane.b32.xlu0 %v1796, 127
  %v1825 = vpop.permute.xlu0 %1824
  %1826 = vrot.lane.b32.xlu0 %v1800, 127
  %v1827 = vpop.permute.xlu0 %1826
  %1828 = vrot.lane.b32.xlu0 %v1804, 127
  %v1829 = vpop.permute.xlu0 %1828
  %1830 = vrot.lane.b32.xlu0 %v1793, 127
  %v1831 = vpop.permute.xlu0 %1830
  %1832 = vrot.lane.b32.xlu0 %v1797, 127
  %v1833 = vpop.permute.xlu0 %1832
  %1834 = vrot.lane.b32.xlu0 %v1801, 127
  %v1835 = vpop.permute.xlu0 %1834
  %1836 = vrot.lane.b32.xlu0 %v1805, 127
  %v1837 = vpop.permute.xlu0 %1836
  %v1838 = vsel %vm890, %v1823, %v1831
  %v1839 = vsel %vm890, %v1825, %v1833
  %v1840 = vsel %vm890, %v1827, %v1835
  %v1841 = vsel %vm890, %v1829, %v1837
  %v1842 = vsel %vm890, %v1815, %v1823
  %v1843 = vsel %vm890, %v1817, %v1825
  %v1844 = vsel %vm890, %v1819, %v1827
  %v1845 = vsel %vm890, %v1821, %v1829
  %v1846 = vsel %vm890, %v1807, %v1815
  %v1847 = vsel %vm890, %v1809, %v1817
  %v1848 = vsel %vm890, %v1811, %v1819
  %v1849 = vsel %vm890, %v1813, %v1821
  %v1850 = vsel %vm890, %v1831, %v1807
  %v1851 = vsel %vm890, %v1833, %v1809
  %v1852 = vsel %vm890, %v1835, %v1811
  %v1853 = vsel %vm890, %v1837, %v1813
  %v1854 = vsub.f32 %v1846, %v1790
  %v1855 = vsub.f32 %v1842, %v1791
  %v1856 = vsub.f32 %v1838, %v1792
  %v1857 = vsub.f32 %v1850, %v1793
  %v1858 = vsub.f32 %v1847, %v1794
  %v1859 = vsub.f32 %v1843, %v1795
  %v1860 = vsub.f32 %v1839, %v1796
  %v1861 = vsub.f32 %v1851, %v1797
  %v1862 = vsub.f32 %v1848, %v1798
  %v1863 = vsub.f32 %v1844, %v1799
  %v1864 = vsub.f32 %v1840, %v1800
  %v1865 = vsub.f32 %v1852, %v1801
  %v1866 = vsub.f32 %v1849, %v1802
  %v1867 = vsub.f32 %v1845, %v1803
  %v1868 = vsub.f32 %v1841, %v1804
  %v1869 = vsub.f32 %v1853, %v1805
  %v1871 = vlaneseq
  %v1872 = vshrl.u32 %v1871, 7
  %v1873 = vsub.s32 0, %v1872
  %v1874 = vrot.slane %v47, %v1873
  %v1875 = vlaneseq
  %v1876 = vshrl.u32 %v1875, 7
  %v1877 = vsub.s32 1, %v1876
  %v1878 = vrot.slane %v47, %v1877
  %v1879 = vlaneseq
  %v1880 = vshrl.u32 %v1879, 7
  %v1881 = vsub.s32 2, %v1880
  %v1882 = vrot.slane %v47, %v1881
  %v1883 = vlaneseq
  %v1884 = vshrl.u32 %v1883, 7
  %v1885 = vsub.s32 3, %v1884
  %v1886 = vrot.slane %v47, %v1885
  %v1891 = vmul.f32 %v1874, %v1854
  %v1892 = vmul.f32 %v1878, %v1855
  %v1893 = vmul.f32 %v1882, %v1856
  %v1894 = vmul.f32 %v1886, %v1857
  %v1895 = vmul.f32 %v1874, %v1858
  %v1896 = vmul.f32 %v1878, %v1859
  %v1897 = vmul.f32 %v1882, %v1860
  %v1898 = vmul.f32 %v1886, %v1861
  %v1899 = vmul.f32 %v1874, %v1862
  %v1900 = vmul.f32 %v1878, %v1863
  %v1901 = vmul.f32 %v1882, %v1864
  %v1902 = vmul.f32 %v1886, %v1865
  %v1903 = vmul.f32 %v1874, %v1866
  %v1904 = vmul.f32 %v1878, %v1867
  %v1905 = vmul.f32 %v1882, %v1868
  %v1906 = vmul.f32 %v1886, %v1869
  %v1907 = vadd.f32 %v1790, %v1891
  %v1908 = vadd.f32 %v1791, %v1892
  %v1909 = vadd.f32 %v1792, %v1893
  %v1910 = vadd.f32 %v1793, %v1894
  %v1911 = vadd.f32 %v1794, %v1895
  %v1912 = vadd.f32 %v1795, %v1896
  %v1913 = vadd.f32 %v1796, %v1897
  %v1914 = vadd.f32 %v1797, %v1898
  %v1915 = vadd.f32 %v1798, %v1899
  %v1916 = vadd.f32 %v1799, %v1900
  %v1917 = vadd.f32 %v1800, %v1901
  %v1918 = vadd.f32 %v1801, %v1902
  %v1919 = vadd.f32 %v1802, %v1903
  %v1920 = vadd.f32 %v1803, %v1904
  %v1921 = vadd.f32 %v1804, %v1905
  %v1922 = vadd.f32 %v1805, %v1906
  %1923 = vrot.lane.b32.xlu0 %v1790, 1
  %v1924 = vpop.permute.xlu0 %1923
  %1925 = vrot.lane.b32.xlu0 %v1794, 1
  %v1926 = vpop.permute.xlu0 %1925
  %1927 = vrot.lane.b32.xlu0 %v1798, 1
  %v1928 = vpop.permute.xlu0 %1927
  %1929 = vrot.lane.b32.xlu0 %v1802, 1
  %v1930 = vpop.permute.xlu0 %1929
  %1931 = vrot.lane.b32.xlu0 %v1791, 1
  %v1932 = vpop.permute.xlu0 %1931
  %1933 = vrot.lane.b32.xlu0 %v1795, 1
  %v1934 = vpop.permute.xlu0 %1933
  %1935 = vrot.lane.b32.xlu0 %v1799, 1
  %v1936 = vpop.permute.xlu0 %1935
  %1937 = vrot.lane.b32.xlu0 %v1803, 1
  %v1938 = vpop.permute.xlu0 %1937
  %1939 = vrot.lane.b32.xlu0 %v1792, 1
  %v1940 = vpop.permute.xlu0 %1939
  %1941 = vrot.lane.b32.xlu0 %v1796, 1
  %v1942 = vpop.permute.xlu0 %1941
  %1943 = vrot.lane.b32.xlu0 %v1800, 1
  %v1944 = vpop.permute.xlu0 %1943
  %1945 = vrot.lane.b32.xlu0 %v1804, 1
  %v1946 = vpop.permute.xlu0 %1945
  %1947 = vrot.lane.b32.xlu0 %v1793, 1
  %v1948 = vpop.permute.xlu0 %1947
  %1949 = vrot.lane.b32.xlu0 %v1797, 1
  %v1950 = vpop.permute.xlu0 %1949
  %1951 = vrot.lane.b32.xlu0 %v1801, 1
  %v1952 = vpop.permute.xlu0 %1951
  %1953 = vrot.lane.b32.xlu0 %v1805, 1
  %v1954 = vpop.permute.xlu0 %1953
  %v1955 = vsel %vm571, %v1940, %v1948
  %v1956 = vsel %vm571, %v1942, %v1950
  %v1957 = vsel %vm571, %v1944, %v1952
  %v1958 = vsel %vm571, %v1946, %v1954
  %v1959 = vsel %vm571, %v1932, %v1940
  %v1960 = vsel %vm571, %v1934, %v1942
  %v1961 = vsel %vm571, %v1936, %v1944
  %v1962 = vsel %vm571, %v1938, %v1946
  %v1963 = vsel %vm571, %v1924, %v1932
  %v1964 = vsel %vm571, %v1926, %v1934
  %v1965 = vsel %vm571, %v1928, %v1936
  %v1966 = vsel %vm571, %v1930, %v1938
  %v1967 = vsel %vm571, %v1948, %v1924
  %v1968 = vsel %vm571, %v1950, %v1926
  %v1969 = vsel %vm571, %v1952, %v1928
  %v1970 = vsel %vm571, %v1954, %v1930
  %v1971 = vsub.f32 %v1967, %v1790
  %v1972 = vsub.f32 %v1963, %v1791
  %v1973 = vsub.f32 %v1959, %v1792
  %v1974 = vsub.f32 %v1955, %v1793
  %v1975 = vsub.f32 %v1968, %v1794
  %v1976 = vsub.f32 %v1964, %v1795
  %v1977 = vsub.f32 %v1960, %v1796
  %v1978 = vsub.f32 %v1956, %v1797
  %v1979 = vsub.f32 %v1969, %v1798
  %v1980 = vsub.f32 %v1965, %v1799
  %v1981 = vsub.f32 %v1961, %v1800
  %v1982 = vsub.f32 %v1957, %v1801
  %v1983 = vsub.f32 %v1970, %v1802
  %v1984 = vsub.f32 %v1966, %v1803
  %v1985 = vsub.f32 %v1962, %v1804
  %v1986 = vsub.f32 %v1958, %v1805
  %v1988 = vlaneseq
  %v1989 = vshrl.u32 %v1988, 7
  %v1990 = vsub.s32 0, %v1989
  %v1991 = vrot.slane %v48, %v1990
  %v1992 = vlaneseq
  %v1993 = vshrl.u32 %v1992, 7
  %v1994 = vsub.s32 1, %v1993
  %v1995 = vrot.slane %v48, %v1994
  %v1996 = vlaneseq
  %v1997 = vshrl.u32 %v1996, 7
  %v1998 = vsub.s32 2, %v1997
  %v1999 = vrot.slane %v48, %v1998
  %v2000 = vlaneseq
  %v2001 = vshrl.u32 %v2000, 7
  %v2002 = vsub.s32 3, %v2001
  %v2003 = vrot.slane %v48, %v2002
  %v2008 = vmul.f32 %v1991, %v1971
  %v2009 = vmul.f32 %v1995, %v1972
  %v2010 = vmul.f32 %v1999, %v1973
  %v2011 = vmul.f32 %v2003, %v1974
  %v2012 = vmul.f32 %v1991, %v1975
  %v2013 = vmul.f32 %v1995, %v1976
  %v2014 = vmul.f32 %v1999, %v1977
  %v2015 = vmul.f32 %v2003, %v1978
  %v2016 = vmul.f32 %v1991, %v1979
  %v2017 = vmul.f32 %v1995, %v1980
  %v2018 = vmul.f32 %v1999, %v1981
  %v2019 = vmul.f32 %v2003, %v1982
  %v2020 = vmul.f32 %v1991, %v1983
  %v2021 = vmul.f32 %v1995, %v1984
  %v2022 = vmul.f32 %v1999, %v1985
  %v2023 = vmul.f32 %v2003, %v1986
  %v2024 = vadd.f32 %v1907, %v2008
  %v2025 = vadd.f32 %v1908, %v2009
  %v2026 = vadd.f32 %v1909, %v2010
  %v2027 = vadd.f32 %v1910, %v2011
  %v2028 = vadd.f32 %v1911, %v2012
  %v2029 = vadd.f32 %v1912, %v2013
  %v2030 = vadd.f32 %v1913, %v2014
  %v2031 = vadd.f32 %v1914, %v2015
  %v2032 = vadd.f32 %v1915, %v2016
  %v2033 = vadd.f32 %v1916, %v2017
  %v2034 = vadd.f32 %v1917, %v2018
  %v2035 = vadd.f32 %v1918, %v2019
  %v2036 = vadd.f32 %v1919, %v2020
  %v2037 = vadd.f32 %v1920, %v2021
  %v2038 = vadd.f32 %v1921, %v2022
  %v2039 = vadd.f32 %v1922, %v2023
  %2040 = vrot.lane.b32.xlu0 %v2024, 112
  %v2041 = vpop.permute.xlu0 %2040
  %2042 = vrot.lane.b32.xlu0 %v2028, 112
  %v2043 = vpop.permute.xlu0 %2042
  %2044 = vrot.lane.b32.xlu0 %v2032, 112
  %v2045 = vpop.permute.xlu0 %2044
  %2046 = vrot.lane.b32.xlu0 %v2036, 112
  %v2047 = vpop.permute.xlu0 %2046
  %2048 = vrot.lane.b32.xlu0 %v2025, 112
  %v2049 = vpop.permute.xlu0 %2048
  %2050 = vrot.lane.b32.xlu0 %v2029, 112
  %v2051 = vpop.permute.xlu0 %2050
  %2052 = vrot.lane.b32.xlu0 %v2033, 112
  %v2053 = vpop.permute.xlu0 %2052
  %2054 = vrot.lane.b32.xlu0 %v2037, 112
  %v2055 = vpop.permute.xlu0 %2054
  %2056 = vrot.lane.b32.xlu0 %v2026, 112
  %v2057 = vpop.permute.xlu0 %2056
  %2058 = vrot.lane.b32.xlu0 %v2030, 112
  %v2059 = vpop.permute.xlu0 %2058
  %2060 = vrot.lane.b32.xlu0 %v2034, 112
  %v2061 = vpop.permute.xlu0 %2060
  %2062 = vrot.lane.b32.xlu0 %v2038, 112
  %v2063 = vpop.permute.xlu0 %2062
  %2064 = vrot.lane.b32.xlu0 %v2027, 112
  %v2065 = vpop.permute.xlu0 %2064
  %2066 = vrot.lane.b32.xlu0 %v2031, 112
  %v2067 = vpop.permute.xlu0 %2066
  %2068 = vrot.lane.b32.xlu0 %v2035, 112
  %v2069 = vpop.permute.xlu0 %2068
  %2070 = vrot.lane.b32.xlu0 %v2039, 112
  %v2071 = vpop.permute.xlu0 %2070
  %v2072 = vsel %vm1234, %v2057, %v2065
  %v2073 = vsel %vm1234, %v2059, %v2067
  %v2074 = vsel %vm1234, %v2061, %v2069
  %v2075 = vsel %vm1234, %v2063, %v2071
  %v2076 = vsel %vm1234, %v2049, %v2057
  %v2077 = vsel %vm1234, %v2051, %v2059
  %v2078 = vsel %vm1234, %v2053, %v2061
  %v2079 = vsel %vm1234, %v2055, %v2063
  %v2080 = vsel %vm1234, %v2041, %v2049
  %v2081 = vsel %vm1234, %v2043, %v2051
  %v2082 = vsel %vm1234, %v2045, %v2053
  %v2083 = vsel %vm1234, %v2047, %v2055
  %v2084 = vsel %vm1234, %v2065, %v2041
  %v2085 = vsel %vm1234, %v2067, %v2043
  %v2086 = vsel %vm1234, %v2069, %v2045
  %v2087 = vsel %vm1234, %v2071, %v2047
  %v2088 = vsub.f32 %v2080, %v2024
  %v2089 = vsub.f32 %v2076, %v2025
  %v2090 = vsub.f32 %v2072, %v2026
  %v2091 = vsub.f32 %v2084, %v2027
  %v2092 = vsub.f32 %v2081, %v2028
  %v2093 = vsub.f32 %v2077, %v2029
  %v2094 = vsub.f32 %v2073, %v2030
  %v2095 = vsub.f32 %v2085, %v2031
  %v2096 = vsub.f32 %v2082, %v2032
  %v2097 = vsub.f32 %v2078, %v2033
  %v2098 = vsub.f32 %v2074, %v2034
  %v2099 = vsub.f32 %v2086, %v2035
  %v2100 = vsub.f32 %v2083, %v2036
  %v2101 = vsub.f32 %v2079, %v2037
  %v2102 = vsub.f32 %v2075, %v2038
  %v2103 = vsub.f32 %v2087, %v2039
  %v2105 = vlaneseq
  %v2106 = vshrl.u32 %v2105, 7
  %v2107 = vsub.s32 0, %v2106
  %v2108 = vrot.slane %v45, %v2107
  %v2109 = vlaneseq
  %v2110 = vshrl.u32 %v2109, 7
  %v2111 = vsub.s32 1, %v2110
  %v2112 = vrot.slane %v45, %v2111
  %v2113 = vlaneseq
  %v2114 = vshrl.u32 %v2113, 7
  %v2115 = vsub.s32 2, %v2114
  %v2116 = vrot.slane %v45, %v2115
  %v2117 = vlaneseq
  %v2118 = vshrl.u32 %v2117, 7
  %v2119 = vsub.s32 3, %v2118
  %v2120 = vrot.slane %v45, %v2119
  %v2125 = vmul.f32 %v2108, %v2088
  %v2126 = vmul.f32 %v2112, %v2089
  %v2127 = vmul.f32 %v2116, %v2090
  %v2128 = vmul.f32 %v2120, %v2091
  %v2129 = vmul.f32 %v2108, %v2092
  %v2130 = vmul.f32 %v2112, %v2093
  %v2131 = vmul.f32 %v2116, %v2094
  %v2132 = vmul.f32 %v2120, %v2095
  %v2133 = vmul.f32 %v2108, %v2096
  %v2134 = vmul.f32 %v2112, %v2097
  %v2135 = vmul.f32 %v2116, %v2098
  %v2136 = vmul.f32 %v2120, %v2099
  %v2137 = vmul.f32 %v2108, %v2100
  %v2138 = vmul.f32 %v2112, %v2101
  %v2139 = vmul.f32 %v2116, %v2102
  %v2140 = vmul.f32 %v2120, %v2103
  %v2141 = vadd.f32 %v2024, %v2125
  %v2142 = vadd.f32 %v2025, %v2126
  %v2143 = vadd.f32 %v2026, %v2127
  %v2144 = vadd.f32 %v2027, %v2128
  %v2145 = vadd.f32 %v2028, %v2129
  %v2146 = vadd.f32 %v2029, %v2130
  %v2147 = vadd.f32 %v2030, %v2131
  %v2148 = vadd.f32 %v2031, %v2132
  %v2149 = vadd.f32 %v2032, %v2133
  %v2150 = vadd.f32 %v2033, %v2134
  %v2151 = vadd.f32 %v2034, %v2135
  %v2152 = vadd.f32 %v2035, %v2136
  %v2153 = vadd.f32 %v2036, %v2137
  %v2154 = vadd.f32 %v2037, %v2138
  %v2155 = vadd.f32 %v2038, %v2139
  %v2156 = vadd.f32 %v2039, %v2140
  %2157 = vrot.lane.b32.xlu0 %v2024, 16
  %v2158 = vpop.permute.xlu0 %2157
  %2159 = vrot.lane.b32.xlu0 %v2028, 16
  %v2160 = vpop.permute.xlu0 %2159
  %2161 = vrot.lane.b32.xlu0 %v2032, 16
  %v2162 = vpop.permute.xlu0 %2161
  %2163 = vrot.lane.b32.xlu0 %v2036, 16
  %v2164 = vpop.permute.xlu0 %2163
  %2165 = vrot.lane.b32.xlu0 %v2025, 16
  %v2166 = vpop.permute.xlu0 %2165
  %2167 = vrot.lane.b32.xlu0 %v2029, 16
  %v2168 = vpop.permute.xlu0 %2167
  %2169 = vrot.lane.b32.xlu0 %v2033, 16
  %v2170 = vpop.permute.xlu0 %2169
  %2171 = vrot.lane.b32.xlu0 %v2037, 16
  %v2172 = vpop.permute.xlu0 %2171
  %2173 = vrot.lane.b32.xlu0 %v2026, 16
  %v2174 = vpop.permute.xlu0 %2173
  %2175 = vrot.lane.b32.xlu0 %v2030, 16
  %v2176 = vpop.permute.xlu0 %2175
  %2177 = vrot.lane.b32.xlu0 %v2034, 16
  %v2178 = vpop.permute.xlu0 %2177
  %2179 = vrot.lane.b32.xlu0 %v2038, 16
  %v2180 = vpop.permute.xlu0 %2179
  %2181 = vrot.lane.b32.xlu0 %v2027, 16
  %v2182 = vpop.permute.xlu0 %2181
  %2183 = vrot.lane.b32.xlu0 %v2031, 16
  %v2184 = vpop.permute.xlu0 %2183
  %2185 = vrot.lane.b32.xlu0 %v2035, 16
  %v2186 = vpop.permute.xlu0 %2185
  %2187 = vrot.lane.b32.xlu0 %v2039, 16
  %v2188 = vpop.permute.xlu0 %2187
  %v2189 = vsel %vm120, %v2174, %v2182
  %v2190 = vsel %vm120, %v2176, %v2184
  %v2191 = vsel %vm120, %v2178, %v2186
  %v2192 = vsel %vm120, %v2180, %v2188
  %v2193 = vsel %vm120, %v2166, %v2174
  %v2194 = vsel %vm120, %v2168, %v2176
  %v2195 = vsel %vm120, %v2170, %v2178
  %v2196 = vsel %vm120, %v2172, %v2180
  %v2197 = vsel %vm120, %v2158, %v2166
  %v2198 = vsel %vm120, %v2160, %v2168
  %v2199 = vsel %vm120, %v2162, %v2170
  %v2200 = vsel %vm120, %v2164, %v2172
  %v2201 = vsel %vm120, %v2182, %v2158
  %v2202 = vsel %vm120, %v2184, %v2160
  %v2203 = vsel %vm120, %v2186, %v2162
  %v2204 = vsel %vm120, %v2188, %v2164
  %v2205 = vsub.f32 %v2201, %v2024
  %v2206 = vsub.f32 %v2197, %v2025
  %v2207 = vsub.f32 %v2193, %v2026
  %v2208 = vsub.f32 %v2189, %v2027
  %v2209 = vsub.f32 %v2202, %v2028
  %v2210 = vsub.f32 %v2198, %v2029
  %v2211 = vsub.f32 %v2194, %v2030
  %v2212 = vsub.f32 %v2190, %v2031
  %v2213 = vsub.f32 %v2203, %v2032
  %v2214 = vsub.f32 %v2199, %v2033
  %v2215 = vsub.f32 %v2195, %v2034
  %v2216 = vsub.f32 %v2191, %v2035
  %v2217 = vsub.f32 %v2204, %v2036
  %v2218 = vsub.f32 %v2200, %v2037
  %v2219 = vsub.f32 %v2196, %v2038
  %v2220 = vsub.f32 %v2192, %v2039
  %v2222 = vlaneseq
  %v2223 = vshrl.u32 %v2222, 7
  %v2224 = vsub.s32 0, %v2223
  %v2225 = vrot.slane %v46, %v2224
  %v2226 = vlaneseq
  %v2227 = vshrl.u32 %v2226, 7
  %v2228 = vsub.s32 1, %v2227
  %v2229 = vrot.slane %v46, %v2228
  %v2230 = vlaneseq
  %v2231 = vshrl.u32 %v2230, 7
  %v2232 = vsub.s32 2, %v2231
  %v2233 = vrot.slane %v46, %v2232
  %v2234 = vlaneseq
  %v2235 = vshrl.u32 %v2234, 7
  %v2236 = vsub.s32 3, %v2235
  %v2237 = vrot.slane %v46, %v2236
  %v2242 = vmul.f32 %v2225, %v2205
  %v2243 = vmul.f32 %v2229, %v2206
  %v2244 = vmul.f32 %v2233, %v2207
  %v2245 = vmul.f32 %v2237, %v2208
  %v2246 = vmul.f32 %v2225, %v2209
  %v2247 = vmul.f32 %v2229, %v2210
  %v2248 = vmul.f32 %v2233, %v2211
  %v2249 = vmul.f32 %v2237, %v2212
  %v2250 = vmul.f32 %v2225, %v2213
  %v2251 = vmul.f32 %v2229, %v2214
  %v2252 = vmul.f32 %v2233, %v2215
  %v2253 = vmul.f32 %v2237, %v2216
  %v2254 = vmul.f32 %v2225, %v2217
  %v2255 = vmul.f32 %v2229, %v2218
  %v2256 = vmul.f32 %v2233, %v2219
  %v2257 = vmul.f32 %v2237, %v2220
  %v2258 = vadd.f32 %v2141, %v2242
  %v2259 = vadd.f32 %v2142, %v2243
  %v2260 = vadd.f32 %v2143, %v2244
  %v2261 = vadd.f32 %v2144, %v2245
  %v2262 = vadd.f32 %v2145, %v2246
  %v2263 = vadd.f32 %v2146, %v2247
  %v2264 = vadd.f32 %v2147, %v2248
  %v2265 = vadd.f32 %v2148, %v2249
  %v2266 = vadd.f32 %v2149, %v2250
  %v2267 = vadd.f32 %v2150, %v2251
  %v2268 = vadd.f32 %v2151, %v2252
  %v2269 = vadd.f32 %v2152, %v2253
  %v2270 = vadd.f32 %v2153, %v2254
  %v2271 = vadd.f32 %v2154, %v2255
  %v2272 = vadd.f32 %v2155, %v2256
  %v2273 = vadd.f32 %v2156, %v2257
  %v2274 = vld [vmem:[%s4] sm:$0xf]
  %v2275 = vld [vmem:[%s4 + $0x4] sm:$0xf]
  %v2276 = vld [vmem:[%s4 + $0x8] sm:$0xf]
  %v2277 = vld [vmem:[%s4 + $0xc] sm:$0xf]
  %2278 = vrot.lane.b32.xlu0 %v2258, 17
  %v2279 = vpop.permute.xlu0 %2278
  %2280 = vrot.lane.b32.xlu0 %v2262, 17
  %v2281 = vpop.permute.xlu0 %2280
  %2282 = vrot.lane.b32.xlu0 %v2266, 17
  %v2283 = vpop.permute.xlu0 %2282
  %2284 = vrot.lane.b32.xlu0 %v2270, 17
  %v2285 = vpop.permute.xlu0 %2284
  %2286 = vrot.lane.b32.xlu0 %v2259, 17
  %v2287 = vpop.permute.xlu0 %2286
  %2288 = vrot.lane.b32.xlu0 %v2263, 17
  %v2289 = vpop.permute.xlu0 %2288
  %2290 = vrot.lane.b32.xlu0 %v2267, 17
  %v2291 = vpop.permute.xlu0 %2290
  %2292 = vrot.lane.b32.xlu0 %v2271, 17
  %v2293 = vpop.permute.xlu0 %2292
  %2294 = vrot.lane.b32.xlu0 %v2260, 17
  %v2295 = vpop.permute.xlu0 %2294
  %2296 = vrot.lane.b32.xlu0 %v2264, 17
  %v2297 = vpop.permute.xlu0 %2296
  %2298 = vrot.lane.b32.xlu0 %v2268, 17
  %v2299 = vpop.permute.xlu0 %2298
  %2300 = vrot.lane.b32.xlu0 %v2272, 17
  %v2301 = vpop.permute.xlu0 %2300
  %2302 = vrot.lane.b32.xlu0 %v2261, 17
  %v2303 = vpop.permute.xlu0 %2302
  %2304 = vrot.lane.b32.xlu0 %v2265, 17
  %v2305 = vpop.permute.xlu0 %2304
  %2306 = vrot.lane.b32.xlu0 %v2269, 17
  %v2307 = vpop.permute.xlu0 %2306
  %2308 = vrot.lane.b32.xlu0 %v2273, 17
  %v2309 = vpop.permute.xlu0 %2308
  %v2310 = vsel %vm86, %v2295, %v2303
  %v2311 = vsel %vm86, %v2297, %v2305
  %v2312 = vsel %vm86, %v2299, %v2307
  %v2313 = vsel %vm86, %v2301, %v2309
  %v2314 = vsel %vm86, %v2287, %v2295
  %v2315 = vsel %vm86, %v2289, %v2297
  %v2316 = vsel %vm86, %v2291, %v2299
  %v2317 = vsel %vm86, %v2293, %v2301
  %v2318 = vsel %vm86, %v2279, %v2287
  %v2319 = vsel %vm86, %v2281, %v2289
  %v2320 = vsel %vm86, %v2283, %v2291
  %v2321 = vsel %vm86, %v2285, %v2293
  %v2322 = vsel %vm86, %v2303, %v2279
  %v2323 = vsel %vm86, %v2305, %v2281
  %v2324 = vsel %vm86, %v2307, %v2283
  %v2325 = vsel %vm86, %v2309, %v2285
  %v2326 = vpack.c.bf16 %v2323, %v2322
  %v2327 = vpack.c.bf16 %v2319, %v2318
  %v2328 = vpack.c.bf16 %v2315, %v2314
  %v2329 = vpack.c.bf16 %v2311, %v2310
  %v2330 = vpack.c.bf16 %v2325, %v2324
  %v2331 = vpack.c.bf16 %v2321, %v2320
  %v2332 = vpack.c.bf16 %v2317, %v2316
  %v2333 = vpack.c.bf16 %v2313, %v2312
  %s2334 = scalar_lea.vmem %s4, 16
  %v2335 = vld [vmem:[%s2334] sm:$0xf]
  %v2336 = vld [vmem:[%s2334 + $0x4] sm:$0xf]
  %v2337 = vld [vmem:[%s2334 + $0x8] sm:$0xf]
  %v2338 = vld [vmem:[%s2334 + $0xc] sm:$0xf]
  %2339 = vrot.lane.b32.xlu0 %v2258, 16
  %v2340 = vpop.permute.xlu0 %2339
  %2341 = vrot.lane.b32.xlu0 %v2262, 16
  %v2342 = vpop.permute.xlu0 %2341
  %2343 = vrot.lane.b32.xlu0 %v2266, 16
  %v2344 = vpop.permute.xlu0 %2343
  %2345 = vrot.lane.b32.xlu0 %v2270, 16
  %v2346 = vpop.permute.xlu0 %2345
  %2347 = vrot.lane.b32.xlu0 %v2259, 16
  %v2348 = vpop.permute.xlu0 %2347
  %2349 = vrot.lane.b32.xlu0 %v2263, 16
  %v2350 = vpop.permute.xlu0 %2349
  %2351 = vrot.lane.b32.xlu0 %v2267, 16
  %v2352 = vpop.permute.xlu0 %2351
  %2353 = vrot.lane.b32.xlu0 %v2271, 16
  %v2354 = vpop.permute.xlu0 %2353
  %2355 = vrot.lane.b32.xlu0 %v2260, 16
  %v2356 = vpop.permute.xlu0 %2355
  %2357 = vrot.lane.b32.xlu0 %v2264, 16
  %v2358 = vpop.permute.xlu0 %2357
  %2359 = vrot.lane.b32.xlu0 %v2268, 16
  %v2360 = vpop.permute.xlu0 %2359
  %2361 = vrot.lane.b32.xlu0 %v2272, 16
  %v2362 = vpop.permute.xlu0 %2361
  %2363 = vrot.lane.b32.xlu0 %v2261, 16
  %v2364 = vpop.permute.xlu0 %2363
  %2365 = vrot.lane.b32.xlu0 %v2265, 16
  %v2366 = vpop.permute.xlu0 %2365
  %2367 = vrot.lane.b32.xlu0 %v2269, 16
  %v2368 = vpop.permute.xlu0 %2367
  %2369 = vrot.lane.b32.xlu0 %v2273, 16
  %v2370 = vpop.permute.xlu0 %2369
  %v2371 = vsel %vm120, %v2356, %v2364
  %v2372 = vsel %vm120, %v2358, %v2366
  %v2373 = vsel %vm120, %v2360, %v2368
  %v2374 = vsel %vm120, %v2362, %v2370
  %v2375 = vsel %vm120, %v2348, %v2356
  %v2376 = vsel %vm120, %v2350, %v2358
  %v2377 = vsel %vm120, %v2352, %v2360
  %v2378 = vsel %vm120, %v2354, %v2362
  %v2379 = vsel %vm120, %v2340, %v2348
  %v2380 = vsel %vm120, %v2342, %v2350
  %v2381 = vsel %vm120, %v2344, %v2352
  %v2382 = vsel %vm120, %v2346, %v2354
  %v2383 = vsel %vm120, %v2364, %v2340
  %v2384 = vsel %vm120, %v2366, %v2342
  %v2385 = vsel %vm120, %v2368, %v2344
  %v2386 = vsel %vm120, %v2370, %v2346
  %v2387 = vpack.c.bf16 %v2384, %v2383
  %v2388 = vpack.c.bf16 %v2380, %v2379
  %v2389 = vpack.c.bf16 %v2376, %v2375
  %v2390 = vpack.c.bf16 %v2372, %v2371
  %v2391 = vpack.c.bf16 %v2386, %v2385
  %v2392 = vpack.c.bf16 %v2382, %v2381
  %v2393 = vpack.c.bf16 %v2378, %v2377
  %v2394 = vpack.c.bf16 %v2374, %v2373
  %v2399 = vunpack.c.l.b16 %v2335
  %v2400 = vunpack.c.l.b16 %v2336
  %v2401 = vunpack.c.l.b16 %v2337
  %v2402 = vunpack.c.l.b16 %v2338
  %v2403 = vpack.c.b16 %v2400, %v2399
  %v2404 = vpack.c.b16 %v2402, %v2401
  %vm2405 = vcmask 261120
  %v2407 = vsel %vm2405, %v2403, 0
  %v2410 = vsel %vm2405, %v2404, 0
  %2412 = vmatprep.subr.bf16.mxu0 %v2388
  %2413 = vmatpush1.bf16.msra.mxu0 %v2387
  %2414 = vmatprep.subr.bf16.mxu0 %v2392
  %2415 = vmatpush1.bf16.msra.mxu0 %v2391
  %2416 = vmatprep.subr.bf16.mxu0 0
  %2417 = vmatpush1.bf16.msra.mxu0 0
  %2418 = vmatprep.subr.bf16.mxu0 0
  %2419 = vmatpush1.bf16.msra.mxu0 0
  %2420 = vmatprep.subr.bf16.mxu0 0
  %2421 = vmatpush1.bf16.msra.mxu0 0
  %2422 = vmatprep.subr.bf16.mxu0 0
  %2423 = vmatpush1.bf16.msra.mxu0 0
  %2424 = vmatprep.subr.bf16.mxu0 0
  %2425 = vmatpush1.bf16.msra.mxu0 0
  %2426 = vmatprep.subr.bf16.mxu0 0
  %2427 = vmatpush1.bf16.msra.mxu0 0
  %2428 = vmatprep.subr.bf16.mxu0 0
  %2429 = vmatpush1.bf16.msra.mxu0 0
  %2430 = vmatprep.subr.bf16.mxu0 0
  %2431 = vmatpush1.bf16.msra.mxu0 0
  %2432 = vmatprep.subr.bf16.mxu0 0
  %2433 = vmatpush1.bf16.msra.mxu0 0
  %2434 = vmatprep.subr.bf16.mxu0 0
  %2435 = vmatpush1.bf16.msra.mxu0 0
  %2436 = vmatprep.subr.bf16.mxu0 0
  %2437 = vmatpush1.bf16.msra.mxu0 0
  %2438 = vmatprep.subr.bf16.mxu0 0
  %2439 = vmatpush1.bf16.msra.mxu0 0
  %2440 = vmatprep.subr.bf16.mxu0 0
  %2441 = vmatpush1.bf16.msra.mxu0 0
  %2442 = vmatprep.subr.bf16.mxu0 0
  %2443 = vmatpush1.bf16.msra.mxu0 0
  %2444 = vmatprep.mubr.bf16.mxu0 0
  %2445 = vmatmul.mubr.bf16.gmra.mrb[0].mxu0 %v2407
  %v2446 = vpop.f32.mrb[0].mxu0
  %v2447 = vadd.f32 0.0, %v2446
  %v2448 = vpop.f32.mrb[0].mxu0
  %v2449 = vadd.f32 0.0, %v2448
  %v2450 = vpop.f32.mrb[0].mxu0
  %v2451 = vadd.f32 0.0, %v2450
  %v2452 = vpop.f32.mrb[0].mxu0
  %v2453 = vadd.f32 0.0, %v2452
  %2454 = vmatprep.mubr.bf16.mxu0 0
  %2455 = vmatmul.mubr.bf16.gmra.mrb[0].mxu0 %v2410
  %v2456 = vpop.f32.mrb[0].mxu0
  %v2457 = vadd.f32 0.0, %v2456
  %v2458 = vpop.f32.mrb[0].mxu0
  %v2459 = vadd.f32 0.0, %v2458
  %v2460 = vpop.f32.mrb[0].mxu0
  %v2461 = vadd.f32 0.0, %v2460
  %v2462 = vpop.f32.mrb[0].mxu0
  %v2463 = vadd.f32 0.0, %v2462
  %2464 = vdwg.mxu0
  %2465 = vmatprep.subr.bf16.mxu0 %v2390
  %2466 = vmatpush1.bf16.msra.mxu0 %v2389
  %2467 = vmatprep.subr.bf16.mxu0 %v2394
  %2468 = vmatpush1.bf16.msra.mxu0 %v2393
  %2469 = vmatprep.subr.bf16.mxu0 0
  %2470 = vmatpush1.bf16.msra.mxu0 0
  %2471 = vmatprep.subr.bf16.mxu0 0
  %2472 = vmatpush1.bf16.msra.mxu0 0
  %2473 = vmatprep.subr.bf16.mxu0 0
  %2474 = vmatpush1.bf16.msra.mxu0 0
  %2475 = vmatprep.subr.bf16.mxu0 0
  %2476 = vmatpush1.bf16.msra.mxu0 0
  %2477 = vmatprep.subr.bf16.mxu0 0
  %2478 = vmatpush1.bf16.msra.mxu0 0
  %2479 = vmatprep.subr.bf16.mxu0 0
  %2480 = vmatpush1.bf16.msra.mxu0 0
  %2481 = vmatprep.subr.bf16.mxu0 0
  %2482 = vmatpush1.bf16.msra.mxu0 0
  %2483 = vmatprep.subr.bf16.mxu0 0
  %2484 = vmatpush1.bf16.msra.mxu0 0
  %2485 = vmatprep.subr.bf16.mxu0 0
  %2486 = vmatpush1.bf16.msra.mxu0 0
  %2487 = vmatprep.subr.bf16.mxu0 0
  %2488 = vmatpush1.bf16.msra.mxu0 0
  %2489 = vmatprep.subr.bf16.mxu0 0
  %2490 = vmatpush1.bf16.msra.mxu0 0
  %2491 = vmatprep.subr.bf16.mxu0 0
  %2492 = vmatpush1.bf16.msra.mxu0 0
  %2493 = vmatprep.subr.bf16.mxu0 0
  %2494 = vmatpush1.bf16.msra.mxu0 0
  %2495 = vmatprep.subr.bf16.mxu0 0
  %2496 = vmatpush1.bf16.msra.mxu0 0
  %2497 = vmatprep.mubr.bf16.mxu0 0
  %2498 = vmatmul.mubr.bf16.gmra.mrb[0].mxu0 %v2407
  %v2499 = vpop.f32.mrb[0].mxu0
  %v2500 = vadd.f32 0.0, %v2499
  %v2501 = vpop.f32.mrb[0].mxu0
  %v2502 = vadd.f32 0.0, %v2501
  %v2503 = vpop.f32.mrb[0].mxu0
  %v2504 = vadd.f32 0.0, %v2503
  %v2505 = vpop.f32.mrb[0].mxu0
  %v2506 = vadd.f32 0.0, %v2505
  %2507 = vmatprep.mubr.bf16.mxu0 0
  %2508 = vmatmul.mubr.bf16.gmra.mrb[0].mxu0 %v2410
  %v2509 = vpop.f32.mrb[0].mxu0
  %v2510 = vadd.f32 0.0, %v2509
  %v2511 = vpop.f32.mrb[0].mxu0
  %v2512 = vadd.f32 0.0, %v2511
  %v2513 = vpop.f32.mrb[0].mxu0
  %v2514 = vadd.f32 0.0, %v2513
  %v2515 = vpop.f32.mrb[0].mxu0
  %v2516 = vadd.f32 0.0, %v2515
  %2517 = vdwg.mxu0
  %v2522 = vunpack.c.l.b16 %v2274
  %v2523 = vunpack.c.l.b16 %v2275
  %v2524 = vunpack.c.l.b16 %v2276
  %v2525 = vunpack.c.l.b16 %v2277
  %v2526 = vpack.c.b16 %v2523, %v2522
  %v2527 = vpack.c.b16 %v2525, %v2524
  %v2529 = vsel %vm2405, %v2526, 0
  %v2532 = vsel %vm2405, %v2527, 0
  %2534 = vmatprep.subr.bf16.mxu0 %v2327
  %2535 = vmatpush1.bf16.msra.mxu0 %v2326
  %2536 = vmatprep.subr.bf16.mxu0 %v2331
  %2537 = vmatpush1.bf16.msra.mxu0 %v2330
  %2538 = vmatprep.subr.bf16.mxu0 0
  %2539 = vmatpush1.bf16.msra.mxu0 0
  %2540 = vmatprep.subr.bf16.mxu0 0
  %2541 = vmatpush1.bf16.msra.mxu0 0
  %2542 = vmatprep.subr.bf16.mxu0 0
  %2543 = vmatpush1.bf16.msra.mxu0 0
  %2544 = vmatprep.subr.bf16.mxu0 0
  %2545 = vmatpush1.bf16.msra.mxu0 0
  %2546 = vmatprep.subr.bf16.mxu0 0
  %2547 = vmatpush1.bf16.msra.mxu0 0
  %2548 = vmatprep.subr.bf16.mxu0 0
  %2549 = vmatpush1.bf16.msra.mxu0 0
  %2550 = vmatprep.subr.bf16.mxu0 0
  %2551 = vmatpush1.bf16.msra.mxu0 0
  %2552 = vmatprep.subr.bf16.mxu0 0
  %2553 = vmatpush1.bf16.msra.mxu0 0
  %2554 = vmatprep.subr.bf16.mxu0 0
  %2555 = vmatpush1.bf16.msra.mxu0 0
  %2556 = vmatprep.subr.bf16.mxu0 0
  %2557 = vmatpush1.bf16.msra.mxu0 0
  %2558 = vmatprep.subr.bf16.mxu0 0
  %2559 = vmatpush1.bf16.msra.mxu0 0
  %2560 = vmatprep.subr.bf16.mxu0 0
  %2561 = vmatpush1.bf16.msra.mxu0 0
  %2562 = vmatprep.subr.bf16.mxu0 0
  %2563 = vmatpush1.bf16.msra.mxu0 0
  %2564 = vmatprep.subr.bf16.mxu0 0
  %2565 = vmatpush1.bf16.msra.mxu0 0
  %2566 = vmatprep.mubr.bf16.mxu0 0
  %2567 = vmatmul.mubr.bf16.gmra.mrb[0].mxu0 %v2529
  %v2568 = vpop.f32.mrb[0].mxu0
  %v2569 = vadd.f32 %v2447, %v2568
  %v2570 = vpop.f32.mrb[0].mxu0
  %v2571 = vadd.f32 %v2449, %v2570
  %v2572 = vpop.f32.mrb[0].mxu0
  %v2573 = vadd.f32 %v2451, %v2572
  %v2574 = vpop.f32.mrb[0].mxu0
  %v2575 = vadd.f32 %v2453, %v2574
  %2576 = vmatprep.mubr.bf16.mxu0 0
  %2577 = vmatmul.mubr.bf16.gmra.mrb[0].mxu0 %v2532
  %v2578 = vpop.f32.mrb[0].mxu0
  %v2579 = vadd.f32 %v2457, %v2578
  %v2580 = vpop.f32.mrb[0].mxu0
  %v2581 = vadd.f32 %v2459, %v2580
  %v2582 = vpop.f32.mrb[0].mxu0
  %v2583 = vadd.f32 %v2461, %v2582
  %v2584 = vpop.f32.mrb[0].mxu0
  %v2585 = vadd.f32 %v2463, %v2584
  %2586 = vdwg.mxu0
  %2587 = vmatprep.subr.bf16.mxu0 %v2329
  %2588 = vmatpush1.bf16.msra.mxu0 %v2328
  %2589 = vmatprep.subr.bf16.mxu0 %v2333
  %2590 = vmatpush1.bf16.msra.mxu0 %v2332
  %2591 = vmatprep.subr.bf16.mxu0 0
  %2592 = vmatpush1.bf16.msra.mxu0 0
  %2593 = vmatprep.subr.bf16.mxu0 0
  %2594 = vmatpush1.bf16.msra.mxu0 0
  %2595 = vmatprep.subr.bf16.mxu0 0
  %2596 = vmatpush1.bf16.msra.mxu0 0
  %2597 = vmatprep.subr.bf16.mxu0 0
  %2598 = vmatpush1.bf16.msra.mxu0 0
  %2599 = vmatprep.subr.bf16.mxu0 0
  %2600 = vmatpush1.bf16.msra.mxu0 0
  %2601 = vmatprep.subr.bf16.mxu0 0
  %2602 = vmatpush1.bf16.msra.mxu0 0
  %2603 = vmatprep.subr.bf16.mxu0 0
  %2604 = vmatpush1.bf16.msra.mxu0 0
  %2605 = vmatprep.subr.bf16.mxu0 0
  %2606 = vmatpush1.bf16.msra.mxu0 0
  %2607 = vmatprep.subr.bf16.mxu0 0
  %2608 = vmatpush1.bf16.msra.mxu0 0
  %2609 = vmatprep.subr.bf16.mxu0 0
  %2610 = vmatpush1.bf16.msra.mxu0 0
  %2611 = vmatprep.subr.bf16.mxu0 0
  %2612 = vmatpush1.bf16.msra.mxu0 0
  %2613 = vmatprep.subr.bf16.mxu0 0
  %2614 = vmatpush1.bf16.msra.mxu0 0
  %2615 = vmatprep.subr.bf16.mxu0 0
  %2616 = vmatpush1.bf16.msra.mxu0 0
  %2617 = vmatprep.subr.bf16.mxu0 0
  %2618 = vmatpush1.bf16.msra.mxu0 0
  %2619 = vmatprep.mubr.bf16.mxu0 0
  %2620 = vmatmul.mubr.bf16.gmra.mrb[0].mxu0 %v2529
  %v2621 = vpop.f32.mrb[0].mxu0
  %v2622 = vadd.f32 %v2500, %v2621
  %v2623 = vpop.f32.mrb[0].mxu0
  %v2624 = vadd.f32 %v2502, %v2623
  %v2625 = vpop.f32.mrb[0].mxu0
  %v2626 = vadd.f32 %v2504, %v2625
  %v2627 = vpop.f32.mrb[0].mxu0
  %v2628 = vadd.f32 %v2506, %v2627
  %2629 = vmatprep.mubr.bf16.mxu0 0
  %2630 = vmatmul.mubr.bf16.gmra.mrb[0].mxu0 %v2532
  %v2631 = vpop.f32.mrb[0].mxu0
  %v2632 = vadd.f32 %v2510, %v2631
  %v2633 = vpop.f32.mrb[0].mxu0
  %v2634 = vadd.f32 %v2512, %v2633
  %v2635 = vpop.f32.mrb[0].mxu0
  %v2636 = vadd.f32 %v2514, %v2635
  %v2637 = vpop.f32.mrb[0].mxu0
  %v2638 = vadd.f32 %v2516, %v2637
  %2639 = vdwg.mxu0
  %s2640 = scalar_lea.vmem %s4, 32
  %v2641 = vld [vmem:[%s2640] sm:$0xf]
  %v2642 = vld [vmem:[%s2640 + $0x4] sm:$0xf]
  %v2643 = vld [vmem:[%s2640 + $0x8] sm:$0xf]
  %v2644 = vld [vmem:[%s2640 + $0xc] sm:$0xf]
  %2645 = vrot.lane.b32.xlu0 %v2258, 15
  %v2646 = vpop.permute.xlu0 %2645
  %2647 = vrot.lane.b32.xlu0 %v2262, 15
  %v2648 = vpop.permute.xlu0 %2647
  %2649 = vrot.lane.b32.xlu0 %v2266, 15
  %v2650 = vpop.permute.xlu0 %2649
  %2651 = vrot.lane.b32.xlu0 %v2270, 15
  %v2652 = vpop.permute.xlu0 %2651
  %2653 = vrot.lane.b32.xlu0 %v2259, 15
  %v2654 = vpop.permute.xlu0 %2653
  %2655 = vrot.lane.b32.xlu0 %v2263, 15
  %v2656 = vpop.permute.xlu0 %2655
  %2657 = vrot.lane.b32.xlu0 %v2267, 15
  %v2658 = vpop.permute.xlu0 %2657
  %2659 = vrot.lane.b32.xlu0 %v2271, 15
  %v2660 = vpop.permute.xlu0 %2659
  %2661 = vrot.lane.b32.xlu0 %v2260, 15
  %v2662 = vpop.permute.xlu0 %2661
  %2663 = vrot.lane.b32.xlu0 %v2264, 15
  %v2664 = vpop.permute.xlu0 %2663
  %2665 = vrot.lane.b32.xlu0 %v2268, 15
  %v2666 = vpop.permute.xlu0 %2665
  %2667 = vrot.lane.b32.xlu0 %v2272, 15
  %v2668 = vpop.permute.xlu0 %2667
  %2669 = vrot.lane.b32.xlu0 %v2261, 15
  %v2670 = vpop.permute.xlu0 %2669
  %2671 = vrot.lane.b32.xlu0 %v2265, 15
  %v2672 = vpop.permute.xlu0 %2671
  %2673 = vrot.lane.b32.xlu0 %v2269, 15
  %v2674 = vpop.permute.xlu0 %2673
  %2675 = vrot.lane.b32.xlu0 %v2273, 15
  %v2676 = vpop.permute.xlu0 %2675
  %v2677 = vsel %vm399, %v2662, %v2670
  %v2678 = vsel %vm399, %v2664, %v2672
  %v2679 = vsel %vm399, %v2666, %v2674
  %v2680 = vsel %vm399, %v2668, %v2676
  %v2681 = vsel %vm399, %v2654, %v2662
  %v2682 = vsel %vm399, %v2656, %v2664
  %v2683 = vsel %vm399, %v2658, %v2666
  %v2684 = vsel %vm399, %v2660, %v2668
  %v2685 = vsel %vm399, %v2646, %v2654
  %v2686 = vsel %vm399, %v2648, %v2656
  %v2687 = vsel %vm399, %v2650, %v2658
  %v2688 = vsel %vm399, %v2652, %v2660
  %v2689 = vsel %vm399, %v2670, %v2646
  %v2690 = vsel %vm399, %v2672, %v2648
  %v2691 = vsel %vm399, %v2674, %v2650
  %v2692 = vsel %vm399, %v2676, %v2652
  %v2693 = vpack.c.bf16 %v2690, %v2689
  %v2694 = vpack.c.bf16 %v2686, %v2685
  %v2695 = vpack.c.bf16 %v2682, %v2681
  %v2696 = vpack.c.bf16 %v2678, %v2677
  %v2697 = vpack.c.bf16 %v2692, %v2691
  %v2698 = vpack.c.bf16 %v2688, %v2687
  %v2699 = vpack.c.bf16 %v2684, %v2683
  %v2700 = vpack.c.bf16 %v2680, %v2679
  %v2705 = vunpack.c.l.b16 %v2641
  %v2706 = vunpack.c.l.b16 %v2642
  %v2707 = vunpack.c.l.b16 %v2643
  %v2708 = vunpack.c.l.b16 %v2644
  %v2709 = vpack.c.b16 %v2706, %v2705
  %v2710 = vpack.c.b16 %v2708, %v2707
  %v2712 = vsel %vm2405, %v2709, 0
  %v2715 = vsel %vm2405, %v2710, 0
  %2717 = vmatprep.subr.bf16.mxu0 %v2694
  %2718 = vmatpush1.bf16.msra.mxu0 %v2693
  %2719 = vmatprep.subr.bf16.mxu0 %v2698
  %2720 = vmatpush1.bf16.msra.mxu0 %v2697
  %2721 = vmatprep.subr.bf16.mxu0 0
  %2722 = vmatpush1.bf16.msra.mxu0 0
  %2723 = vmatprep.subr.bf16.mxu0 0
  %2724 = vmatpush1.bf16.msra.mxu0 0
  %2725 = vmatprep.subr.bf16.mxu0 0
  %2726 = vmatpush1.bf16.msra.mxu0 0
  %2727 = vmatprep.subr.bf16.mxu0 0
  %2728 = vmatpush1.bf16.msra.mxu0 0
  %2729 = vmatprep.subr.bf16.mxu0 0
  %2730 = vmatpush1.bf16.msra.mxu0 0
  %2731 = vmatprep.subr.bf16.mxu0 0
  %2732 = vmatpush1.bf16.msra.mxu0 0
  %2733 = vmatprep.subr.bf16.mxu0 0
  %2734 = vmatpush1.bf16.msra.mxu0 0
  %2735 = vmatprep.subr.bf16.mxu0 0
  %2736 = vmatpush1.bf16.msra.mxu0 0
  %2737 = vmatprep.subr.bf16.mxu0 0
  %2738 = vmatpush1.bf16.msra.mxu0 0
  %2739 = vmatprep.subr.bf16.mxu0 0
  %2740 = vmatpush1.bf16.msra.mxu0 0
  %2741 = vmatprep.subr.bf16.mxu0 0
  %2742 = vmatpush1.bf16.msra.mxu0 0
  %2743 = vmatprep.subr.bf16.mxu0 0
  %2744 = vmatpush1.bf16.msra.mxu0 0
  %2745 = vmatprep.subr.bf16.mxu0 0
  %2746 = vmatpush1.bf16.msra.mxu0 0
  %2747 = vmatprep.subr.bf16.mxu0 0
  %2748 = vmatpush1.bf16.msra.mxu0 0
  %2749 = vmatprep.mubr.bf16.mxu0 0
  %2750 = vmatmul.mubr.bf16.gmra.mrb[0].mxu0 %v2712
  %v2751 = vpop.f32.mrb[0].mxu0
  %v2752 = vadd.f32 0.0, %v2751
  %v2753 = vpop.f32.mrb[0].mxu0
  %v2754 = vadd.f32 0.0, %v2753
  %v2755 = vpop.f32.mrb[0].mxu0
  %v2756 = vadd.f32 0.0, %v2755
  %v2757 = vpop.f32.mrb[0].mxu0
  %v2758 = vadd.f32 0.0, %v2757
  %2759 = vmatprep.mubr.bf16.mxu0 0
  %2760 = vmatmul.mubr.bf16.gmra.mrb[0].mxu0 %v2715
  %v2761 = vpop.f32.mrb[0].mxu0
  %v2762 = vadd.f32 0.0, %v2761
  %v2763 = vpop.f32.mrb[0].mxu0
  %v2764 = vadd.f32 0.0, %v2763
  %v2765 = vpop.f32.mrb[0].mxu0
  %v2766 = vadd.f32 0.0, %v2765
  %v2767 = vpop.f32.mrb[0].mxu0
  %v2768 = vadd.f32 0.0, %v2767
  %2769 = vdwg.mxu0
  %2770 = vmatprep.subr.bf16.mxu0 %v2696
  %2771 = vmatpush1.bf16.msra.mxu0 %v2695
  %2772 = vmatprep.subr.bf16.mxu0 %v2700
  %2773 = vmatpush1.bf16.msra.mxu0 %v2699
  %2774 = vmatprep.subr.bf16.mxu0 0
  %2775 = vmatpush1.bf16.msra.mxu0 0
  %2776 = vmatprep.subr.bf16.mxu0 0
  %2777 = vmatpush1.bf16.msra.mxu0 0
  %2778 = vmatprep.subr.bf16.mxu0 0
  %2779 = vmatpush1.bf16.msra.mxu0 0
  %2780 = vmatprep.subr.bf16.mxu0 0
  %2781 = vmatpush1.bf16.msra.mxu0 0
  %2782 = vmatprep.subr.bf16.mxu0 0
  %2783 = vmatpush1.bf16.msra.mxu0 0
  %2784 = vmatprep.subr.bf16.mxu0 0
  %2785 = vmatpush1.bf16.msra.mxu0 0
  %2786 = vmatprep.subr.bf16.mxu0 0
  %2787 = vmatpush1.bf16.msra.mxu0 0
  %2788 = vmatprep.subr.bf16.mxu0 0
  %2789 = vmatpush1.bf16.msra.mxu0 0
  %2790 = vmatprep.subr.bf16.mxu0 0
  %2791 = vmatpush1.bf16.msra.mxu0 0
  %2792 = vmatprep.subr.bf16.mxu0 0
  %2793 = vmatpush1.bf16.msra.mxu0 0
  %2794 = vmatprep.subr.bf16.mxu0 0
  %2795 = vmatpush1.bf16.msra.mxu0 0
  %2796 = vmatprep.subr.bf16.mxu0 0
  %2797 = vmatpush1.bf16.msra.mxu0 0
  %2798 = vmatprep.subr.bf16.mxu0 0
  %2799 = vmatpush1.bf16.msra.mxu0 0
  %2800 = vmatprep.subr.bf16.mxu0 0
  %2801 = vmatpush1.bf16.msra.mxu0 0
  %2802 = vmatprep.mubr.bf16.mxu0 0
  %2803 = vmatmul.mubr.bf16.gmra.mrb[0].mxu0 %v2712
  %v2804 = vpop.f32.mrb[0].mxu0
  %v2805 = vadd.f32 0.0, %v2804
  %v2806 = vpop.f32.mrb[0].mxu0
  %v2807 = vadd.f32 0.0, %v2806
  %v2808 = vpop.f32.mrb[0].mxu0
  %v2809 = vadd.f32 0.0, %v2808
  %v2810 = vpop.f32.mrb[0].mxu0
  %v2811 = vadd.f32 0.0, %v2810
  %2812 = vmatprep.mubr.bf16.mxu0 0
  %2813 = vmatmul.mubr.bf16.gmra.mrb[0].mxu0 %v2715
  %v2814 = vpop.f32.mrb[0].mxu0
  %v2815 = vadd.f32 0.0, %v2814
  %v2816 = vpop.f32.mrb[0].mxu0
  %v2817 = vadd.f32 0.0, %v2816
  %v2818 = vpop.f32.mrb[0].mxu0
  %v2819 = vadd.f32 0.0, %v2818
  %v2820 = vpop.f32.mrb[0].mxu0
  %v2821 = vadd.f32 0.0, %v2820
  %2822 = vdwg.mxu0
  %v2823 = vadd.f32 %v2569, %v2752
  %v2824 = vadd.f32 %v2571, %v2754
  %v2825 = vadd.f32 %v2622, %v2805
  %v2826 = vadd.f32 %v2624, %v2807
  %v2827 = vadd.f32 %v2573, %v2756
  %v2828 = vadd.f32 %v2575, %v2758
  %v2829 = vadd.f32 %v2626, %v2809
  %v2830 = vadd.f32 %v2628, %v2811
  %v2831 = vadd.f32 %v2579, %v2762
  %v2832 = vadd.f32 %v2581, %v2764
  %v2833 = vadd.f32 %v2632, %v2815
  %v2834 = vadd.f32 %v2634, %v2817
  %v2835 = vadd.f32 %v2583, %v2766
  %v2836 = vadd.f32 %v2585, %v2768
  %v2837 = vadd.f32 %v2636, %v2819
  %v2838 = vadd.f32 %v2638, %v2821
  %s2839 = scalar_lea.vmem %s4, 48
  %v2840 = vld [vmem:[%s2839] sm:$0xf]
  %v2841 = vld [vmem:[%s2839 + $0x4] sm:$0xf]
  %v2842 = vld [vmem:[%s2839 + $0x8] sm:$0xf]
  %v2843 = vld [vmem:[%s2839 + $0xc] sm:$0xf]
  %2844 = vrot.lane.b32.xlu0 %v2258, 1
  %v2845 = vpop.permute.xlu0 %2844
  %2846 = vrot.lane.b32.xlu0 %v2262, 1
  %v2847 = vpop.permute.xlu0 %2846
  %2848 = vrot.lane.b32.xlu0 %v2266, 1
  %v2849 = vpop.permute.xlu0 %2848
  %2850 = vrot.lane.b32.xlu0 %v2270, 1
  %v2851 = vpop.permute.xlu0 %2850
  %2852 = vrot.lane.b32.xlu0 %v2259, 1
  %v2853 = vpop.permute.xlu0 %2852
  %2854 = vrot.lane.b32.xlu0 %v2263, 1
  %v2855 = vpop.permute.xlu0 %2854
  %2856 = vrot.lane.b32.xlu0 %v2267, 1
  %v2857 = vpop.permute.xlu0 %2856
  %2858 = vrot.lane.b32.xlu0 %v2271, 1
  %v2859 = vpop.permute.xlu0 %2858
  %2860 = vrot.lane.b32.xlu0 %v2260, 1
  %v2861 = vpop.permute.xlu0 %2860
  %2862 = vrot.lane.b32.xlu0 %v2264, 1
  %v2863 = vpop.permute.xlu0 %2862
  %2864 = vrot.lane.b32.xlu0 %v2268, 1
  %v2865 = vpop.permute.xlu0 %2864
  %2866 = vrot.lane.b32.xlu0 %v2272, 1
  %v2867 = vpop.permute.xlu0 %2866
  %2868 = vrot.lane.b32.xlu0 %v2261, 1
  %v2869 = vpop.permute.xlu0 %2868
  %2870 = vrot.lane.b32.xlu0 %v2265, 1
  %v2871 = vpop.permute.xlu0 %2870
  %2872 = vrot.lane.b32.xlu0 %v2269, 1
  %v2873 = vpop.permute.xlu0 %2872
  %2874 = vrot.lane.b32.xlu0 %v2273, 1
  %v2875 = vpop.permute.xlu0 %2874
  %v2876 = vsel %vm571, %v2861, %v2869
  %v2877 = vsel %vm571, %v2863, %v2871
  %v2878 = vsel %vm571, %v2865, %v2873
  %v2879 = vsel %vm571, %v2867, %v2875
  %v2880 = vsel %vm571, %v2853, %v2861
  %v2881 = vsel %vm571, %v2855, %v2863
  %v2882 = vsel %vm571, %v2857, %v2865
  %v2883 = vsel %vm571, %v2859, %v2867
  %v2884 = vsel %vm571, %v2845, %v2853
  %v2885 = vsel %vm571, %v2847, %v2855
  %v2886 = vsel %vm571, %v2849, %v2857
  %v2887 = vsel %vm571, %v2851, %v2859
  %v2888 = vsel %vm571, %v2869, %v2845
  %v2889 = vsel %vm571, %v2871, %v2847
  %v2890 = vsel %vm571, %v2873, %v2849
  %v2891 = vsel %vm571, %v2875, %v2851
  %v2892 = vpack.c.bf16 %v2889, %v2888
  %v2893 = vpack.c.bf16 %v2885, %v2884
  %v2894 = vpack.c.bf16 %v2881, %v2880
  %v2895 = vpack.c.bf16 %v2877, %v2876
  %v2896 = vpack.c.bf16 %v2891, %v2890
  %v2897 = vpack.c.bf16 %v2887, %v2886
  %v2898 = vpack.c.bf16 %v2883, %v2882
  %v2899 = vpack.c.bf16 %v2879, %v2878
  %v2904 = vunpack.c.l.b16 %v2840
  %v2905 = vunpack.c.l.b16 %v2841
  %v2906 = vunpack.c.l.b16 %v2842
  %v2907 = vunpack.c.l.b16 %v2843
  %v2908 = vpack.c.b16 %v2905, %v2904
  %v2909 = vpack.c.b16 %v2907, %v2906
  %v2911 = vsel %vm2405, %v2908, 0
  %v2914 = vsel %vm2405, %v2909, 0
  %2916 = vmatprep.subr.bf16.mxu0 %v2893
  %2917 = vmatpush1.bf16.msra.mxu0 %v2892
  %2918 = vmatprep.subr.bf16.mxu0 %v2897
  %2919 = vmatpush1.bf16.msra.mxu0 %v2896
  %2920 = vmatprep.subr.bf16.mxu0 0
  %2921 = vmatpush1.bf16.msra.mxu0 0
  %2922 = vmatprep.subr.bf16.mxu0 0
  %2923 = vmatpush1.bf16.msra.mxu0 0
  %2924 = vmatprep.subr.bf16.mxu0 0
  %2925 = vmatpush1.bf16.msra.mxu0 0
  %2926 = vmatprep.subr.bf16.mxu0 0
  %2927 = vmatpush1.bf16.msra.mxu0 0
  %2928 = vmatprep.subr.bf16.mxu0 0
  %2929 = vmatpush1.bf16.msra.mxu0 0
  %2930 = vmatprep.subr.bf16.mxu0 0
  %2931 = vmatpush1.bf16.msra.mxu0 0
  %2932 = vmatprep.subr.bf16.mxu0 0
  %2933 = vmatpush1.bf16.msra.mxu0 0
  %2934 = vmatprep.subr.bf16.mxu0 0
  %2935 = vmatpush1.bf16.msra.mxu0 0
  %2936 = vmatprep.subr.bf16.mxu0 0
  %2937 = vmatpush1.bf16.msra.mxu0 0
  %2938 = vmatprep.subr.bf16.mxu0 0
  %2939 = vmatpush1.bf16.msra.mxu0 0
  %2940 = vmatprep.subr.bf16.mxu0 0
  %2941 = vmatpush1.bf16.msra.mxu0 0
  %2942 = vmatprep.subr.bf16.mxu0 0
  %2943 = vmatpush1.bf16.msra.mxu0 0
  %2944 = vmatprep.subr.bf16.mxu0 0
  %2945 = vmatpush1.bf16.msra.mxu0 0
  %2946 = vmatprep.subr.bf16.mxu0 0
  %2947 = vmatpush1.bf16.msra.mxu0 0
  %2948 = vmatprep.mubr.bf16.mxu0 0
  %2949 = vmatmul.mubr.bf16.gmra.mrb[0].mxu0 %v2911
  %v2950 = vpop.f32.mrb[0].mxu0
  %v2951 = vadd.f32 0.0, %v2950
  %v2952 = vpop.f32.mrb[0].mxu0
  %v2953 = vadd.f32 0.0, %v2952
  %v2954 = vpop.f32.mrb[0].mxu0
  %v2955 = vadd.f32 0.0, %v2954
  %v2956 = vpop.f32.mrb[0].mxu0
  %v2957 = vadd.f32 0.0, %v2956
  %2958 = vmatprep.mubr.bf16.mxu0 0
  %2959 = vmatmul.mubr.bf16.gmra.mrb[0].mxu0 %v2914
  %v2960 = vpop.f32.mrb[0].mxu0
  %v2961 = vadd.f32 0.0, %v2960
  %v2962 = vpop.f32.mrb[0].mxu0
  %v2963 = vadd.f32 0.0, %v2962
  %v2964 = vpop.f32.mrb[0].mxu0
  %v2965 = vadd.f32 0.0, %v2964
  %v2966 = vpop.f32.mrb[0].mxu0
  %v2967 = vadd.f32 0.0, %v2966
  %2968 = vdwg.mxu0
  %2969 = vmatprep.subr.bf16.mxu0 %v2895
  %2970 = vmatpush1.bf16.msra.mxu0 %v2894
  %2971 = vmatprep.subr.bf16.mxu0 %v2899
  %2972 = vmatpush1.bf16.msra.mxu0 %v2898
  %2973 = vmatprep.subr.bf16.mxu0 0
  %2974 = vmatpush1.bf16.msra.mxu0 0
  %2975 = vmatprep.subr.bf16.mxu0 0
  %2976 = vmatpush1.bf16.msra.mxu0 0
  %2977 = vmatprep.subr.bf16.mxu0 0
  %2978 = vmatpush1.bf16.msra.mxu0 0
  %2979 = vmatprep.subr.bf16.mxu0 0
  %2980 = vmatpush1.bf16.msra.mxu0 0
  %2981 = vmatprep.subr.bf16.mxu0 0
  %2982 = vmatpush1.bf16.msra.mxu0 0
  %2983 = vmatprep.subr.bf16.mxu0 0
  %2984 = vmatpush1.bf16.msra.mxu0 0
  %2985 = vmatprep.subr.bf16.mxu0 0
  %2986 = vmatpush1.bf16.msra.mxu0 0
  %2987 = vmatprep.subr.bf16.mxu0 0
  %2988 = vmatpush1.bf16.msra.mxu0 0
  %2989 = vmatprep.subr.bf16.mxu0 0
  %2990 = vmatpush1.bf16.msra.mxu0 0
  %2991 = vmatprep.subr.bf16.mxu0 0
  %2992 = vmatpush1.bf16.msra.mxu0 0
  %2993 = vmatprep.subr.bf16.mxu0 0
  %2994 = vmatpush1.bf16.msra.mxu0 0
  %2995 = vmatprep.subr.bf16.mxu0 0
  %2996 = vmatpush1.bf16.msra.mxu0 0
  %2997 = vmatprep.subr.bf16.mxu0 0
  %2998 = vmatpush1.bf16.msra.mxu0 0
  %2999 = vmatprep.subr.bf16.mxu0 0
  %3000 = vmatpush1.bf16.msra.mxu0 0
  %3001 = vmatprep.mubr.bf16.mxu0 0
  %3002 = vmatmul.mubr.bf16.gmra.mrb[0].mxu0 %v2911
  %v3003 = vpop.f32.mrb[0].mxu0
  %v3004 = vadd.f32 0.0, %v3003
  %v3005 = vpop.f32.mrb[0].mxu0
  %v3006 = vadd.f32 0.0, %v3005
  %v3007 = vpop.f32.mrb[0].mxu0
  %v3008 = vadd.f32 0.0, %v3007
  %v3009 = vpop.f32.mrb[0].mxu0
  %v3010 = vadd.f32 0.0, %v3009
  %3011 = vmatprep.mubr.bf16.mxu0 0
  %3012 = vmatmul.mubr.bf16.gmra.mrb[0].mxu0 %v2914
  %v3013 = vpop.f32.mrb[0].mxu0
  %v3014 = vadd.f32 0.0, %v3013
  %v3015 = vpop.f32.mrb[0].mxu0
  %v3016 = vadd.f32 0.0, %v3015
  %v3017 = vpop.f32.mrb[0].mxu0
  %v3018 = vadd.f32 0.0, %v3017
  %v3019 = vpop.f32.mrb[0].mxu0
  %v3020 = vadd.f32 0.0, %v3019
  %3021 = vdwg.mxu0
  %v3022 = vadd.f32 %v2823, %v2951
  %v3023 = vadd.f32 %v2824, %v2953
  %v3024 = vadd.f32 %v2825, %v3004
  %v3025 = vadd.f32 %v2826, %v3006
  %v3026 = vadd.f32 %v2827, %v2955
  %v3027 = vadd.f32 %v2828, %v2957
  %v3028 = vadd.f32 %v2829, %v3008
  %v3029 = vadd.f32 %v2830, %v3010
  %v3030 = vadd.f32 %v2831, %v2961
  %v3031 = vadd.f32 %v2832, %v2963
  %v3032 = vadd.f32 %v2833, %v3014
  %v3033 = vadd.f32 %v2834, %v3016
  %v3034 = vadd.f32 %v2835, %v2965
  %v3035 = vadd.f32 %v2836, %v2967
  %v3036 = vadd.f32 %v2837, %v3018
  %v3037 = vadd.f32 %v2838, %v3020
  %s3038 = scalar_lea.vmem %s4, 64
  %v3039 = vld [vmem:[%s3038] sm:$0xf]
  %v3040 = vld [vmem:[%s3038 + $0x4] sm:$0xf]
  %v3041 = vld [vmem:[%s3038 + $0x8] sm:$0xf]
  %v3042 = vld [vmem:[%s3038 + $0xc] sm:$0xf]
  %v3043 = vpack.c.bf16 %v2262, %v2258
  %v3044 = vpack.c.bf16 %v2263, %v2259
  %v3045 = vpack.c.bf16 %v2264, %v2260
  %v3046 = vpack.c.bf16 %v2265, %v2261
  %v3047 = vpack.c.bf16 %v2270, %v2266
  %v3048 = vpack.c.bf16 %v2271, %v2267
  %v3049 = vpack.c.bf16 %v2272, %v2268
  %v3050 = vpack.c.bf16 %v2273, %v2269
  %v3055 = vunpack.c.l.b16 %v3039
  %v3056 = vunpack.c.l.b16 %v3040
  %v3057 = vunpack.c.l.b16 %v3041
  %v3058 = vunpack.c.l.b16 %v3042
  %v3059 = vpack.c.b16 %v3056, %v3055
  %v3060 = vpack.c.b16 %v3058, %v3057
  %v3062 = vsel %vm2405, %v3059, 0
  %v3065 = vsel %vm2405, %v3060, 0
  %3067 = vmatprep.subr.bf16.mxu0 %v3044
  %3068 = vmatpush1.bf16.msra.mxu0 %v3043
  %3069 = vmatprep.subr.bf16.mxu0 %v3048
  %3070 = vmatpush1.bf16.msra.mxu0 %v3047
  %3071 = vmatprep.subr.bf16.mxu0 0
  %3072 = vmatpush1.bf16.msra.mxu0 0
  %3073 = vmatprep.subr.bf16.mxu0 0
  %3074 = vmatpush1.bf16.msra.mxu0 0
  %3075 = vmatprep.subr.bf16.mxu0 0
  %3076 = vmatpush1.bf16.msra.mxu0 0
  %3077 = vmatprep.subr.bf16.mxu0 0
  %3078 = vmatpush1.bf16.msra.mxu0 0
  %3079 = vmatprep.subr.bf16.mxu0 0
  %3080 = vmatpush1.bf16.msra.mxu0 0
  %3081 = vmatprep.subr.bf16.mxu0 0
  %3082 = vmatpush1.bf16.msra.mxu0 0
  %3083 = vmatprep.subr.bf16.mxu0 0
  %3084 = vmatpush1.bf16.msra.mxu0 0
  %3085 = vmatprep.subr.bf16.mxu0 0
  %3086 = vmatpush1.bf16.msra.mxu0 0
  %3087 = vmatprep.subr.bf16.mxu0 0
  %3088 = vmatpush1.bf16.msra.mxu0 0
  %3089 = vmatprep.subr.bf16.mxu0 0
  %3090 = vmatpush1.bf16.msra.mxu0 0
  %3091 = vmatprep.subr.bf16.mxu0 0
  %3092 = vmatpush1.bf16.msra.mxu0 0
  %3093 = vmatprep.subr.bf16.mxu0 0
  %3094 = vmatpush1.bf16.msra.mxu0 0
  %3095 = vmatprep.subr.bf16.mxu0 0
  %3096 = vmatpush1.bf16.msra.mxu0 0
  %3097 = vmatprep.subr.bf16.mxu0 0
  %3098 = vmatpush1.bf16.msra.mxu0 0
  %3099 = vmatprep.mubr.bf16.mxu0 0
  %3100 = vmatmul.mubr.bf16.gmra.mrb[0].mxu0 %v3062
  %v3101 = vpop.f32.mrb[0].mxu0
  %v3102 = vadd.f32 0.0, %v3101
  %v3103 = vpop.f32.mrb[0].mxu0
  %v3104 = vadd.f32 0.0, %v3103
  %v3105 = vpop.f32.mrb[0].mxu0
  %v3106 = vadd.f32 0.0, %v3105
  %v3107 = vpop.f32.mrb[0].mxu0
  %v3108 = vadd.f32 0.0, %v3107
  %3109 = vmatprep.mubr.bf16.mxu0 0
  %3110 = vmatmul.mubr.bf16.gmra.mrb[0].mxu0 %v3065
  %v3111 = vpop.f32.mrb[0].mxu0
  %v3112 = vadd.f32 0.0, %v3111
  %v3113 = vpop.f32.mrb[0].mxu0
  %v3114 = vadd.f32 0.0, %v3113
  %v3115 = vpop.f32.mrb[0].mxu0
  %v3116 = vadd.f32 0.0, %v3115
  %v3117 = vpop.f32.mrb[0].mxu0
  %v3118 = vadd.f32 0.0, %v3117
  %3119 = vdwg.mxu0
  %3120 = vmatprep.subr.bf16.mxu0 %v3046
  %3121 = vmatpush1.bf16.msra.mxu0 %v3045
  %3122 = vmatprep.subr.bf16.mxu0 %v3050
  %3123 = vmatpush1.bf16.msra.mxu0 %v3049
  %3124 = vmatprep.subr.bf16.mxu0 0
  %3125 = vmatpush1.bf16.msra.mxu0 0
  %3126 = vmatprep.subr.bf16.mxu0 0
  %3127 = vmatpush1.bf16.msra.mxu0 0
  %3128 = vmatprep.subr.bf16.mxu0 0
  %3129 = vmatpush1.bf16.msra.mxu0 0
  %3130 = vmatprep.subr.bf16.mxu0 0
  %3131 = vmatpush1.bf16.msra.mxu0 0
  %3132 = vmatprep.subr.bf16.mxu0 0
  %3133 = vmatpush1.bf16.msra.mxu0 0
  %3134 = vmatprep.subr.bf16.mxu0 0
  %3135 = vmatpush1.bf16.msra.mxu0 0
  %3136 = vmatprep.subr.bf16.mxu0 0
  %3137 = vmatpush1.bf16.msra.mxu0 0
  %3138 = vmatprep.subr.bf16.mxu0 0
  %3139 = vmatpush1.bf16.msra.mxu0 0
  %3140 = vmatprep.subr.bf16.mxu0 0
  %3141 = vmatpush1.bf16.msra.mxu0 0
  %3142 = vmatprep.subr.bf16.mxu0 0
  %3143 = vmatpush1.bf16.msra.mxu0 0
  %3144 = vmatprep.subr.bf16.mxu0 0
  %3145 = vmatpush1.bf16.msra.mxu0 0
  %3146 = vmatprep.subr.bf16.mxu0 0
  %3147 = vmatpush1.bf16.msra.mxu0 0
  %3148 = vmatprep.subr.bf16.mxu0 0
  %3149 = vmatpush1.bf16.msra.mxu0 0
  %3150 = vmatprep.subr.bf16.mxu0 0
  %3151 = vmatpush1.bf16.msra.mxu0 0
  %3152 = vmatprep.mubr.bf16.mxu0 0
  %3153 = vmatmul.mubr.bf16.gmra.mrb[0].mxu0 %v3062
  %v3154 = vpop.f32.mrb[0].mxu0
  %v3155 = vadd.f32 0.0, %v3154
  %v3156 = vpop.f32.mrb[0].mxu0
  %v3157 = vadd.f32 0.0, %v3156
  %v3158 = vpop.f32.mrb[0].mxu0
  %v3159 = vadd.f32 0.0, %v3158
  %v3160 = vpop.f32.mrb[0].mxu0
  %v3161 = vadd.f32 0.0, %v3160
  %3162 = vmatprep.mubr.bf16.mxu0 0
  %3163 = vmatmul.mubr.bf16.gmra.mrb[0].mxu0 %v3065
  %v3164 = vpop.f32.mrb[0].mxu0
  %v3165 = vadd.f32 0.0, %v3164
  %v3166 = vpop.f32.mrb[0].mxu0
  %v3167 = vadd.f32 0.0, %v3166
  %v3168 = vpop.f32.mrb[0].mxu0
  %v3169 = vadd.f32 0.0, %v3168
  %v3170 = vpop.f32.mrb[0].mxu0
  %v3171 = vadd.f32 0.0, %v3170
  %3172 = vdwg.mxu0
  %v3173 = vadd.f32 %v3022, %v3102
  %v3174 = vadd.f32 %v3023, %v3104
  %v3175 = vadd.f32 %v3024, %v3155
  %v3176 = vadd.f32 %v3025, %v3157
  %v3177 = vadd.f32 %v3026, %v3106
  %v3178 = vadd.f32 %v3027, %v3108
  %v3179 = vadd.f32 %v3028, %v3159
  %v3180 = vadd.f32 %v3029, %v3161
  %v3181 = vadd.f32 %v3030, %v3112
  %v3182 = vadd.f32 %v3031, %v3114
  %v3183 = vadd.f32 %v3032, %v3165
  %v3184 = vadd.f32 %v3033, %v3167
  %v3185 = vadd.f32 %v3034, %v3116
  %v3186 = vadd.f32 %v3035, %v3118
  %v3187 = vadd.f32 %v3036, %v3169
  %v3188 = vadd.f32 %v3037, %v3171
  %s3189 = scalar_lea.vmem %s4, 80
  %v3190 = vld [vmem:[%s3189] sm:$0xf]
  %v3191 = vld [vmem:[%s3189 + $0x4] sm:$0xf]
  %v3192 = vld [vmem:[%s3189 + $0x8] sm:$0xf]
  %v3193 = vld [vmem:[%s3189 + $0xc] sm:$0xf]
  %3194 = vrot.lane.b32.xlu0 %v2258, 127
  %v3195 = vpop.permute.xlu0 %3194
  %3196 = vrot.lane.b32.xlu0 %v2262, 127
  %v3197 = vpop.permute.xlu0 %3196
  %3198 = vrot.lane.b32.xlu0 %v2266, 127
  %v3199 = vpop.permute.xlu0 %3198
  %3200 = vrot.lane.b32.xlu0 %v2270, 127
  %v3201 = vpop.permute.xlu0 %3200
  %3202 = vrot.lane.b32.xlu0 %v2259, 127
  %v3203 = vpop.permute.xlu0 %3202
  %3204 = vrot.lane.b32.xlu0 %v2263, 127
  %v3205 = vpop.permute.xlu0 %3204
  %3206 = vrot.lane.b32.xlu0 %v2267, 127
  %v3207 = vpop.permute.xlu0 %3206
  %3208 = vrot.lane.b32.xlu0 %v2271, 127
  %v3209 = vpop.permute.xlu0 %3208
  %3210 = vrot.lane.b32.xlu0 %v2260, 127
  %v3211 = vpop.permute.xlu0 %3210
  %3212 = vrot.lane.b32.xlu0 %v2264, 127
  %v3213 = vpop.permute.xlu0 %3212
  %3214 = vrot.lane.b32.xlu0 %v2268, 127
  %v3215 = vpop.permute.xlu0 %3214
  %3216 = vrot.lane.b32.xlu0 %v2272, 127
  %v3217 = vpop.permute.xlu0 %3216
  %3218 = vrot.lane.b32.xlu0 %v2261, 127
  %v3219 = vpop.permute.xlu0 %3218
  %3220 = vrot.lane.b32.xlu0 %v2265, 127
  %v3221 = vpop.permute.xlu0 %3220
  %3222 = vrot.lane.b32.xlu0 %v2269, 127
  %v3223 = vpop.permute.xlu0 %3222
  %3224 = vrot.lane.b32.xlu0 %v2273, 127
  %v3225 = vpop.permute.xlu0 %3224
  %v3226 = vsel %vm890, %v3211, %v3219
  %v3227 = vsel %vm890, %v3213, %v3221
  %v3228 = vsel %vm890, %v3215, %v3223
  %v3229 = vsel %vm890, %v3217, %v3225
  %v3230 = vsel %vm890, %v3203, %v3211
  %v3231 = vsel %vm890, %v3205, %v3213
  %v3232 = vsel %vm890, %v3207, %v3215
  %v3233 = vsel %vm890, %v3209, %v3217
  %v3234 = vsel %vm890, %v3195, %v3203
  %v3235 = vsel %vm890, %v3197, %v3205
  %v3236 = vsel %vm890, %v3199, %v3207
  %v3237 = vsel %vm890, %v3201, %v3209
  %v3238 = vsel %vm890, %v3219, %v3195
  %v3239 = vsel %vm890, %v3221, %v3197
  %v3240 = vsel %vm890, %v3223, %v3199
  %v3241 = vsel %vm890, %v3225, %v3201
  %v3242 = vpack.c.bf16 %v3235, %v3234
  %v3243 = vpack.c.bf16 %v3231, %v3230
  %v3244 = vpack.c.bf16 %v3227, %v3226
  %v3245 = vpack.c.bf16 %v3239, %v3238
  %v3246 = vpack.c.bf16 %v3237, %v3236
  %v3247 = vpack.c.bf16 %v3233, %v3232
  %v3248 = vpack.c.bf16 %v3229, %v3228
  %v3249 = vpack.c.bf16 %v3241, %v3240
  %v3254 = vunpack.c.l.b16 %v3190
  %v3255 = vunpack.c.l.b16 %v3191
  %v3256 = vunpack.c.l.b16 %v3192
  %v3257 = vunpack.c.l.b16 %v3193
  %v3258 = vpack.c.b16 %v3255, %v3254
  %v3259 = vpack.c.b16 %v3257, %v3256
  %v3261 = vsel %vm2405, %v3258, 0
  %v3264 = vsel %vm2405, %v3259, 0
  %3266 = vmatprep.subr.bf16.mxu0 %v3243
  %3267 = vmatpush1.bf16.msra.mxu0 %v3242
  %3268 = vmatprep.subr.bf16.mxu0 %v3247
  %3269 = vmatpush1.bf16.msra.mxu0 %v3246
  %3270 = vmatprep.subr.bf16.mxu0 0
  %3271 = vmatpush1.bf16.msra.mxu0 0
  %3272 = vmatprep.subr.bf16.mxu0 0
  %3273 = vmatpush1.bf16.msra.mxu0 0
  %3274 = vmatprep.subr.bf16.mxu0 0
  %3275 = vmatpush1.bf16.msra.mxu0 0
  %3276 = vmatprep.subr.bf16.mxu0 0
  %3277 = vmatpush1.bf16.msra.mxu0 0
  %3278 = vmatprep.subr.bf16.mxu0 0
  %3279 = vmatpush1.bf16.msra.mxu0 0
  %3280 = vmatprep.subr.bf16.mxu0 0
  %3281 = vmatpush1.bf16.msra.mxu0 0
  %3282 = vmatprep.subr.bf16.mxu0 0
  %3283 = vmatpush1.bf16.msra.mxu0 0
  %3284 = vmatprep.subr.bf16.mxu0 0
  %3285 = vmatpush1.bf16.msra.mxu0 0
  %3286 = vmatprep.subr.bf16.mxu0 0
  %3287 = vmatpush1.bf16.msra.mxu0 0
  %3288 = vmatprep.subr.bf16.mxu0 0
  %3289 = vmatpush1.bf16.msra.mxu0 0
  %3290 = vmatprep.subr.bf16.mxu0 0
  %3291 = vmatpush1.bf16.msra.mxu0 0
  %3292 = vmatprep.subr.bf16.mxu0 0
  %3293 = vmatpush1.bf16.msra.mxu0 0
  %3294 = vmatprep.subr.bf16.mxu0 0
  %3295 = vmatpush1.bf16.msra.mxu0 0
  %3296 = vmatprep.subr.bf16.mxu0 0
  %3297 = vmatpush1.bf16.msra.mxu0 0
  %3298 = vmatprep.mubr.bf16.mxu0 0
  %3299 = vmatmul.mubr.bf16.gmra.mrb[0].mxu0 %v3261
  %v3300 = vpop.f32.mrb[0].mxu0
  %v3301 = vadd.f32 0.0, %v3300
  %v3302 = vpop.f32.mrb[0].mxu0
  %v3303 = vadd.f32 0.0, %v3302
  %v3304 = vpop.f32.mrb[0].mxu0
  %v3305 = vadd.f32 0.0, %v3304
  %v3306 = vpop.f32.mrb[0].mxu0
  %v3307 = vadd.f32 0.0, %v3306
  %3308 = vmatprep.mubr.bf16.mxu0 0
  %3309 = vmatmul.mubr.bf16.gmra.mrb[0].mxu0 %v3264
  %v3310 = vpop.f32.mrb[0].mxu0
  %v3311 = vadd.f32 0.0, %v3310
  %v3312 = vpop.f32.mrb[0].mxu0
  %v3313 = vadd.f32 0.0, %v3312
  %v3314 = vpop.f32.mrb[0].mxu0
  %v3315 = vadd.f32 0.0, %v3314
  %v3316 = vpop.f32.mrb[0].mxu0
  %v3317 = vadd.f32 0.0, %v3316
  %3318 = vdwg.mxu0
  %3319 = vmatprep.subr.bf16.mxu0 %v3245
  %3320 = vmatpush1.bf16.msra.mxu0 %v3244
  %3321 = vmatprep.subr.bf16.mxu0 %v3249
  %3322 = vmatpush1.bf16.msra.mxu0 %v3248
  %3323 = vmatprep.subr.bf16.mxu0 0
  %3324 = vmatpush1.bf16.msra.mxu0 0
  %3325 = vmatprep.subr.bf16.mxu0 0
  %3326 = vmatpush1.bf16.msra.mxu0 0
  %3327 = vmatprep.subr.bf16.mxu0 0
  %3328 = vmatpush1.bf16.msra.mxu0 0
  %3329 = vmatprep.subr.bf16.mxu0 0
  %3330 = vmatpush1.bf16.msra.mxu0 0
  %3331 = vmatprep.subr.bf16.mxu0 0
  %3332 = vmatpush1.bf16.msra.mxu0 0
  %3333 = vmatprep.subr.bf16.mxu0 0
  %3334 = vmatpush1.bf16.msra.mxu0 0
  %3335 = vmatprep.subr.bf16.mxu0 0
  %3336 = vmatpush1.bf16.msra.mxu0 0
  %3337 = vmatprep.subr.bf16.mxu0 0
  %3338 = vmatpush1.bf16.msra.mxu0 0
  %3339 = vmatprep.subr.bf16.mxu0 0
  %3340 = vmatpush1.bf16.msra.mxu0 0
  %3341 = vmatprep.subr.bf16.mxu0 0
  %3342 = vmatpush1.bf16.msra.mxu0 0
  %3343 = vmatprep.subr.bf16.mxu0 0
  %3344 = vmatpush1.bf16.msra.mxu0 0
  %3345 = vmatprep.subr.bf16.mxu0 0
  %3346 = vmatpush1.bf16.msra.mxu0 0
  %3347 = vmatprep.subr.bf16.mxu0 0
  %3348 = vmatpush1.bf16.msra.mxu0 0
  %3349 = vmatprep.subr.bf16.mxu0 0
  %3350 = vmatpush1.bf16.msra.mxu0 0
  %3351 = vmatprep.mubr.bf16.mxu0 0
  %3352 = vmatmul.mubr.bf16.gmra.mrb[0].mxu0 %v3261
  %v3353 = vpop.f32.mrb[0].mxu0
  %v3354 = vadd.f32 0.0, %v3353
  %v3355 = vpop.f32.mrb[0].mxu0
  %v3356 = vadd.f32 0.0, %v3355
  %v3357 = vpop.f32.mrb[0].mxu0
  %v3358 = vadd.f32 0.0, %v3357
  %v3359 = vpop.f32.mrb[0].mxu0
  %v3360 = vadd.f32 0.0, %v3359
  %3361 = vmatprep.mubr.bf16.mxu0 0
  %3362 = vmatmul.mubr.bf16.gmra.mrb[0].mxu0 %v3264
  %v3363 = vpop.f32.mrb[0].mxu0
  %v3364 = vadd.f32 0.0, %v3363
  %v3365 = vpop.f32.mrb[0].mxu0
  %v3366 = vadd.f32 0.0, %v3365
  %v3367 = vpop.f32.mrb[0].mxu0
  %v3368 = vadd.f32 0.0, %v3367
  %v3369 = vpop.f32.mrb[0].mxu0
  %v3370 = vadd.f32 0.0, %v3369
  %3371 = vdwg.mxu0
  %v3372 = vadd.f32 %v3173, %v3301
  %v3373 = vadd.f32 %v3174, %v3303
  %v3374 = vadd.f32 %v3175, %v3354
  %v3375 = vadd.f32 %v3176, %v3356
  %v3376 = vadd.f32 %v3177, %v3305
  %v3377 = vadd.f32 %v3178, %v3307
  %v3378 = vadd.f32 %v3179, %v3358
  %v3379 = vadd.f32 %v3180, %v3360
  %v3380 = vadd.f32 %v3181, %v3311
  %v3381 = vadd.f32 %v3182, %v3313
  %v3382 = vadd.f32 %v3183, %v3364
  %v3383 = vadd.f32 %v3184, %v3366
  %v3384 = vadd.f32 %v3185, %v3315
  %v3385 = vadd.f32 %v3186, %v3317
  %v3386 = vadd.f32 %v3187, %v3368
  %v3387 = vadd.f32 %v3188, %v3370
  %s3388 = scalar_lea.vmem %s4, 96
  %v3389 = vld [vmem:[%s3388] sm:$0xf]
  %v3390 = vld [vmem:[%s3388 + $0x4] sm:$0xf]
  %v3391 = vld [vmem:[%s3388 + $0x8] sm:$0xf]
  %v3392 = vld [vmem:[%s3388 + $0xc] sm:$0xf]
  %3393 = vrot.lane.b32.xlu0 %v2258, 113
  %v3394 = vpop.permute.xlu0 %3393
  %3395 = vrot.lane.b32.xlu0 %v2262, 113
  %v3396 = vpop.permute.xlu0 %3395
  %3397 = vrot.lane.b32.xlu0 %v2266, 113
  %v3398 = vpop.permute.xlu0 %3397
  %3399 = vrot.lane.b32.xlu0 %v2270, 113
  %v3400 = vpop.permute.xlu0 %3399
  %3401 = vrot.lane.b32.xlu0 %v2259, 113
  %v3402 = vpop.permute.xlu0 %3401
  %3403 = vrot.lane.b32.xlu0 %v2263, 113
  %v3404 = vpop.permute.xlu0 %3403
  %3405 = vrot.lane.b32.xlu0 %v2267, 113
  %v3406 = vpop.permute.xlu0 %3405
  %3407 = vrot.lane.b32.xlu0 %v2271, 113
  %v3408 = vpop.permute.xlu0 %3407
  %3409 = vrot.lane.b32.xlu0 %v2260, 113
  %v3410 = vpop.permute.xlu0 %3409
  %3411 = vrot.lane.b32.xlu0 %v2264, 113
  %v3412 = vpop.permute.xlu0 %3411
  %3413 = vrot.lane.b32.xlu0 %v2268, 113
  %v3414 = vpop.permute.xlu0 %3413
  %3415 = vrot.lane.b32.xlu0 %v2272, 113
  %v3416 = vpop.permute.xlu0 %3415
  %3417 = vrot.lane.b32.xlu0 %v2261, 113
  %v3418 = vpop.permute.xlu0 %3417
  %3419 = vrot.lane.b32.xlu0 %v2265, 113
  %v3420 = vpop.permute.xlu0 %3419
  %3421 = vrot.lane.b32.xlu0 %v2269, 113
  %v3422 = vpop.permute.xlu0 %3421
  %3423 = vrot.lane.b32.xlu0 %v2273, 113
  %v3424 = vpop.permute.xlu0 %3423
  %v3425 = vsel %vm1062, %v3410, %v3418
  %v3426 = vsel %vm1062, %v3412, %v3420
  %v3427 = vsel %vm1062, %v3414, %v3422
  %v3428 = vsel %vm1062, %v3416, %v3424
  %v3429 = vsel %vm1062, %v3402, %v3410
  %v3430 = vsel %vm1062, %v3404, %v3412
  %v3431 = vsel %vm1062, %v3406, %v3414
  %v3432 = vsel %vm1062, %v3408, %v3416
  %v3433 = vsel %vm1062, %v3394, %v3402
  %v3434 = vsel %vm1062, %v3396, %v3404
  %v3435 = vsel %vm1062, %v3398, %v3406
  %v3436 = vsel %vm1062, %v3400, %v3408
  %v3437 = vsel %vm1062, %v3418, %v3394
  %v3438 = vsel %vm1062, %v3420, %v3396
  %v3439 = vsel %vm1062, %v3422, %v3398
  %v3440 = vsel %vm1062, %v3424, %v3400
  %v3441 = vpack.c.bf16 %v3434, %v3433
  %v3442 = vpack.c.bf16 %v3430, %v3429
  %v3443 = vpack.c.bf16 %v3426, %v3425
  %v3444 = vpack.c.bf16 %v3438, %v3437
  %v3445 = vpack.c.bf16 %v3436, %v3435
  %v3446 = vpack.c.bf16 %v3432, %v3431
  %v3447 = vpack.c.bf16 %v3428, %v3427
  %v3448 = vpack.c.bf16 %v3440, %v3439
  %v3453 = vunpack.c.l.b16 %v3389
  %v3454 = vunpack.c.l.b16 %v3390
  %v3455 = vunpack.c.l.b16 %v3391
  %v3456 = vunpack.c.l.b16 %v3392
  %v3457 = vpack.c.b16 %v3454, %v3453
  %v3458 = vpack.c.b16 %v3456, %v3455
  %v3460 = vsel %vm2405, %v3457, 0
  %v3463 = vsel %vm2405, %v3458, 0
  %3465 = vmatprep.subr.bf16.mxu0 %v3442
  %3466 = vmatpush1.bf16.msra.mxu0 %v3441
  %3467 = vmatprep.subr.bf16.mxu0 %v3446
  %3468 = vmatpush1.bf16.msra.mxu0 %v3445
  %3469 = vmatprep.subr.bf16.mxu0 0
  %3470 = vmatpush1.bf16.msra.mxu0 0
  %3471 = vmatprep.subr.bf16.mxu0 0
  %3472 = vmatpush1.bf16.msra.mxu0 0
  %3473 = vmatprep.subr.bf16.mxu0 0
  %3474 = vmatpush1.bf16.msra.mxu0 0
  %3475 = vmatprep.subr.bf16.mxu0 0
  %3476 = vmatpush1.bf16.msra.mxu0 0
  %3477 = vmatprep.subr.bf16.mxu0 0
  %3478 = vmatpush1.bf16.msra.mxu0 0
  %3479 = vmatprep.subr.bf16.mxu0 0
  %3480 = vmatpush1.bf16.msra.mxu0 0
  %3481 = vmatprep.subr.bf16.mxu0 0
  %3482 = vmatpush1.bf16.msra.mxu0 0
  %3483 = vmatprep.subr.bf16.mxu0 0
  %3484 = vmatpush1.bf16.msra.mxu0 0
  %3485 = vmatprep.subr.bf16.mxu0 0
  %3486 = vmatpush1.bf16.msra.mxu0 0
  %3487 = vmatprep.subr.bf16.mxu0 0
  %3488 = vmatpush1.bf16.msra.mxu0 0
  %3489 = vmatprep.subr.bf16.mxu0 0
  %3490 = vmatpush1.bf16.msra.mxu0 0
  %3491 = vmatprep.subr.bf16.mxu0 0
  %3492 = vmatpush1.bf16.msra.mxu0 0
  %3493 = vmatprep.subr.bf16.mxu0 0
  %3494 = vmatpush1.bf16.msra.mxu0 0
  %3495 = vmatprep.subr.bf16.mxu0 0
  %3496 = vmatpush1.bf16.msra.mxu0 0
  %3497 = vmatprep.mubr.bf16.mxu0 0
  %3498 = vmatmul.mubr.bf16.gmra.mrb[0].mxu0 %v3460
  %v3499 = vpop.f32.mrb[0].mxu0
  %v3500 = vadd.f32 0.0, %v3499
  %v3501 = vpop.f32.mrb[0].mxu0
  %v3502 = vadd.f32 0.0, %v3501
  %v3503 = vpop.f32.mrb[0].mxu0
  %v3504 = vadd.f32 0.0, %v3503
  %v3505 = vpop.f32.mrb[0].mxu0
  %v3506 = vadd.f32 0.0, %v3505
  %3507 = vmatprep.mubr.bf16.mxu0 0
  %3508 = vmatmul.mubr.bf16.gmra.mrb[0].mxu0 %v3463
  %v3509 = vpop.f32.mrb[0].mxu0
  %v3510 = vadd.f32 0.0, %v3509
  %v3511 = vpop.f32.mrb[0].mxu0
  %v3512 = vadd.f32 0.0, %v3511
  %v3513 = vpop.f32.mrb[0].mxu0
  %v3514 = vadd.f32 0.0, %v3513
  %v3515 = vpop.f32.mrb[0].mxu0
  %v3516 = vadd.f32 0.0, %v3515
  %3517 = vdwg.mxu0
  %3518 = vmatprep.subr.bf16.mxu0 %v3444
  %3519 = vmatpush1.bf16.msra.mxu0 %v3443
  %3520 = vmatprep.subr.bf16.mxu0 %v3448
  %3521 = vmatpush1.bf16.msra.mxu0 %v3447
  %3522 = vmatprep.subr.bf16.mxu0 0
  %3523 = vmatpush1.bf16.msra.mxu0 0
  %3524 = vmatprep.subr.bf16.mxu0 0
  %3525 = vmatpush1.bf16.msra.mxu0 0
  %3526 = vmatprep.subr.bf16.mxu0 0
  %3527 = vmatpush1.bf16.msra.mxu0 0
  %3528 = vmatprep.subr.bf16.mxu0 0
  %3529 = vmatpush1.bf16.msra.mxu0 0
  %3530 = vmatprep.subr.bf16.mxu0 0
  %3531 = vmatpush1.bf16.msra.mxu0 0
  %3532 = vmatprep.subr.bf16.mxu0 0
  %3533 = vmatpush1.bf16.msra.mxu0 0
  %3534 = vmatprep.subr.bf16.mxu0 0
  %3535 = vmatpush1.bf16.msra.mxu0 0
  %3536 = vmatprep.subr.bf16.mxu0 0
  %3537 = vmatpush1.bf16.msra.mxu0 0
  %3538 = vmatprep.subr.bf16.mxu0 0
  %3539 = vmatpush1.bf16.msra.mxu0 0
  %3540 = vmatprep.subr.bf16.mxu0 0
  %3541 = vmatpush1.bf16.msra.mxu0 0
  %3542 = vmatprep.subr.bf16.mxu0 0
  %3543 = vmatpush1.bf16.msra.mxu0 0
  %3544 = vmatprep.subr.bf16.mxu0 0
  %3545 = vmatpush1.bf16.msra.mxu0 0
  %3546 = vmatprep.subr.bf16.mxu0 0
  %3547 = vmatpush1.bf16.msra.mxu0 0
  %3548 = vmatprep.subr.bf16.mxu0 0
  %3549 = vmatpush1.bf16.msra.mxu0 0
  %3550 = vmatprep.mubr.bf16.mxu0 0
  %3551 = vmatmul.mubr.bf16.gmra.mrb[0].mxu0 %v3460
  %v3552 = vpop.f32.mrb[0].mxu0
  %v3553 = vadd.f32 0.0, %v3552
  %v3554 = vpop.f32.mrb[0].mxu0
  %v3555 = vadd.f32 0.0, %v3554
  %v3556 = vpop.f32.mrb[0].mxu0
  %v3557 = vadd.f32 0.0, %v3556
  %v3558 = vpop.f32.mrb[0].mxu0
  %v3559 = vadd.f32 0.0, %v3558
  %3560 = vmatprep.mubr.bf16.mxu0 0
  %3561 = vmatmul.mubr.bf16.gmra.mrb[0].mxu0 %v3463
  %v3562 = vpop.f32.mrb[0].mxu0
  %v3563 = vadd.f32 0.0, %v3562
  %v3564 = vpop.f32.mrb[0].mxu0
  %v3565 = vadd.f32 0.0, %v3564
  %v3566 = vpop.f32.mrb[0].mxu0
  %v3567 = vadd.f32 0.0, %v3566
  %v3568 = vpop.f32.mrb[0].mxu0
  %v3569 = vadd.f32 0.0, %v3568
  %3570 = vdwg.mxu0
  %v3571 = vadd.f32 %v3372, %v3500
  %v3572 = vadd.f32 %v3373, %v3502
  %v3573 = vadd.f32 %v3374, %v3553
  %v3574 = vadd.f32 %v3375, %v3555
  %v3575 = vadd.f32 %v3376, %v3504
  %v3576 = vadd.f32 %v3377, %v3506
  %v3577 = vadd.f32 %v3378, %v3557
  %v3578 = vadd.f32 %v3379, %v3559
  %v3579 = vadd.f32 %v3380, %v3510
  %v3580 = vadd.f32 %v3381, %v3512
  %v3581 = vadd.f32 %v3382, %v3563
  %v3582 = vadd.f32 %v3383, %v3565
  %v3583 = vadd.f32 %v3384, %v3514
  %v3584 = vadd.f32 %v3385, %v3516
  %v3585 = vadd.f32 %v3386, %v3567
  %v3586 = vadd.f32 %v3387, %v3569
  %s3587 = scalar_lea.vmem %s4, 112
  %v3588 = vld [vmem:[%s3587] sm:$0xf]
  %v3589 = vld [vmem:[%s3587 + $0x4] sm:$0xf]
  %v3590 = vld [vmem:[%s3587 + $0x8] sm:$0xf]
  %v3591 = vld [vmem:[%s3587 + $0xc] sm:$0xf]
  %3592 = vrot.lane.b32.xlu0 %v2258, 112
  %v3593 = vpop.permute.xlu0 %3592
  %3594 = vrot.lane.b32.xlu0 %v2262, 112
  %v3595 = vpop.permute.xlu0 %3594
  %3596 = vrot.lane.b32.xlu0 %v2266, 112
  %v3597 = vpop.permute.xlu0 %3596
  %3598 = vrot.lane.b32.xlu0 %v2270, 112
  %v3599 = vpop.permute.xlu0 %3598
  %3600 = vrot.lane.b32.xlu0 %v2259, 112
  %v3601 = vpop.permute.xlu0 %3600
  %3602 = vrot.lane.b32.xlu0 %v2263, 112
  %v3603 = vpop.permute.xlu0 %3602
  %3604 = vrot.lane.b32.xlu0 %v2267, 112
  %v3605 = vpop.permute.xlu0 %3604
  %3606 = vrot.lane.b32.xlu0 %v2271, 112
  %v3607 = vpop.permute.xlu0 %3606
  %3608 = vrot.lane.b32.xlu0 %v2260, 112
  %v3609 = vpop.permute.xlu0 %3608
  %3610 = vrot.lane.b32.xlu0 %v2264, 112
  %v3611 = vpop.permute.xlu0 %3610
  %3612 = vrot.lane.b32.xlu0 %v2268, 112
  %v3613 = vpop.permute.xlu0 %3612
  %3614 = vrot.lane.b32.xlu0 %v2272, 112
  %v3615 = vpop.permute.xlu0 %3614
  %3616 = vrot.lane.b32.xlu0 %v2261, 112
  %v3617 = vpop.permute.xlu0 %3616
  %3618 = vrot.lane.b32.xlu0 %v2265, 112
  %v3619 = vpop.permute.xlu0 %3618
  %3620 = vrot.lane.b32.xlu0 %v2269, 112
  %v3621 = vpop.permute.xlu0 %3620
  %3622 = vrot.lane.b32.xlu0 %v2273, 112
  %v3623 = vpop.permute.xlu0 %3622
  %v3624 = vsel %vm1234, %v3609, %v3617
  %v3625 = vsel %vm1234, %v3611, %v3619
  %v3626 = vsel %vm1234, %v3613, %v3621
  %v3627 = vsel %vm1234, %v3615, %v3623
  %v3628 = vsel %vm1234, %v3601, %v3609
  %v3629 = vsel %vm1234, %v3603, %v3611
  %v3630 = vsel %vm1234, %v3605, %v3613
  %v3631 = vsel %vm1234, %v3607, %v3615
  %v3632 = vsel %vm1234, %v3593, %v3601
  %v3633 = vsel %vm1234, %v3595, %v3603
  %v3634 = vsel %vm1234, %v3597, %v3605
  %v3635 = vsel %vm1234, %v3599, %v3607
  %v3636 = vsel %vm1234, %v3617, %v3593
  %v3637 = vsel %vm1234, %v3619, %v3595
  %v3638 = vsel %vm1234, %v3621, %v3597
  %v3639 = vsel %vm1234, %v3623, %v3599
  %v3640 = vpack.c.bf16 %v3633, %v3632
  %v3641 = vpack.c.bf16 %v3629, %v3628
  %v3642 = vpack.c.bf16 %v3625, %v3624
  %v3643 = vpack.c.bf16 %v3637, %v3636
  %v3644 = vpack.c.bf16 %v3635, %v3634
  %v3645 = vpack.c.bf16 %v3631, %v3630
  %v3646 = vpack.c.bf16 %v3627, %v3626
  %v3647 = vpack.c.bf16 %v3639, %v3638
  %v3652 = vunpack.c.l.b16 %v3588
  %v3653 = vunpack.c.l.b16 %v3589
  %v3654 = vunpack.c.l.b16 %v3590
  %v3655 = vunpack.c.l.b16 %v3591
  %v3656 = vpack.c.b16 %v3653, %v3652
  %v3657 = vpack.c.b16 %v3655, %v3654
  %v3659 = vsel %vm2405, %v3656, 0
  %v3662 = vsel %vm2405, %v3657, 0
  %3664 = vmatprep.subr.bf16.mxu0 %v3641
  %3665 = vmatpush1.bf16.msra.mxu0 %v3640
  %3666 = vmatprep.subr.bf16.mxu0 %v3645
  %3667 = vmatpush1.bf16.msra.mxu0 %v3644
  %3668 = vmatprep.subr.bf16.mxu0 0
  %3669 = vmatpush1.bf16.msra.mxu0 0
  %3670 = vmatprep.subr.bf16.mxu0 0
  %3671 = vmatpush1.bf16.msra.mxu0 0
  %3672 = vmatprep.subr.bf16.mxu0 0
  %3673 = vmatpush1.bf16.msra.mxu0 0
  %3674 = vmatprep.subr.bf16.mxu0 0
  %3675 = vmatpush1.bf16.msra.mxu0 0
  %3676 = vmatprep.subr.bf16.mxu0 0
  %3677 = vmatpush1.bf16.msra.mxu0 0
  %3678 = vmatprep.subr.bf16.mxu0 0
  %3679 = vmatpush1.bf16.msra.mxu0 0
  %3680 = vmatprep.subr.bf16.mxu0 0
  %3681 = vmatpush1.bf16.msra.mxu0 0
  %3682 = vmatprep.subr.bf16.mxu0 0
  %3683 = vmatpush1.bf16.msra.mxu0 0
  %3684 = vmatprep.subr.bf16.mxu0 0
  %3685 = vmatpush1.bf16.msra.mxu0 0
  %3686 = vmatprep.subr.bf16.mxu0 0
  %3687 = vmatpush1.bf16.msra.mxu0 0
  %3688 = vmatprep.subr.bf16.mxu0 0
  %3689 = vmatpush1.bf16.msra.mxu0 0
  %3690 = vmatprep.subr.bf16.mxu0 0
  %3691 = vmatpush1.bf16.msra.mxu0 0
  %3692 = vmatprep.subr.bf16.mxu0 0
  %3693 = vmatpush1.bf16.msra.mxu0 0
  %3694 = vmatprep.subr.bf16.mxu0 0
  %3695 = vmatpush1.bf16.msra.mxu0 0
  %3696 = vmatprep.mubr.bf16.mxu0 0
  %3697 = vmatmul.mubr.bf16.gmra.mrb[0].mxu0 %v3659
  %v3698 = vpop.f32.mrb[0].mxu0
  %v3699 = vadd.f32 0.0, %v3698
  %v3700 = vpop.f32.mrb[0].mxu0
  %v3701 = vadd.f32 0.0, %v3700
  %v3702 = vpop.f32.mrb[0].mxu0
  %v3703 = vadd.f32 0.0, %v3702
  %v3704 = vpop.f32.mrb[0].mxu0
  %v3705 = vadd.f32 0.0, %v3704
  %3706 = vmatprep.mubr.bf16.mxu0 0
  %3707 = vmatmul.mubr.bf16.gmra.mrb[0].mxu0 %v3662
  %v3708 = vpop.f32.mrb[0].mxu0
  %v3709 = vadd.f32 0.0, %v3708
  %v3710 = vpop.f32.mrb[0].mxu0
  %v3711 = vadd.f32 0.0, %v3710
  %v3712 = vpop.f32.mrb[0].mxu0
  %v3713 = vadd.f32 0.0, %v3712
  %v3714 = vpop.f32.mrb[0].mxu0
  %v3715 = vadd.f32 0.0, %v3714
  %3716 = vdwg.mxu0
  %3717 = vmatprep.subr.bf16.mxu0 %v3643
  %3718 = vmatpush1.bf16.msra.mxu0 %v3642
  %3719 = vmatprep.subr.bf16.mxu0 %v3647
  %3720 = vmatpush1.bf16.msra.mxu0 %v3646
  %3721 = vmatprep.subr.bf16.mxu0 0
  %3722 = vmatpush1.bf16.msra.mxu0 0
  %3723 = vmatprep.subr.bf16.mxu0 0
  %3724 = vmatpush1.bf16.msra.mxu0 0
  %3725 = vmatprep.subr.bf16.mxu0 0
  %3726 = vmatpush1.bf16.msra.mxu0 0
  %3727 = vmatprep.subr.bf16.mxu0 0
  %3728 = vmatpush1.bf16.msra.mxu0 0
  %3729 = vmatprep.subr.bf16.mxu0 0
  %3730 = vmatpush1.bf16.msra.mxu0 0
  %3731 = vmatprep.subr.bf16.mxu0 0
  %3732 = vmatpush1.bf16.msra.mxu0 0
  %3733 = vmatprep.subr.bf16.mxu0 0
  %3734 = vmatpush1.bf16.msra.mxu0 0
  %3735 = vmatprep.subr.bf16.mxu0 0
  %3736 = vmatpush1.bf16.msra.mxu0 0
  %3737 = vmatprep.subr.bf16.mxu0 0
  %3738 = vmatpush1.bf16.msra.mxu0 0
  %3739 = vmatprep.subr.bf16.mxu0 0
  %3740 = vmatpush1.bf16.msra.mxu0 0
  %3741 = vmatprep.subr.bf16.mxu0 0
  %3742 = vmatpush1.bf16.msra.mxu0 0
  %3743 = vmatprep.subr.bf16.mxu0 0
  %3744 = vmatpush1.bf16.msra.mxu0 0
  %3745 = vmatprep.subr.bf16.mxu0 0
  %3746 = vmatpush1.bf16.msra.mxu0 0
  %3747 = vmatprep.subr.bf16.mxu0 0
  %3748 = vmatpush1.bf16.msra.mxu0 0
  %3749 = vmatprep.mubr.bf16.mxu0 0
  %3750 = vmatmul.mubr.bf16.gmra.mrb[0].mxu0 %v3659
  %v3751 = vpop.f32.mrb[0].mxu0
  %v3752 = vadd.f32 0.0, %v3751
  %v3753 = vpop.f32.mrb[0].mxu0
  %v3754 = vadd.f32 0.0, %v3753
  %v3755 = vpop.f32.mrb[0].mxu0
  %v3756 = vadd.f32 0.0, %v3755
  %v3757 = vpop.f32.mrb[0].mxu0
  %v3758 = vadd.f32 0.0, %v3757
  %3759 = vmatprep.mubr.bf16.mxu0 0
  %3760 = vmatmul.mubr.bf16.gmra.mrb[0].mxu0 %v3662
  %v3761 = vpop.f32.mrb[0].mxu0
  %v3762 = vadd.f32 0.0, %v3761
  %v3763 = vpop.f32.mrb[0].mxu0
  %v3764 = vadd.f32 0.0, %v3763
  %v3765 = vpop.f32.mrb[0].mxu0
  %v3766 = vadd.f32 0.0, %v3765
  %v3767 = vpop.f32.mrb[0].mxu0
  %v3768 = vadd.f32 0.0, %v3767
  %3769 = vdwg.mxu0
  %v3770 = vadd.f32 %v3571, %v3699
  %v3771 = vadd.f32 %v3572, %v3701
  %v3772 = vadd.f32 %v3573, %v3752
  %v3773 = vadd.f32 %v3574, %v3754
  %v3774 = vadd.f32 %v3575, %v3703
  %v3775 = vadd.f32 %v3576, %v3705
  %v3776 = vadd.f32 %v3577, %v3756
  %v3777 = vadd.f32 %v3578, %v3758
  %v3778 = vadd.f32 %v3579, %v3709
  %v3779 = vadd.f32 %v3580, %v3711
  %v3780 = vadd.f32 %v3581, %v3762
  %v3781 = vadd.f32 %v3582, %v3764
  %v3782 = vadd.f32 %v3583, %v3713
  %v3783 = vadd.f32 %v3584, %v3715
  %v3784 = vadd.f32 %v3585, %v3766
  %v3785 = vadd.f32 %v3586, %v3768
  %s3786 = scalar_lea.vmem %s4, 128
  %v3787 = vld [vmem:[%s3786] sm:$0xf]
  %v3788 = vld [vmem:[%s3786 + $0x4] sm:$0xf]
  %v3789 = vld [vmem:[%s3786 + $0x8] sm:$0xf]
  %v3790 = vld [vmem:[%s3786 + $0xc] sm:$0xf]
  %3791 = vrot.lane.b32.xlu0 %v2258, 111
  %v3792 = vpop.permute.xlu0 %3791
  %3793 = vrot.lane.b32.xlu0 %v2262, 111
  %v3794 = vpop.permute.xlu0 %3793
  %3795 = vrot.lane.b32.xlu0 %v2266, 111
  %v3796 = vpop.permute.xlu0 %3795
  %3797 = vrot.lane.b32.xlu0 %v2270, 111
  %v3798 = vpop.permute.xlu0 %3797
  %3799 = vrot.lane.b32.xlu0 %v2259, 111
  %v3800 = vpop.permute.xlu0 %3799
  %3801 = vrot.lane.b32.xlu0 %v2263, 111
  %v3802 = vpop.permute.xlu0 %3801
  %3803 = vrot.lane.b32.xlu0 %v2267, 111
  %v3804 = vpop.permute.xlu0 %3803
  %3805 = vrot.lane.b32.xlu0 %v2271, 111
  %v3806 = vpop.permute.xlu0 %3805
  %3807 = vrot.lane.b32.xlu0 %v2260, 111
  %v3808 = vpop.permute.xlu0 %3807
  %3809 = vrot.lane.b32.xlu0 %v2264, 111
  %v3810 = vpop.permute.xlu0 %3809
  %3811 = vrot.lane.b32.xlu0 %v2268, 111
  %v3812 = vpop.permute.xlu0 %3811
  %3813 = vrot.lane.b32.xlu0 %v2272, 111
  %v3814 = vpop.permute.xlu0 %3813
  %3815 = vrot.lane.b32.xlu0 %v2261, 111
  %v3816 = vpop.permute.xlu0 %3815
  %3817 = vrot.lane.b32.xlu0 %v2265, 111
  %v3818 = vpop.permute.xlu0 %3817
  %3819 = vrot.lane.b32.xlu0 %v2269, 111
  %v3820 = vpop.permute.xlu0 %3819
  %3821 = vrot.lane.b32.xlu0 %v2273, 111
  %v3822 = vpop.permute.xlu0 %3821
  %v3823 = vsel %vm1406, %v3808, %v3816
  %v3824 = vsel %vm1406, %v3810, %v3818
  %v3825 = vsel %vm1406, %v3812, %v3820
  %v3826 = vsel %vm1406, %v3814, %v3822
  %v3827 = vsel %vm1406, %v3800, %v3808
  %v3828 = vsel %vm1406, %v3802, %v3810
  %v3829 = vsel %vm1406, %v3804, %v3812
  %v3830 = vsel %vm1406, %v3806, %v3814
  %v3831 = vsel %vm1406, %v3792, %v3800
  %v3832 = vsel %vm1406, %v3794, %v3802
  %v3833 = vsel %vm1406, %v3796, %v3804
  %v3834 = vsel %vm1406, %v3798, %v3806
  %v3835 = vsel %vm1406, %v3816, %v3792
  %v3836 = vsel %vm1406, %v3818, %v3794
  %v3837 = vsel %vm1406, %v3820, %v3796
  %v3838 = vsel %vm1406, %v3822, %v3798
  %v3839 = vpack.c.bf16 %v3832, %v3831
  %v3840 = vpack.c.bf16 %v3828, %v3827
  %v3841 = vpack.c.bf16 %v3824, %v3823
  %v3842 = vpack.c.bf16 %v3836, %v3835
  %v3843 = vpack.c.bf16 %v3834, %v3833
  %v3844 = vpack.c.bf16 %v3830, %v3829
  %v3845 = vpack.c.bf16 %v3826, %v3825
  %v3846 = vpack.c.bf16 %v3838, %v3837
  %v3851 = vunpack.c.l.b16 %v3787
  %v3852 = vunpack.c.l.b16 %v3788
  %v3853 = vunpack.c.l.b16 %v3789
  %v3854 = vunpack.c.l.b16 %v3790
  %v3855 = vpack.c.b16 %v3852, %v3851
  %v3856 = vpack.c.b16 %v3854, %v3853
  %v3858 = vsel %vm2405, %v3855, 0
  %v3861 = vsel %vm2405, %v3856, 0
  %3863 = vmatprep.subr.bf16.mxu0 %v3840
  %3864 = vmatpush1.bf16.msra.mxu0 %v3839
  %3865 = vmatprep.subr.bf16.mxu0 %v3844
  %3866 = vmatpush1.bf16.msra.mxu0 %v3843
  %3867 = vmatprep.subr.bf16.mxu0 0
  %3868 = vmatpush1.bf16.msra.mxu0 0
  %3869 = vmatprep.subr.bf16.mxu0 0
  %3870 = vmatpush1.bf16.msra.mxu0 0
  %3871 = vmatprep.subr.bf16.mxu0 0
  %3872 = vmatpush1.bf16.msra.mxu0 0
  %3873 = vmatprep.subr.bf16.mxu0 0
  %3874 = vmatpush1.bf16.msra.mxu0 0
  %3875 = vmatprep.subr.bf16.mxu0 0
  %3876 = vmatpush1.bf16.msra.mxu0 0
  %3877 = vmatprep.subr.bf16.mxu0 0
  %3878 = vmatpush1.bf16.msra.mxu0 0
  %3879 = vmatprep.subr.bf16.mxu0 0
  %3880 = vmatpush1.bf16.msra.mxu0 0
  %3881 = vmatprep.subr.bf16.mxu0 0
  %3882 = vmatpush1.bf16.msra.mxu0 0
  %3883 = vmatprep.subr.bf16.mxu0 0
  %3884 = vmatpush1.bf16.msra.mxu0 0
  %3885 = vmatprep.subr.bf16.mxu0 0
  %3886 = vmatpush1.bf16.msra.mxu0 0
  %3887 = vmatprep.subr.bf16.mxu0 0
  %3888 = vmatpush1.bf16.msra.mxu0 0
  %3889 = vmatprep.subr.bf16.mxu0 0
  %3890 = vmatpush1.bf16.msra.mxu0 0
  %3891 = vmatprep.subr.bf16.mxu0 0
  %3892 = vmatpush1.bf16.msra.mxu0 0
  %3893 = vmatprep.subr.bf16.mxu0 0
  %3894 = vmatpush1.bf16.msra.mxu0 0
  %3895 = vmatprep.mubr.bf16.mxu0 0
  %3896 = vmatmul.mubr.bf16.gmra.mrb[0].mxu0 %v3858
  %v3897 = vpop.f32.mrb[0].mxu0
  %v3898 = vadd.f32 0.0, %v3897
  %v3899 = vpop.f32.mrb[0].mxu0
  %v3900 = vadd.f32 0.0, %v3899
  %v3901 = vpop.f32.mrb[0].mxu0
  %v3902 = vadd.f32 0.0, %v3901
  %v3903 = vpop.f32.mrb[0].mxu0
  %v3904 = vadd.f32 0.0, %v3903
  %3905 = vmatprep.mubr.bf16.mxu0 0
  %3906 = vmatmul.mubr.bf16.gmra.mrb[0].mxu0 %v3861
  %v3907 = vpop.f32.mrb[0].mxu0
  %v3908 = vadd.f32 0.0, %v3907
  %v3909 = vpop.f32.mrb[0].mxu0
  %v3910 = vadd.f32 0.0, %v3909
  %v3911 = vpop.f32.mrb[0].mxu0
  %v3912 = vadd.f32 0.0, %v3911
  %v3913 = vpop.f32.mrb[0].mxu0
  %v3914 = vadd.f32 0.0, %v3913
  %3915 = vdwg.mxu0
  %3916 = vmatprep.subr.bf16.mxu0 %v3842
  %3917 = vmatpush1.bf16.msra.mxu0 %v3841
  %3918 = vmatprep.subr.bf16.mxu0 %v3846
  %3919 = vmatpush1.bf16.msra.mxu0 %v3845
  %3920 = vmatprep.subr.bf16.mxu0 0
  %3921 = vmatpush1.bf16.msra.mxu0 0
  %3922 = vmatprep.subr.bf16.mxu0 0
  %3923 = vmatpush1.bf16.msra.mxu0 0
  %3924 = vmatprep.subr.bf16.mxu0 0
  %3925 = vmatpush1.bf16.msra.mxu0 0
  %3926 = vmatprep.subr.bf16.mxu0 0
  %3927 = vmatpush1.bf16.msra.mxu0 0
  %3928 = vmatprep.subr.bf16.mxu0 0
  %3929 = vmatpush1.bf16.msra.mxu0 0
  %3930 = vmatprep.subr.bf16.mxu0 0
  %3931 = vmatpush1.bf16.msra.mxu0 0
  %3932 = vmatprep.subr.bf16.mxu0 0
  %3933 = vmatpush1.bf16.msra.mxu0 0
  %3934 = vmatprep.subr.bf16.mxu0 0
  %3935 = vmatpush1.bf16.msra.mxu0 0
  %3936 = vmatprep.subr.bf16.mxu0 0
  %3937 = vmatpush1.bf16.msra.mxu0 0
  %3938 = vmatprep.subr.bf16.mxu0 0
  %3939 = vmatpush1.bf16.msra.mxu0 0
  %3940 = vmatprep.subr.bf16.mxu0 0
  %3941 = vmatpush1.bf16.msra.mxu0 0
  %3942 = vmatprep.subr.bf16.mxu0 0
  %3943 = vmatpush1.bf16.msra.mxu0 0
  %3944 = vmatprep.subr.bf16.mxu0 0
  %3945 = vmatpush1.bf16.msra.mxu0 0
  %3946 = vmatprep.subr.bf16.mxu0 0
  %3947 = vmatpush1.bf16.msra.mxu0 0
  %3948 = vmatprep.mubr.bf16.mxu0 0
  %3949 = vmatmul.mubr.bf16.gmra.mrb[0].mxu0 %v3858
  %v3950 = vpop.f32.mrb[0].mxu0
  %v3951 = vadd.f32 0.0, %v3950
  %v3952 = vpop.f32.mrb[0].mxu0
  %v3953 = vadd.f32 0.0, %v3952
  %v3954 = vpop.f32.mrb[0].mxu0
  %v3955 = vadd.f32 0.0, %v3954
  %v3956 = vpop.f32.mrb[0].mxu0
  %v3957 = vadd.f32 0.0, %v3956
  %3958 = vmatprep.mubr.bf16.mxu0 0
  %3959 = vmatmul.mubr.bf16.gmra.mrb[0].mxu0 %v3861
  %v3960 = vpop.f32.mrb[0].mxu0
  %v3961 = vadd.f32 0.0, %v3960
  %v3962 = vpop.f32.mrb[0].mxu0
  %v3963 = vadd.f32 0.0, %v3962
  %v3964 = vpop.f32.mrb[0].mxu0
  %v3965 = vadd.f32 0.0, %v3964
  %v3966 = vpop.f32.mrb[0].mxu0
  %v3967 = vadd.f32 0.0, %v3966
  %3968 = vdwg.mxu0
  %v3969 = vadd.f32 %v3770, %v3898
  %v3970 = vadd.f32 %v3771, %v3900
  %v3971 = vadd.f32 %v3772, %v3951
  %v3972 = vadd.f32 %v3773, %v3953
  %v3973 = vadd.f32 %v3774, %v3902
  %v3974 = vadd.f32 %v3775, %v3904
  %v3975 = vadd.f32 %v3776, %v3955
  %v3976 = vadd.f32 %v3777, %v3957
  %v3977 = vadd.f32 %v3778, %v3908
  %v3978 = vadd.f32 %v3779, %v3910
  %v3979 = vadd.f32 %v3780, %v3961
  %v3980 = vadd.f32 %v3781, %v3963
  %v3981 = vadd.f32 %v3782, %v3912
  %v3982 = vadd.f32 %v3783, %v3914
  %v3983 = vadd.f32 %v3784, %v3965
  %v3984 = vadd.f32 %v3785, %v3967
  %v3985 = vmul.f32 %v3969, %v1561
  %v3986 = vmul.f32 %v3970, %v1565
  %v3987 = vmul.f32 %v3971, %v1569
  %v3988 = vmul.f32 %v3972, %v1573
  %v3989 = vmul.f32 %v3973, %v1561
  %v3990 = vmul.f32 %v3974, %v1565
  %v3991 = vmul.f32 %v3975, %v1569
  %v3992 = vmul.f32 %v3976, %v1573
  %v3993 = vmul.f32 %v3977, %v1561
  %v3994 = vmul.f32 %v3978, %v1565
  %v3995 = vmul.f32 %v3979, %v1569
  %v3996 = vmul.f32 %v3980, %v1573
  %v3997 = vmul.f32 %v3981, %v1561
  %v3998 = vmul.f32 %v3982, %v1565
  %v3999 = vmul.f32 %v3983, %v1569
  %v4000 = vmul.f32 %v3984, %v1573
  %v4001 = vadd.f32 %v3985, %v3986
  %v4002 = vadd.f32 %v4001, %v3987
  %v4003 = vadd.f32 %v4002, %v3988
  %4004 = vadd.xlane.f32.xlu0 %v4003
  %v4005 = vpop.xlane.xlu0 %4004
  %v4006 = vadd.f32 %v3989, %v3990
  %v4007 = vadd.f32 %v4006, %v3991
  %v4008 = vadd.f32 %v4007, %v3992
  %4009 = vadd.xlane.f32.xlu0 %v4008
  %v4010 = vpop.xlane.xlu0 %4009
  %v4011 = vadd.f32 %v3993, %v3994
  %v4012 = vadd.f32 %v4011, %v3995
  %v4013 = vadd.f32 %v4012, %v3996
  %4014 = vadd.xlane.f32.xlu0 %v4013
  %v4015 = vpop.xlane.xlu0 %4014
  %v4016 = vadd.f32 %v3997, %v3998
  %v4017 = vadd.f32 %v4016, %v3999
  %v4018 = vadd.f32 %v4017, %v4000
  %4019 = vadd.xlane.f32.xlu0 %v4018
  %v4020 = vpop.xlane.xlu0 %4019
  %v4021 = vmul.f32 %v4005, 0.0025510204
  %v4022 = vmul.f32 %v4010, 0.0025510204
  %v4023 = vmul.f32 %v4015, 0.0025510204
  %v4024 = vmul.f32 %v4020, 0.0025510204
  %v4025 = vsub.f32 %v3969, %v4021
  %v4026 = vsub.f32 %v3970, %v4021
  %v4027 = vsub.f32 %v3971, %v4021
  %v4028 = vsub.f32 %v3972, %v4021
  %v4029 = vsub.f32 %v3973, %v4022
  %v4030 = vsub.f32 %v3974, %v4022
  %v4031 = vsub.f32 %v3975, %v4022
  %v4032 = vsub.f32 %v3976, %v4022
  %v4033 = vsub.f32 %v3977, %v4023
  %v4034 = vsub.f32 %v3978, %v4023
  %v4035 = vsub.f32 %v3979, %v4023
  %v4036 = vsub.f32 %v3980, %v4023
  %v4037 = vsub.f32 %v3981, %v4024
  %v4038 = vsub.f32 %v3982, %v4024
  %v4039 = vsub.f32 %v3983, %v4024
  %v4040 = vsub.f32 %v3984, %v4024
  %v4041 = vmul.f32 %v4025, %v1561
  %v4042 = vmul.f32 %v4026, %v1565
  %v4043 = vmul.f32 %v4027, %v1569
  %v4044 = vmul.f32 %v4028, %v1573
  %v4045 = vmul.f32 %v4029, %v1561
  %v4046 = vmul.f32 %v4030, %v1565
  %v4047 = vmul.f32 %v4031, %v1569
  %v4048 = vmul.f32 %v4032, %v1573
  %v4049 = vmul.f32 %v4033, %v1561
  %v4050 = vmul.f32 %v4034, %v1565
  %v4051 = vmul.f32 %v4035, %v1569
  %v4052 = vmul.f32 %v4036, %v1573
  %v4053 = vmul.f32 %v4037, %v1561
  %v4054 = vmul.f32 %v4038, %v1565
  %v4055 = vmul.f32 %v4039, %v1569
  %v4056 = vmul.f32 %v4040, %v1573
  %v4057 = vmul.f32 %v4041, %v4041
  %v4058 = vmul.f32 %v4042, %v4042
  %v4059 = vmul.f32 %v4043, %v4043
  %v4060 = vmul.f32 %v4044, %v4044
  %v4061 = vmul.f32 %v4045, %v4045
  %v4062 = vmul.f32 %v4046, %v4046
  %v4063 = vmul.f32 %v4047, %v4047
  %v4064 = vmul.f32 %v4048, %v4048
  %v4065 = vmul.f32 %v4049, %v4049
  %v4066 = vmul.f32 %v4050, %v4050
  %v4067 = vmul.f32 %v4051, %v4051
  %v4068 = vmul.f32 %v4052, %v4052
  %v4069 = vmul.f32 %v4053, %v4053
  %v4070 = vmul.f32 %v4054, %v4054
  %v4071 = vmul.f32 %v4055, %v4055
  %v4072 = vmul.f32 %v4056, %v4056
  %v4073 = vadd.f32 %v4057, %v4058
  %v4074 = vadd.f32 %v4073, %v4059
  %v4075 = vadd.f32 %v4074, %v4060
  %4076 = vadd.xlane.f32.xlu0 %v4075
  %v4077 = vpop.xlane.xlu0 %4076
  %v4078 = vadd.f32 %v4061, %v4062
  %v4079 = vadd.f32 %v4078, %v4063
  %v4080 = vadd.f32 %v4079, %v4064
  %4081 = vadd.xlane.f32.xlu0 %v4080
  %v4082 = vpop.xlane.xlu0 %4081
  %v4083 = vadd.f32 %v4065, %v4066
  %v4084 = vadd.f32 %v4083, %v4067
  %v4085 = vadd.f32 %v4084, %v4068
  %4086 = vadd.xlane.f32.xlu0 %v4085
  %v4087 = vpop.xlane.xlu0 %4086
  %v4088 = vadd.f32 %v4069, %v4070
  %v4089 = vadd.f32 %v4088, %v4071
  %v4090 = vadd.f32 %v4089, %v4072
  %4091 = vadd.xlane.f32.xlu0 %v4090
  %v4092 = vpop.xlane.xlu0 %4091
  %v4093 = vmul.f32 %v4077, 0.0025510204
  %v4094 = vmul.f32 %v4082, 0.0025510204
  %v4095 = vmul.f32 %v4087, 0.0025510204
  %v4096 = vmul.f32 %v4092, 0.0025510204
  %v4097 = vld [vmem:[%s5] sm:$0xff]
  %v4098 = vld [vmem:[%s5 + $0x8] sm:$0xff]
  %v4099 = vld [vmem:[%s5 + $0x10] sm:$0xff]
  %v4100 = vld [vmem:[%s5 + $0x18] sm:$0xff]
  %v4101 = vadd.f32 %v4093, 1e-05
  %v4102 = vadd.f32 %v4094, 1e-05
  %v4103 = vadd.f32 %v4095, 1e-05
  %v4104 = vadd.f32 %v4096, 1e-05
  %v4105 = vrsqrt.pop %v4101
  %v4106 = vrsqrt.pop %v4102
  %v4107 = vrsqrt.pop %v4103
  %v4108 = vrsqrt.pop %v4104
  %v4109 = vmul.f32 %v4097, %v4105
  %v4110 = vmul.f32 %v4098, %v4106
  %v4111 = vmul.f32 %v4099, %v4107
  %v4112 = vmul.f32 %v4100, %v4108
  %v4113 = vld [vmem:[%s6] sm:$0xff]
  %v4114 = vld [vmem:[%s6 + $0x8] sm:$0xff]
  %v4115 = vld [vmem:[%s6 + $0x10] sm:$0xff]
  %v4116 = vld [vmem:[%s6 + $0x18] sm:$0xff]
  %v4117 = vmul.f32 %v4021, %v4109
  %v4118 = vmul.f32 %v4022, %v4110
  %v4119 = vmul.f32 %v4023, %v4111
  %v4120 = vmul.f32 %v4024, %v4112
  %v4121 = vsub.f32 %v4113, %v4117
  %v4122 = vsub.f32 %v4114, %v4118
  %v4123 = vsub.f32 %v4115, %v4119
  %v4124 = vsub.f32 %v4116, %v4120
  %4126 = vset.pattern.permute.xlu0 0
  %4127 = vperm.xlu0 %4126, %v4109
  %v4128 = vpop.permute.xlu0 %4127
  %4131 = vset.pattern.permute.xlu0 0
  %4132 = vperm.xlu0 %4131, %v4110
  %v4133 = vpop.permute.xlu0 %4132
  %4136 = vset.pattern.permute.xlu0 0
  %4137 = vperm.xlu0 %4136, %v4111
  %v4138 = vpop.permute.xlu0 %4137
  %4141 = vset.pattern.permute.xlu0 0
  %4142 = vperm.xlu0 %4141, %v4112
  %v4143 = vpop.permute.xlu0 %4142
  %v4145 = vmul.f32 %v3969, %v4128
  %v4146 = vmul.f32 %v3970, %v4128
  %v4147 = vmul.f32 %v3971, %v4128
  %v4148 = vmul.f32 %v3972, %v4128
  %v4149 = vmul.f32 %v3973, %v4133
  %v4150 = vmul.f32 %v3974, %v4133
  %v4151 = vmul.f32 %v3975, %v4133
  %v4152 = vmul.f32 %v3976, %v4133
  %v4153 = vmul.f32 %v3977, %v4138
  %v4154 = vmul.f32 %v3978, %v4138
  %v4155 = vmul.f32 %v3979, %v4138
  %v4156 = vmul.f32 %v3980, %v4138
  %v4157 = vmul.f32 %v3981, %v4143
  %v4158 = vmul.f32 %v3982, %v4143
  %v4159 = vmul.f32 %v3983, %v4143
  %v4160 = vmul.f32 %v3984, %v4143
  %4162 = vset.pattern.permute.xlu0 0
  %4163 = vperm.xlu0 %4162, %v4121
  %v4164 = vpop.permute.xlu0 %4163
  %4167 = vset.pattern.permute.xlu0 0
  %4168 = vperm.xlu0 %4167, %v4122
  %v4169 = vpop.permute.xlu0 %4168
  %4172 = vset.pattern.permute.xlu0 0
  %4173 = vperm.xlu0 %4172, %v4123
  %v4174 = vpop.permute.xlu0 %4173
  %4177 = vset.pattern.permute.xlu0 0
  %4178 = vperm.xlu0 %4177, %v4124
  %v4179 = vpop.permute.xlu0 %4178
  %v4181 = vadd.f32 %v4145, %v4164
  %v4182 = vadd.f32 %v4146, %v4164
  %v4183 = vadd.f32 %v4147, %v4164
  %v4184 = vadd.f32 %v4148, %v4164
  %v4185 = vadd.f32 %v4149, %v4169
  %v4186 = vadd.f32 %v4150, %v4169
  %v4187 = vadd.f32 %v4151, %v4169
  %v4188 = vadd.f32 %v4152, %v4169
  %v4189 = vadd.f32 %v4153, %v4174
  %v4190 = vadd.f32 %v4154, %v4174
  %v4191 = vadd.f32 %v4155, %v4174
  %v4192 = vadd.f32 %v4156, %v4174
  %v4193 = vadd.f32 %v4157, %v4179
  %v4194 = vadd.f32 %v4158, %v4179
  %v4195 = vadd.f32 %v4159, %v4179
  %v4196 = vadd.f32 %v4160, %v4179
  %v4197 = vmax.f32 %v4181, 0.0
  %v4198 = vmax.f32 %v4182, 0.0
  %v4199 = vmax.f32 %v4183, 0.0
  %v4200 = vmax.f32 %v4184, 0.0
  %v4201 = vmax.f32 %v4185, 0.0
  %v4202 = vmax.f32 %v4186, 0.0
  %v4203 = vmax.f32 %v4187, 0.0
  %v4204 = vmax.f32 %v4188, 0.0
  %v4205 = vmax.f32 %v4189, 0.0
  %v4206 = vmax.f32 %v4190, 0.0
  %v4207 = vmax.f32 %v4191, 0.0
  %v4208 = vmax.f32 %v4192, 0.0
  %v4209 = vmax.f32 %v4193, 0.0
  %v4210 = vmax.f32 %v4194, 0.0
  %v4211 = vmax.f32 %v4195, 0.0
  %v4212 = vmax.f32 %v4196, 0.0
  %4213 = vrot.lane.b32.xlu0 %v4197, 127
  %v4214 = vpop.permute.xlu0 %4213
  %4215 = vrot.lane.b32.xlu0 %v4201, 127
  %v4216 = vpop.permute.xlu0 %4215
  %4217 = vrot.lane.b32.xlu0 %v4205, 127
  %v4218 = vpop.permute.xlu0 %4217
  %4219 = vrot.lane.b32.xlu0 %v4209, 127
  %v4220 = vpop.permute.xlu0 %4219
  %4221 = vrot.lane.b32.xlu0 %v4198, 127
  %v4222 = vpop.permute.xlu0 %4221
  %4223 = vrot.lane.b32.xlu0 %v4202, 127
  %v4224 = vpop.permute.xlu0 %4223
  %4225 = vrot.lane.b32.xlu0 %v4206, 127
  %v4226 = vpop.permute.xlu0 %4225
  %4227 = vrot.lane.b32.xlu0 %v4210, 127
  %v4228 = vpop.permute.xlu0 %4227
  %4229 = vrot.lane.b32.xlu0 %v4199, 127
  %v4230 = vpop.permute.xlu0 %4229
  %4231 = vrot.lane.b32.xlu0 %v4203, 127
  %v4232 = vpop.permute.xlu0 %4231
  %4233 = vrot.lane.b32.xlu0 %v4207, 127
  %v4234 = vpop.permute.xlu0 %4233
  %4235 = vrot.lane.b32.xlu0 %v4211, 127
  %v4236 = vpop.permute.xlu0 %4235
  %4237 = vrot.lane.b32.xlu0 %v4200, 127
  %v4238 = vpop.permute.xlu0 %4237
  %4239 = vrot.lane.b32.xlu0 %v4204, 127
  %v4240 = vpop.permute.xlu0 %4239
  %4241 = vrot.lane.b32.xlu0 %v4208, 127
  %v4242 = vpop.permute.xlu0 %4241
  %4243 = vrot.lane.b32.xlu0 %v4212, 127
  %v4244 = vpop.permute.xlu0 %4243
  %v4245 = vsel %vm890, %v4230, %v4238
  %v4246 = vsel %vm890, %v4232, %v4240
  %v4247 = vsel %vm890, %v4234, %v4242
  %v4248 = vsel %vm890, %v4236, %v4244
  %v4249 = vsel %vm890, %v4222, %v4230
  %v4250 = vsel %vm890, %v4224, %v4232
  %v4251 = vsel %vm890, %v4226, %v4234
  %v4252 = vsel %vm890, %v4228, %v4236
  %v4253 = vsel %vm890, %v4214, %v4222
  %v4254 = vsel %vm890, %v4216, %v4224
  %v4255 = vsel %vm890, %v4218, %v4226
  %v4256 = vsel %vm890, %v4220, %v4228
  %v4257 = vsel %vm890, %v4238, %v4214
  %v4258 = vsel %vm890, %v4240, %v4216
  %v4259 = vsel %vm890, %v4242, %v4218
  %v4260 = vsel %vm890, %v4244, %v4220
  %v4261 = vsub.f32 %v4253, %v4197
  %v4262 = vsub.f32 %v4249, %v4198
  %v4263 = vsub.f32 %v4245, %v4199
  %v4264 = vsub.f32 %v4257, %v4200
  %v4265 = vsub.f32 %v4254, %v4201
  %v4266 = vsub.f32 %v4250, %v4202
  %v4267 = vsub.f32 %v4246, %v4203
  %v4268 = vsub.f32 %v4258, %v4204
  %v4269 = vsub.f32 %v4255, %v4205
  %v4270 = vsub.f32 %v4251, %v4206
  %v4271 = vsub.f32 %v4247, %v4207
  %v4272 = vsub.f32 %v4259, %v4208
  %v4273 = vsub.f32 %v4256, %v4209
  %v4274 = vsub.f32 %v4252, %v4210
  %v4275 = vsub.f32 %v4248, %v4211
  %v4276 = vsub.f32 %v4260, %v4212
  %v4277 = vmul.f32 %v1874, %v4261
  %v4278 = vmul.f32 %v1878, %v4262
  %v4279 = vmul.f32 %v1882, %v4263
  %v4280 = vmul.f32 %v1886, %v4264
  %v4281 = vmul.f32 %v1874, %v4265
  %v4282 = vmul.f32 %v1878, %v4266
  %v4283 = vmul.f32 %v1882, %v4267
  %v4284 = vmul.f32 %v1886, %v4268
  %v4285 = vmul.f32 %v1874, %v4269
  %v4286 = vmul.f32 %v1878, %v4270
  %v4287 = vmul.f32 %v1882, %v4271
  %v4288 = vmul.f32 %v1886, %v4272
  %v4289 = vmul.f32 %v1874, %v4273
  %v4290 = vmul.f32 %v1878, %v4274
  %v4291 = vmul.f32 %v1882, %v4275
  %v4292 = vmul.f32 %v1886, %v4276
  %v4293 = vadd.f32 %v4197, %v4277
  %v4294 = vadd.f32 %v4198, %v4278
  %v4295 = vadd.f32 %v4199, %v4279
  %v4296 = vadd.f32 %v4200, %v4280
  %v4297 = vadd.f32 %v4201, %v4281
  %v4298 = vadd.f32 %v4202, %v4282
  %v4299 = vadd.f32 %v4203, %v4283
  %v4300 = vadd.f32 %v4204, %v4284
  %v4301 = vadd.f32 %v4205, %v4285
  %v4302 = vadd.f32 %v4206, %v4286
  %v4303 = vadd.f32 %v4207, %v4287
  %v4304 = vadd.f32 %v4208, %v4288
  %v4305 = vadd.f32 %v4209, %v4289
  %v4306 = vadd.f32 %v4210, %v4290
  %v4307 = vadd.f32 %v4211, %v4291
  %v4308 = vadd.f32 %v4212, %v4292
  %4309 = vrot.lane.b32.xlu0 %v4197, 1
  %v4310 = vpop.permute.xlu0 %4309
  %4311 = vrot.lane.b32.xlu0 %v4201, 1
  %v4312 = vpop.permute.xlu0 %4311
  %4313 = vrot.lane.b32.xlu0 %v4205, 1
  %v4314 = vpop.permute.xlu0 %4313
  %4315 = vrot.lane.b32.xlu0 %v4209, 1
  %v4316 = vpop.permute.xlu0 %4315
  %4317 = vrot.lane.b32.xlu0 %v4198, 1
  %v4318 = vpop.permute.xlu0 %4317
  %4319 = vrot.lane.b32.xlu0 %v4202, 1
  %v4320 = vpop.permute.xlu0 %4319
  %4321 = vrot.lane.b32.xlu0 %v4206, 1
  %v4322 = vpop.permute.xlu0 %4321
  %4323 = vrot.lane.b32.xlu0 %v4210, 1
  %v4324 = vpop.permute.xlu0 %4323
  %4325 = vrot.lane.b32.xlu0 %v4199, 1
  %v4326 = vpop.permute.xlu0 %4325
  %4327 = vrot.lane.b32.xlu0 %v4203, 1
  %v4328 = vpop.permute.xlu0 %4327
  %4329 = vrot.lane.b32.xlu0 %v4207, 1
  %v4330 = vpop.permute.xlu0 %4329
  %4331 = vrot.lane.b32.xlu0 %v4211, 1
  %v4332 = vpop.permute.xlu0 %4331
  %4333 = vrot.lane.b32.xlu0 %v4200, 1
  %v4334 = vpop.permute.xlu0 %4333
  %4335 = vrot.lane.b32.xlu0 %v4204, 1
  %v4336 = vpop.permute.xlu0 %4335
  %4337 = vrot.lane.b32.xlu0 %v4208, 1
  %v4338 = vpop.permute.xlu0 %4337
  %4339 = vrot.lane.b32.xlu0 %v4212, 1
  %v4340 = vpop.permute.xlu0 %4339
  %v4341 = vsel %vm571, %v4326, %v4334
  %v4342 = vsel %vm571, %v4328, %v4336
  %v4343 = vsel %vm571, %v4330, %v4338
  %v4344 = vsel %vm571, %v4332, %v4340
  %v4345 = vsel %vm571, %v4318, %v4326
  %v4346 = vsel %vm571, %v4320, %v4328
  %v4347 = vsel %vm571, %v4322, %v4330
  %v4348 = vsel %vm571, %v4324, %v4332
  %v4349 = vsel %vm571, %v4310, %v4318
  %v4350 = vsel %vm571, %v4312, %v4320
  %v4351 = vsel %vm571, %v4314, %v4322
  %v4352 = vsel %vm571, %v4316, %v4324
  %v4353 = vsel %vm571, %v4334, %v4310
  %v4354 = vsel %vm571, %v4336, %v4312
  %v4355 = vsel %vm571, %v4338, %v4314
  %v4356 = vsel %vm571, %v4340, %v4316
  %v4357 = vsub.f32 %v4353, %v4197
  %v4358 = vsub.f32 %v4349, %v4198
  %v4359 = vsub.f32 %v4345, %v4199
  %v4360 = vsub.f32 %v4341, %v4200
  %v4361 = vsub.f32 %v4354, %v4201
  %v4362 = vsub.f32 %v4350, %v4202
  %v4363 = vsub.f32 %v4346, %v4203
  %v4364 = vsub.f32 %v4342, %v4204
  %v4365 = vsub.f32 %v4355, %v4205
  %v4366 = vsub.f32 %v4351, %v4206
  %v4367 = vsub.f32 %v4347, %v4207
  %v4368 = vsub.f32 %v4343, %v4208
  %v4369 = vsub.f32 %v4356, %v4209
  %v4370 = vsub.f32 %v4352, %v4210
  %v4371 = vsub.f32 %v4348, %v4211
  %v4372 = vsub.f32 %v4344, %v4212
  %v4373 = vmul.f32 %v1991, %v4357
  %v4374 = vmul.f32 %v1995, %v4358
  %v4375 = vmul.f32 %v1999, %v4359
  %v4376 = vmul.f32 %v2003, %v4360
  %v4377 = vmul.f32 %v1991, %v4361
  %v4378 = vmul.f32 %v1995, %v4362
  %v4379 = vmul.f32 %v1999, %v4363
  %v4380 = vmul.f32 %v2003, %v4364
  %v4381 = vmul.f32 %v1991, %v4365
  %v4382 = vmul.f32 %v1995, %v4366
  %v4383 = vmul.f32 %v1999, %v4367
  %v4384 = vmul.f32 %v2003, %v4368
  %v4385 = vmul.f32 %v1991, %v4369
  %v4386 = vmul.f32 %v1995, %v4370
  %v4387 = vmul.f32 %v1999, %v4371
  %v4388 = vmul.f32 %v2003, %v4372
  %v4389 = vadd.f32 %v4293, %v4373
  %v4390 = vadd.f32 %v4294, %v4374
  %v4391 = vadd.f32 %v4295, %v4375
  %v4392 = vadd.f32 %v4296, %v4376
  %v4393 = vadd.f32 %v4297, %v4377
  %v4394 = vadd.f32 %v4298, %v4378
  %v4395 = vadd.f32 %v4299, %v4379
  %v4396 = vadd.f32 %v4300, %v4380
  %v4397 = vadd.f32 %v4301, %v4381
  %v4398 = vadd.f32 %v4302, %v4382
  %v4399 = vadd.f32 %v4303, %v4383
  %v4400 = vadd.f32 %v4304, %v4384
  %v4401 = vadd.f32 %v4305, %v4385
  %v4402 = vadd.f32 %v4306, %v4386
  %v4403 = vadd.f32 %v4307, %v4387
  %v4404 = vadd.f32 %v4308, %v4388
  %4405 = vrot.lane.b32.xlu0 %v4389, 112
  %v4406 = vpop.permute.xlu0 %4405
  %4407 = vrot.lane.b32.xlu0 %v4393, 112
  %v4408 = vpop.permute.xlu0 %4407
  %4409 = vrot.lane.b32.xlu0 %v4397, 112
  %v4410 = vpop.permute.xlu0 %4409
  %4411 = vrot.lane.b32.xlu0 %v4401, 112
  %v4412 = vpop.permute.xlu0 %4411
  %4413 = vrot.lane.b32.xlu0 %v4390, 112
  %v4414 = vpop.permute.xlu0 %4413
  %4415 = vrot.lane.b32.xlu0 %v4394, 112
  %v4416 = vpop.permute.xlu0 %4415
  %4417 = vrot.lane.b32.xlu0 %v4398, 112
  %v4418 = vpop.permute.xlu0 %4417
  %4419 = vrot.lane.b32.xlu0 %v4402, 112
  %v4420 = vpop.permute.xlu0 %4419
  %4421 = vrot.lane.b32.xlu0 %v4391, 112
  %v4422 = vpop.permute.xlu0 %4421
  %4423 = vrot.lane.b32.xlu0 %v4395, 112
  %v4424 = vpop.permute.xlu0 %4423
  %4425 = vrot.lane.b32.xlu0 %v4399, 112
  %v4426 = vpop.permute.xlu0 %4425
  %4427 = vrot.lane.b32.xlu0 %v4403, 112
  %v4428 = vpop.permute.xlu0 %4427
  %4429 = vrot.lane.b32.xlu0 %v4392, 112
  %v4430 = vpop.permute.xlu0 %4429
  %4431 = vrot.lane.b32.xlu0 %v4396, 112
  %v4432 = vpop.permute.xlu0 %4431
  %4433 = vrot.lane.b32.xlu0 %v4400, 112
  %v4434 = vpop.permute.xlu0 %4433
  %4435 = vrot.lane.b32.xlu0 %v4404, 112
  %v4436 = vpop.permute.xlu0 %4435
  %v4437 = vsel %vm1234, %v4422, %v4430
  %v4438 = vsel %vm1234, %v4424, %v4432
  %v4439 = vsel %vm1234, %v4426, %v4434
  %v4440 = vsel %vm1234, %v4428, %v4436
  %v4441 = vsel %vm1234, %v4414, %v4422
  %v4442 = vsel %vm1234, %v4416, %v4424
  %v4443 = vsel %vm1234, %v4418, %v4426
  %v4444 = vsel %vm1234, %v4420, %v4428
  %v4445 = vsel %vm1234, %v4406, %v4414
  %v4446 = vsel %vm1234, %v4408, %v4416
  %v4447 = vsel %vm1234, %v4410, %v4418
  %v4448 = vsel %vm1234, %v4412, %v4420
  %v4449 = vsel %vm1234, %v4430, %v4406
  %v4450 = vsel %vm1234, %v4432, %v4408
  %v4451 = vsel %vm1234, %v4434, %v4410
  %v4452 = vsel %vm1234, %v4436, %v4412
  %v4453 = vsub.f32 %v4445, %v4389
  %v4454 = vsub.f32 %v4441, %v4390
  %v4455 = vsub.f32 %v4437, %v4391
  %v4456 = vsub.f32 %v4449, %v4392
  %v4457 = vsub.f32 %v4446, %v4393
  %v4458 = vsub.f32 %v4442, %v4394
  %v4459 = vsub.f32 %v4438, %v4395
  %v4460 = vsub.f32 %v4450, %v4396
  %v4461 = vsub.f32 %v4447, %v4397
  %v4462 = vsub.f32 %v4443, %v4398
  %v4463 = vsub.f32 %v4439, %v4399
  %v4464 = vsub.f32 %v4451, %v4400
  %v4465 = vsub.f32 %v4448, %v4401
  %v4466 = vsub.f32 %v4444, %v4402
  %v4467 = vsub.f32 %v4440, %v4403
  %v4468 = vsub.f32 %v4452, %v4404
  %v4469 = vmul.f32 %v2108, %v4453
  %v4470 = vmul.f32 %v2112, %v4454
  %v4471 = vmul.f32 %v2116, %v4455
  %v4472 = vmul.f32 %v2120, %v4456
  %v4473 = vmul.f32 %v2108, %v4457
  %v4474 = vmul.f32 %v2112, %v4458
  %v4475 = vmul.f32 %v2116, %v4459
  %v4476 = vmul.f32 %v2120, %v4460
  %v4477 = vmul.f32 %v2108, %v4461
  %v4478 = vmul.f32 %v2112, %v4462
  %v4479 = vmul.f32 %v2116, %v4463
  %v4480 = vmul.f32 %v2120, %v4464
  %v4481 = vmul.f32 %v2108, %v4465
  %v4482 = vmul.f32 %v2112, %v4466
  %v4483 = vmul.f32 %v2116, %v4467
  %v4484 = vmul.f32 %v2120, %v4468
  %v4485 = vadd.f32 %v4389, %v4469
  %v4486 = vadd.f32 %v4390, %v4470
  %v4487 = vadd.f32 %v4391, %v4471
  %v4488 = vadd.f32 %v4392, %v4472
  %v4489 = vadd.f32 %v4393, %v4473
  %v4490 = vadd.f32 %v4394, %v4474
  %v4491 = vadd.f32 %v4395, %v4475
  %v4492 = vadd.f32 %v4396, %v4476
  %v4493 = vadd.f32 %v4397, %v4477
  %v4494 = vadd.f32 %v4398, %v4478
  %v4495 = vadd.f32 %v4399, %v4479
  %v4496 = vadd.f32 %v4400, %v4480
  %v4497 = vadd.f32 %v4401, %v4481
  %v4498 = vadd.f32 %v4402, %v4482
  %v4499 = vadd.f32 %v4403, %v4483
  %v4500 = vadd.f32 %v4404, %v4484
  %4501 = vrot.lane.b32.xlu0 %v4389, 16
  %v4502 = vpop.permute.xlu0 %4501
  %4503 = vrot.lane.b32.xlu0 %v4393, 16
  %v4504 = vpop.permute.xlu0 %4503
  %4505 = vrot.lane.b32.xlu0 %v4397, 16
  %v4506 = vpop.permute.xlu0 %4505
  %4507 = vrot.lane.b32.xlu0 %v4401, 16
  %v4508 = vpop.permute.xlu0 %4507
  %4509 = vrot.lane.b32.xlu0 %v4390, 16
  %v4510 = vpop.permute.xlu0 %4509
  %4511 = vrot.lane.b32.xlu0 %v4394, 16
  %v4512 = vpop.permute.xlu0 %4511
  %4513 = vrot.lane.b32.xlu0 %v4398, 16
  %v4514 = vpop.permute.xlu0 %4513
  %4515 = vrot.lane.b32.xlu0 %v4402, 16
  %v4516 = vpop.permute.xlu0 %4515
  %4517 = vrot.lane.b32.xlu0 %v4391, 16
  %v4518 = vpop.permute.xlu0 %4517
  %4519 = vrot.lane.b32.xlu0 %v4395, 16
  %v4520 = vpop.permute.xlu0 %4519
  %4521 = vrot.lane.b32.xlu0 %v4399, 16
  %v4522 = vpop.permute.xlu0 %4521
  %4523 = vrot.lane.b32.xlu0 %v4403, 16
  %v4524 = vpop.permute.xlu0 %4523
  %4525 = vrot.lane.b32.xlu0 %v4392, 16
  %v4526 = vpop.permute.xlu0 %4525
  %4527 = vrot.lane.b32.xlu0 %v4396, 16
  %v4528 = vpop.permute.xlu0 %4527
  %4529 = vrot.lane.b32.xlu0 %v4400, 16
  %v4530 = vpop.permute.xlu0 %4529
  %4531 = vrot.lane.b32.xlu0 %v4404, 16
  %v4532 = vpop.permute.xlu0 %4531
  %v4533 = vsel %vm120, %v4518, %v4526
  %v4534 = vsel %vm120, %v4520, %v4528
  %v4535 = vsel %vm120, %v4522, %v4530
  %v4536 = vsel %vm120, %v4524, %v4532
  %v4537 = vsel %vm120, %v4510, %v4518
  %v4538 = vsel %vm120, %v4512, %v4520
  %v4539 = vsel %vm120, %v4514, %v4522
  %v4540 = vsel %vm120, %v4516, %v4524
  %v4541 = vsel %vm120, %v4502, %v4510
  %v4542 = vsel %vm120, %v4504, %v4512
  %v4543 = vsel %vm120, %v4506, %v4514
  %v4544 = vsel %vm120, %v4508, %v4516
  %v4545 = vsel %vm120, %v4526, %v4502
  %v4546 = vsel %vm120, %v4528, %v4504
  %v4547 = vsel %vm120, %v4530, %v4506
  %v4548 = vsel %vm120, %v4532, %v4508
  %v4549 = vsub.f32 %v4545, %v4389
  %v4550 = vsub.f32 %v4541, %v4390
  %v4551 = vsub.f32 %v4537, %v4391
  %v4552 = vsub.f32 %v4533, %v4392
  %v4553 = vsub.f32 %v4546, %v4393
  %v4554 = vsub.f32 %v4542, %v4394
  %v4555 = vsub.f32 %v4538, %v4395
  %v4556 = vsub.f32 %v4534, %v4396
  %v4557 = vsub.f32 %v4547, %v4397
  %v4558 = vsub.f32 %v4543, %v4398
  %v4559 = vsub.f32 %v4539, %v4399
  %v4560 = vsub.f32 %v4535, %v4400
  %v4561 = vsub.f32 %v4548, %v4401
  %v4562 = vsub.f32 %v4544, %v4402
  %v4563 = vsub.f32 %v4540, %v4403
  %v4564 = vsub.f32 %v4536, %v4404
  %v4565 = vmul.f32 %v2225, %v4549
  %v4566 = vmul.f32 %v2229, %v4550
  %v4567 = vmul.f32 %v2233, %v4551
  %v4568 = vmul.f32 %v2237, %v4552
  %v4569 = vmul.f32 %v2225, %v4553
  %v4570 = vmul.f32 %v2229, %v4554
  %v4571 = vmul.f32 %v2233, %v4555
  %v4572 = vmul.f32 %v2237, %v4556
  %v4573 = vmul.f32 %v2225, %v4557
  %v4574 = vmul.f32 %v2229, %v4558
  %v4575 = vmul.f32 %v2233, %v4559
  %v4576 = vmul.f32 %v2237, %v4560
  %v4577 = vmul.f32 %v2225, %v4561
  %v4578 = vmul.f32 %v2229, %v4562
  %v4579 = vmul.f32 %v2233, %v4563
  %v4580 = vmul.f32 %v2237, %v4564
  %v4581 = vadd.f32 %v4485, %v4565
  %v4582 = vadd.f32 %v4486, %v4566
  %v4583 = vadd.f32 %v4487, %v4567
  %v4584 = vadd.f32 %v4488, %v4568
  %v4585 = vadd.f32 %v4489, %v4569
  %v4586 = vadd.f32 %v4490, %v4570
  %v4587 = vadd.f32 %v4491, %v4571
  %v4588 = vadd.f32 %v4492, %v4572
  %v4589 = vadd.f32 %v4493, %v4573
  %v4590 = vadd.f32 %v4494, %v4574
  %v4591 = vadd.f32 %v4495, %v4575
  %v4592 = vadd.f32 %v4496, %v4576
  %v4593 = vadd.f32 %v4497, %v4577
  %v4594 = vadd.f32 %v4498, %v4578
  %v4595 = vadd.f32 %v4499, %v4579
  %v4596 = vadd.f32 %v4500, %v4580
  %v4597 = vld [vmem:[%s7] sm:$0xf]
  %v4598 = vld [vmem:[%s7 + $0x4] sm:$0xf]
  %v4599 = vld [vmem:[%s7 + $0x8] sm:$0xf]
  %v4600 = vld [vmem:[%s7 + $0xc] sm:$0xf]
  %v4601 = vld [vmem:[%s7 + $0x10] sm:$0xf]
  %v4602 = vld [vmem:[%s7 + $0x14] sm:$0xf]
  %v4603 = vld [vmem:[%s7 + $0x18] sm:$0xf]
  %v4604 = vld [vmem:[%s7 + $0x1c] sm:$0xf]
  %v4605 = vpack.c.bf16 %v4585, %v4581
  %v4606 = vpack.c.bf16 %v4586, %v4582
  %v4607 = vpack.c.bf16 %v4587, %v4583
  %v4608 = vpack.c.bf16 %v4588, %v4584
  %v4609 = vpack.c.bf16 %v4593, %v4589
  %v4610 = vpack.c.bf16 %v4594, %v4590
  %v4611 = vpack.c.bf16 %v4595, %v4591
  %v4612 = vpack.c.bf16 %v4596, %v4592
  %v4613 = vld [vmem:[%s8] sm:$0xff]
  %v4614 = vld [vmem:[%s8 + $0x8] sm:$0xff]
  %v4615 = vld [vmem:[%s8 + $0x10] sm:$0xff]
  %v4616 = vld [vmem:[%s8 + $0x18] sm:$0xff]
  %v4617 = vld [vmem:[%s8 + $0x20] sm:$0xff]
  %v4618 = vld [vmem:[%s8 + $0x28] sm:$0xff]
  %v4619 = vld [vmem:[%s8 + $0x30] sm:$0xff]
  %v4620 = vld [vmem:[%s8 + $0x38] sm:$0xff]
  %4622 = vset.pattern.permute.xlu0 0
  %4623 = vperm.xlu0 %4622, %v4613
  %v4624 = vpop.permute.xlu0 %4623
  %4627 = vset.pattern.permute.xlu0 0
  %4628 = vperm.xlu0 %4627, %v4614
  %v4629 = vpop.permute.xlu0 %4628
  %4632 = vset.pattern.permute.xlu0 0
  %4633 = vperm.xlu0 %4632, %v4615
  %v4634 = vpop.permute.xlu0 %4633
  %4637 = vset.pattern.permute.xlu0 0
  %4638 = vperm.xlu0 %4637, %v4616
  %v4639 = vpop.permute.xlu0 %4638
  %4642 = vset.pattern.permute.xlu0 0
  %4643 = vperm.xlu0 %4642, %v4617
  %v4644 = vpop.permute.xlu0 %4643
  %4647 = vset.pattern.permute.xlu0 0
  %4648 = vperm.xlu0 %4647, %v4618
  %v4649 = vpop.permute.xlu0 %4648
  %4652 = vset.pattern.permute.xlu0 0
  %4653 = vperm.xlu0 %4652, %v4619
  %v4654 = vpop.permute.xlu0 %4653
  %4657 = vset.pattern.permute.xlu0 0
  %4658 = vperm.xlu0 %4657, %v4620
  %v4659 = vpop.permute.xlu0 %4658
  %v4669 = vunpack.c.l.b16 %v4597
  %v4670 = vunpack.c.l.b16 %v4598
  %v4671 = vunpack.c.l.b16 %v4599
  %v4672 = vunpack.c.l.b16 %v4600
  %v4673 = vunpack.c.l.b16 %v4601
  %v4674 = vunpack.c.l.b16 %v4602
  %v4675 = vunpack.c.l.b16 %v4603
  %v4676 = vunpack.c.l.b16 %v4604
  %v4677 = vpack.c.b16 %v4670, %v4669
  %v4678 = vpack.c.b16 %v4672, %v4671
  %v4679 = vpack.c.b16 %v4674, %v4673
  %v4680 = vpack.c.b16 %v4676, %v4675
  %v4682 = vsel %vm2405, %v4677, 0
  %v4685 = vsel %vm2405, %v4678, 0
  %v4688 = vsel %vm2405, %v4679, 0
  %v4691 = vsel %vm2405, %v4680, 0
  %4693 = vmatprep.subr.bf16.mxu0 %v4606
  %4694 = vmatpush1.bf16.msra.mxu0 %v4605
  %4695 = vmatprep.subr.bf16.mxu0 %v4610
  %4696 = vmatpush1.bf16.msra.mxu0 %v4609
  %4697 = vmatprep.subr.bf16.mxu0 0
  %4698 = vmatpush1.bf16.msra.mxu0 0
  %4699 = vmatprep.subr.bf16.mxu0 0
  %4700 = vmatpush1.bf16.msra.mxu0 0
  %4701 = vmatprep.subr.bf16.mxu0 0
  %4702 = vmatpush1.bf16.msra.mxu0 0
  %4703 = vmatprep.subr.bf16.mxu0 0
  %4704 = vmatpush1.bf16.msra.mxu0 0
  %4705 = vmatprep.subr.bf16.mxu0 0
  %4706 = vmatpush1.bf16.msra.mxu0 0
  %4707 = vmatprep.subr.bf16.mxu0 0
  %4708 = vmatpush1.bf16.msra.mxu0 0
  %4709 = vmatprep.subr.bf16.mxu0 0
  %4710 = vmatpush1.bf16.msra.mxu0 0
  %4711 = vmatprep.subr.bf16.mxu0 0
  %4712 = vmatpush1.bf16.msra.mxu0 0
  %4713 = vmatprep.subr.bf16.mxu0 0
  %4714 = vmatpush1.bf16.msra.mxu0 0
  %4715 = vmatprep.subr.bf16.mxu0 0
  %4716 = vmatpush1.bf16.msra.mxu0 0
  %4717 = vmatprep.subr.bf16.mxu0 0
  %4718 = vmatpush1.bf16.msra.mxu0 0
  %4719 = vmatprep.subr.bf16.mxu0 0
  %4720 = vmatpush1.bf16.msra.mxu0 0
  %4721 = vmatprep.subr.bf16.mxu0 0
  %4722 = vmatpush1.bf16.msra.mxu0 0
  %4723 = vmatprep.subr.bf16.mxu0 0
  %4724 = vmatpush1.bf16.msra.mxu0 0
  %4725 = vmatprep.mubr.bf16.mxu0 0
  %4726 = vmatmul.mubr.bf16.gmra.mrb[0].mxu0 %v4682
  %v4727 = vpop.f32.mrb[0].mxu0
  %v4728 = vadd.f32 %v4624, %v4727
  %v4729 = vpop.f32.mrb[0].mxu0
  %v4730 = vadd.f32 %v4624, %v4729
  %v4731 = vpop.f32.mrb[0].mxu0
  %v4732 = vadd.f32 %v4629, %v4731
  %v4733 = vpop.f32.mrb[0].mxu0
  %v4734 = vadd.f32 %v4629, %v4733
  %4735 = vmatprep.mubr.bf16.mxu0 0
  %4736 = vmatmul.mubr.bf16.gmra.mrb[0].mxu0 %v4685
  %v4737 = vpop.f32.mrb[0].mxu0
  %v4738 = vadd.f32 %v4634, %v4737
  %v4739 = vpop.f32.mrb[0].mxu0
  %v4740 = vadd.f32 %v4634, %v4739
  %v4741 = vpop.f32.mrb[0].mxu0
  %v4742 = vadd.f32 %v4639, %v4741
  %v4743 = vpop.f32.mrb[0].mxu0
  %v4744 = vadd.f32 %v4639, %v4743
  %4745 = vmatprep.mubr.bf16.mxu0 0
  %4746 = vmatmul.mubr.bf16.gmra.mrb[0].mxu0 %v4688
  %v4747 = vpop.f32.mrb[0].mxu0
  %v4748 = vadd.f32 %v4644, %v4747
  %v4749 = vpop.f32.mrb[0].mxu0
  %v4750 = vadd.f32 %v4644, %v4749
  %v4751 = vpop.f32.mrb[0].mxu0
  %v4752 = vadd.f32 %v4649, %v4751
  %v4753 = vpop.f32.mrb[0].mxu0
  %v4754 = vadd.f32 %v4649, %v4753
  %4755 = vmatprep.mubr.bf16.mxu0 0
  %4756 = vmatmul.mubr.bf16.gmra.mrb[0].mxu0 %v4691
  %v4757 = vpop.f32.mrb[0].mxu0
  %v4758 = vadd.f32 %v4654, %v4757
  %v4759 = vpop.f32.mrb[0].mxu0
  %v4760 = vadd.f32 %v4654, %v4759
  %v4761 = vpop.f32.mrb[0].mxu0
  %v4762 = vadd.f32 %v4659, %v4761
  %v4763 = vpop.f32.mrb[0].mxu0
  %v4764 = vadd.f32 %v4659, %v4763
  %4765 = vdwg.mxu0
  %4766 = vmatprep.subr.bf16.mxu0 %v4608
  %4767 = vmatpush1.bf16.msra.mxu0 %v4607
  %4768 = vmatprep.subr.bf16.mxu0 %v4612
  %4769 = vmatpush1.bf16.msra.mxu0 %v4611
  %4770 = vmatprep.subr.bf16.mxu0 0
  %4771 = vmatpush1.bf16.msra.mxu0 0
  %4772 = vmatprep.subr.bf16.mxu0 0
  %4773 = vmatpush1.bf16.msra.mxu0 0
  %4774 = vmatprep.subr.bf16.mxu0 0
  %4775 = vmatpush1.bf16.msra.mxu0 0
  %4776 = vmatprep.subr.bf16.mxu0 0
  %4777 = vmatpush1.bf16.msra.mxu0 0
  %4778 = vmatprep.subr.bf16.mxu0 0
  %4779 = vmatpush1.bf16.msra.mxu0 0
  %4780 = vmatprep.subr.bf16.mxu0 0
  %4781 = vmatpush1.bf16.msra.mxu0 0
  %4782 = vmatprep.subr.bf16.mxu0 0
  %4783 = vmatpush1.bf16.msra.mxu0 0
  %4784 = vmatprep.subr.bf16.mxu0 0
  %4785 = vmatpush1.bf16.msra.mxu0 0
  %4786 = vmatprep.subr.bf16.mxu0 0
  %4787 = vmatpush1.bf16.msra.mxu0 0
  %4788 = vmatprep.subr.bf16.mxu0 0
  %4789 = vmatpush1.bf16.msra.mxu0 0
  %4790 = vmatprep.subr.bf16.mxu0 0
  %4791 = vmatpush1.bf16.msra.mxu0 0
  %4792 = vmatprep.subr.bf16.mxu0 0
  %4793 = vmatpush1.bf16.msra.mxu0 0
  %4794 = vmatprep.subr.bf16.mxu0 0
  %4795 = vmatpush1.bf16.msra.mxu0 0
  %4796 = vmatprep.subr.bf16.mxu0 0
  %4797 = vmatpush1.bf16.msra.mxu0 0
  %4798 = vmatprep.mubr.bf16.mxu0 0
  %4799 = vmatmul.mubr.bf16.gmra.mrb[0].mxu0 %v4682
  %v4800 = vpop.f32.mrb[0].mxu0
  %v4801 = vadd.f32 %v4624, %v4800
  %v4802 = vpop.f32.mrb[0].mxu0
  %v4803 = vadd.f32 %v4624, %v4802
  %v4804 = vpop.f32.mrb[0].mxu0
  %v4805 = vadd.f32 %v4629, %v4804
  %v4806 = vpop.f32.mrb[0].mxu0
  %v4807 = vadd.f32 %v4629, %v4806
  %4808 = vmatprep.mubr.bf16.mxu0 0
  %4809 = vmatmul.mubr.bf16.gmra.mrb[0].mxu0 %v4685
  %v4810 = vpop.f32.mrb[0].mxu0
  %v4811 = vadd.f32 %v4634, %v4810
  %v4812 = vpop.f32.mrb[0].mxu0
  %v4813 = vadd.f32 %v4634, %v4812
  %v4814 = vpop.f32.mrb[0].mxu0
  %v4815 = vadd.f32 %v4639, %v4814
  %v4816 = vpop.f32.mrb[0].mxu0
  %v4817 = vadd.f32 %v4639, %v4816
  %4818 = vmatprep.mubr.bf16.mxu0 0
  %4819 = vmatmul.mubr.bf16.gmra.mrb[0].mxu0 %v4688
  %v4820 = vpop.f32.mrb[0].mxu0
  %v4821 = vadd.f32 %v4644, %v4820
  %v4822 = vpop.f32.mrb[0].mxu0
  %v4823 = vadd.f32 %v4644, %v4822
  %v4824 = vpop.f32.mrb[0].mxu0
  %v4825 = vadd.f32 %v4649, %v4824
  %v4826 = vpop.f32.mrb[0].mxu0
  %v4827 = vadd.f32 %v4649, %v4826
  %4828 = vmatprep.mubr.bf16.mxu0 0
  %4829 = vmatmul.mubr.bf16.gmra.mrb[0].mxu0 %v4691
  %v4830 = vpop.f32.mrb[0].mxu0
  %v4831 = vadd.f32 %v4654, %v4830
  %v4832 = vpop.f32.mrb[0].mxu0
  %v4833 = vadd.f32 %v4654, %v4832
  %v4834 = vpop.f32.mrb[0].mxu0
  %v4835 = vadd.f32 %v4659, %v4834
  %v4836 = vpop.f32.mrb[0].mxu0
  %v4837 = vadd.f32 %v4659, %v4836
  %4838 = vdwg.mxu0
  %4839 = vst [vmem:[%s13] sm:$0xff] %v4728
  %4840 = vst [vmem:[%s13 + $0x8] sm:$0xff] %v4730
  %4841 = vst [vmem:[%s13 + $0x10] sm:$0xff] %v4801
  %4842 = vst [vmem:[%s13 + $0x18] sm:$0xff] %v4803
  %4843 = vst [vmem:[%s13 + $0x20] sm:$0xff] %v4732
  %4844 = vst [vmem:[%s13 + $0x28] sm:$0xff] %v4734
  %4845 = vst [vmem:[%s13 + $0x30] sm:$0xff] %v4805
  %4846 = vst [vmem:[%s13 + $0x38] sm:$0xff] %v4807
  %4847 = vst [vmem:[%s13 + $0x40] sm:$0xff] %v4738
  %4848 = vst [vmem:[%s13 + $0x48] sm:$0xff] %v4740
  %4849 = vst [vmem:[%s13 + $0x50] sm:$0xff] %v4811
  %4850 = vst [vmem:[%s13 + $0x58] sm:$0xff] %v4813
  %4851 = vst [vmem:[%s13 + $0x60] sm:$0xff] %v4742
  %4852 = vst [vmem:[%s13 + $0x68] sm:$0xff] %v4744
  %4853 = vst [vmem:[%s13 + $0x70] sm:$0xff] %v4815
  %4854 = vst [vmem:[%s13 + $0x78] sm:$0xff] %v4817
  %4855 = vst [vmem:[%s13 + $0x80] sm:$0xff] %v4748
  %4856 = vst [vmem:[%s13 + $0x88] sm:$0xff] %v4750
  %4857 = vst [vmem:[%s13 + $0x90] sm:$0xff] %v4821
  %4858 = vst [vmem:[%s13 + $0x98] sm:$0xff] %v4823
  %4859 = vst [vmem:[%s13 + $0xa0] sm:$0xff] %v4752
  %4860 = vst [vmem:[%s13 + $0xa8] sm:$0xff] %v4754
  %4861 = vst [vmem:[%s13 + $0xb0] sm:$0xff] %v4825
  %4862 = vst [vmem:[%s13 + $0xb8] sm:$0xff] %v4827
  %4863 = vst [vmem:[%s13 + $0xc0] sm:$0xff] %v4758
  %4864 = vst [vmem:[%s13 + $0xc8] sm:$0xff] %v4760
  %4865 = vst [vmem:[%s13 + $0xd0] sm:$0xff] %v4831
  %4866 = vst [vmem:[%s13 + $0xd8] sm:$0xff] %v4833
  %4867 = vst [vmem:[%s13 + $0xe0] sm:$0xff] %v4762
  %4868 = vst [vmem:[%s13 + $0xe8] sm:$0xff] %v4764
  %4869 = vst [vmem:[%s13 + $0xf0] sm:$0xff] %v4835
  %4870 = vst [vmem:[%s13 + $0xf8] sm:$0xff] %v4837
  // Predicated region
  $region54: #{unet_up_forward.1} parent=0 // pred_check
    _
  $region55: #{unet_up_forward.1} parent=0 // pred_check_branch
    %4872 = sbr.rel (0) target = $region57
  $region56: #{unet_up_forward.1} parent=0 // pred_region
    _
  $region57: #{unet_up_forward.1} parent=0 // pred_fallthru
    _
  // Predicated region
  $region58: #{unet_up_forward.1} parent=0 // pred_check
    _
  $region59: #{unet_up_forward.1} parent=0 // pred_check_branch
    %4874 = sbr.rel (0) target = $region61
  $region60: #{unet_up_forward.1} parent=0 // pred_region
    _
  $region61: #{unet_up_forward.1} parent=0 // pred_fallthru
    _

</llo_original>
